<compile_context>
chip_gen: v5e
topology: v5e:2x2
jax: 0.10.0
libtpu: 0.0.40
codegen_flags: <defaults>
</compile_context>

<pallas_src>
import math

import jax
import jax.numpy as jnp
from jax.experimental import pallas as pl
from jax.experimental.pallas import tpu as pltpu

DIM = 32                 # hidden dim of the transformer
NUM_HEADS = 4
FFN_DIM = 64
STRIDES = [8, 16]        # backbone feature selection (as in the module)
BACKBONE_DIMS = [8, 16, 32, 64, 128]   # channels of backbone levels (strides 2,4,8,16,32)
LN_EPS = 1e-6
SLAB_W = 128             # lane-aligned width of the packed weight slab

# Packed slab row layout (all rows SLAB_W=128 wide):
#   rows [0 : CPAD)            : wP  (merged input_proj weight, incl. per-level bias rows)
#   rows [CPAD : CPAD+FFN_DIM) : wB  (FFN second matmul, FFN_DIM x DIM)
#   rows [CPAD+FFN_DIM : +10)  : bias / LN vectors:
#       +0: [bq|bk|bv] (3*DIM, bq pre-scaled)   +1: bo
#       +2: ln1_g   +3: ln1_b
#       +4: b1 (FFN_DIM)
#       +5: b2      +6: ln2_g   +7: ln2_b
#       +8: out_ln_g  +9: out_ln_b


def _use_batch_fold():
    """Fold the whole batch into one grid step on single-TC chips (v5e/v6e);
    keep one batch element per grid step on multi-TC chips (v7x)."""
    try:
        kind = jax.devices()[0].device_kind.lower()
    except Exception:
        return True
    return not ("v7" in kind or "7x" in kind)


# --------------------------------------------------------------------------
# Fused Pallas kernel: merged input_proj + pos add + 1-layer encoder
# (MHA with additive key-padding/block-diag bias, post-LN, ReLU FFN) +
# output LayerNorm.  Everything is 2-D; per grid step the kernel processes
# N = bb * L sublane-stacked sequence rows (bb batch elements).
# --------------------------------------------------------------------------
def _fused_kernel(xin_ref, pos_ref, bias_ref, rowp_ref, slab_ref, wA_ref, o_ref):
    CPAD = xin_ref.shape[2]
    D = pos_ref.shape[2]
    hd = D // NUM_HEADS
    eps = jnp.float32(LN_EPS)
    hi = jax.lax.Precision.HIGHEST

    # static slices into the consolidated weight slab
    wP = slab_ref[0:CPAD, 0:D]                          # (CPAD, D)
    wB = slab_ref[CPAD:CPAD + FFN_DIM, 0:D]             # (FFN, D)
    RV = CPAD + FFN_DIM

    def vrow(r, w=D):                                    # (1, w) bias/LN row
        return slab_ref[RV + r:RV + r + 1, 0:w]

    def ln(v, g, b):
        mu = jnp.mean(v, axis=-1, keepdims=True)
        var = jnp.mean(jnp.square(v - mu), axis=-1, keepdims=True)
        return (v - mu) * jax.lax.rsqrt(var + eps) * g + b

    # ---- merged input_proj: one (N,CPAD)x(CPAD,D) matmul (per-level Linear
    # bias rides along via the indicator columns), per-row LN affine.
    # Dropout(0.1) == identity in eval mode.
    y = jnp.dot(xin_ref[0], wP, precision=hi, preferred_element_type=jnp.float32)
    y = ln(y, rowp_ref[:, 0:D], rowp_ref[:, D:2 * D])
    x = y + pos_ref[0]                                   # (N, D)

    # ---- fused QKV: one (N,D)x(D,3D) matmul (Wq/bq pre-scaled by 1/sqrt(hd))
    qkv = jnp.dot(x, wA_ref[:, 0:3 * D], precision=hi,
                  preferred_element_type=jnp.float32) + vrow(0, 3 * D)

    bias = bias_ref[0]                                   # (N, N) additive mask

    heads = []
    for h in range(NUM_HEADS):                           # unrolled (LLO visibility)
        qh = qkv[:, h * hd:(h + 1) * hd]
        kh = qkv[:, D + h * hd:D + (h + 1) * hd]
        vh = qkv[:, 2 * D + h * hd:2 * D + (h + 1) * hd]
        s = jax.lax.dot_general(qh, kh, (((1,), (1,)), ((), ())),
                                precision=hi,
                                preferred_element_type=jnp.float32) + bias
        s = s - jnp.max(s, axis=-1, keepdims=True)
        p = jnp.exp(s)
        p = p / jnp.sum(p, axis=-1, keepdims=True)       # exact division (parity)
        heads.append(jnp.dot(p, vh, precision=hi,
                             preferred_element_type=jnp.float32))   # (N, hd)
    attn = jnp.concatenate(heads, axis=-1)               # (N, D)
    attn = jnp.dot(attn, wA_ref[:, 3 * D:4 * D], precision=hi,
                   preferred_element_type=jnp.float32) + vrow(1)

    x1 = ln(x + attn, vrow(2), vrow(3))
    hmid = jnp.maximum(
        jnp.dot(x1, wA_ref[:, 4 * D:4 * D + FFN_DIM], precision=hi,
                preferred_element_type=jnp.float32) + vrow(4, FFN_DIM), 0.0)
    ffn = jnp.dot(hmid, wB, precision=hi, preferred_element_type=jnp.float32) + vrow(5)
    x2 = ln(x1 + ffn, vrow(6), vrow(7))
    # HybridTransformer.output_ln fused here:
    o_ref[0] = ln(x2, vrow(8), vrow(9))


def run_fused(xin, pos, bias, rowp, slab, wA):
    """Single pallas_call for input_proj + encoder + output LayerNorm.
    Inputs are pre-grouped as (G, N, ...) with N = bb*L rows per grid step."""
    G, N, CPAD = xin.shape
    D = pos.shape[2]

    return pl.pallas_call(
        _fused_kernel,
        out_shape=jax.ShapeDtypeStruct((G, N, D), jnp.float32),
        grid=(G,),
        in_specs=[
            pl.BlockSpec((1, N, CPAD), lambda g: (g, 0, 0)),
            pl.BlockSpec((1, N, D), lambda g: (g, 0, 0)),
            pl.BlockSpec((1, N, N), lambda g: (g, 0, 0)),
            pl.BlockSpec(rowp.shape, lambda g: (0, 0)),   # shared across steps
            pl.BlockSpec(slab.shape, lambda g: (0, 0)),
            pl.BlockSpec(wA.shape, lambda g: (0, 0)),
        ],
        out_specs=pl.BlockSpec((1, N, D), lambda g: (g, 0, 0)),
        compiler_params=pltpu.CompilerParams(dimension_semantics=("parallel",)),
    )(xin, pos, bias, rowp, slab, wA)


# --------------------------------------------------------------------------
# Plain-JAX glue: synthetic backbone, nearest mask resize, positional encoding
# --------------------------------------------------------------------------
def synthetic_backbone(images, conv_ws, conv_bs):
    """Injected backbone stand-in: avg-pool to stride 2^(i+1) + 1x1 conv."""
    B, C, H, W = images.shape
    feats = []
    for i, (w, b) in enumerate(zip(conv_ws, conv_bs)):
        s = 2 ** (i + 1)
        h, wd = H // s, W // s
        pooled = images.reshape(B, C, h, s, wd, s).mean(axis=(3, 5))    # (B,3,h,w)
        feat = jnp.einsum("bchw,co->bohw", pooled, w) + b[None, :, None, None]
        feats.append(feat)                                              # NCHW
    return feats


def resize_mask_nearest(mask_bool, h, w):
    """F.interpolate(mode='nearest') on the float mask, then .bool()."""
    B, H, W = mask_bool.shape
    rows = (jnp.arange(h) * H) // h
    cols = (jnp.arange(w) * W) // w
    return mask_bool[:, rows][:, :, cols]


def positional_encoding(mask_bool, pdim, temperature=10000.0):
    """PositionalEncoding(dim=pdim, normalize=True). Returns NHWC (B,h,w,2*pdim)."""
    B, h, w = mask_bool.shape
    not_mask = (~mask_bool).astype(jnp.float32)
    y_embed = jnp.arange(1, h + 1, dtype=jnp.float32).reshape(1, h, 1) * not_mask
    x_embed = jnp.arange(1, w + 1, dtype=jnp.float32).reshape(1, 1, w) * not_mask
    eps = 1e-6
    scale = 2 * math.pi
    y_embed = (y_embed - 0.5) / (jnp.max(y_embed, axis=1, keepdims=True) + eps) * scale
    x_embed = (x_embed - 0.5) / (jnp.max(x_embed, axis=2, keepdims=True) + eps) * scale
    freq = jnp.arange(pdim, dtype=jnp.float32)
    freq = temperature ** (2.0 * jnp.floor(freq / 2.0) / (pdim // 2))
    pos_x = x_embed[..., None] / freq
    pos_y = y_embed[..., None] / freq
    pos_x = jnp.stack((jnp.sin(pos_x[..., 0::2]), jnp.cos(pos_x[..., 1::2])),
                      axis=4).reshape(B, h, w, pdim)
    pos_y = jnp.stack((jnp.sin(pos_y[..., 0::2]), jnp.cos(pos_y[..., 1::2])),
                      axis=4).reshape(B, h, w, pdim)
    return jnp.concatenate((pos_y, pos_x), axis=3)                       # (B,h,w,2*pdim)


def hybrid_transformer_forward(params, images, masks):
    feats_all = synthetic_backbone(images, params["backbone_w"], params["backbone_b"])
    feat_ids = [int(math.log(s, 2)) - 1 for s in STRIDES]
    feats_sel = feats_all[feat_ids[0]:feat_ids[-1] + 1]
    assert len(feats_sel) == 2, "fused kernel is specialized for two feature levels"

    x_lvls, pos_lvls, mask_lvls, shapes = [], [], [], []
    for feat in feats_sel:                                 # NCHW (B,C,h,w)
        B, C, h, w = feat.shape
        x_lvls.append(jnp.transpose(feat, (0, 2, 3, 1)).reshape(B, h * w, C))
        m = resize_mask_nearest(masks, h, w)
        pos_lvls.append(positional_encoding(m, DIM // 2).reshape(B, h * w, DIM))
        mask_lvls.append(m.reshape(B, h * w))
        shapes.append((h, w))
    B = images.shape[0]
    L0, C0 = x_lvls[0].shape[1], x_lvls[0].shape[2]
    L1, C1 = x_lvls[1].shape[1], x_lvls[1].shape[2]
    L = L0 + L1
    CPAD = params["packed"]["cpad"]

    pos_c = jnp.concatenate(pos_lvls, axis=1)              # (B, L, DIM)
    mask_c = jnp.concatenate(mask_lvls, axis=1)            # (B, L) bool
    # TODO(synk): torch uses int64 for `shapes`; int32 here (jax x64 disabled).
    shapes_arr = jnp.asarray(shapes, dtype=jnp.int32)      # (n_levels, 2)

    # merged input_proj operand: level-0 rows carry x0 in cols[0:C0], level-1
    # rows carry x1 in cols[C0:C0+C1]; two indicator columns route the
    # per-level Linear biases through the same matmul.
    xin = jnp.zeros((B, L, CPAD), jnp.float32)
    xin = xin.at[:, :L0, 0:C0].set(x_lvls[0])
    xin = xin.at[:, L0:, C0:C0 + C1].set(x_lvls[1])
    xin = xin.at[:, :L0, C0 + C1].set(1.0)
    xin = xin.at[:, L0:, C0 + C1 + 1].set(1.0)

    # per-row LayerNorm affine (gamma | beta) for the merged projection
    ln2 = params["packed"]["proj_ln"]                      # (2, 2*DIM)
    rowp = jnp.concatenate(
        [jnp.broadcast_to(ln2[0], (L0, 2 * DIM)),
         jnp.broadcast_to(ln2[1], (L1, 2 * DIM))], axis=0)                # (L, 2*DIM)

    # batch fold: bb batch elems stacked along sublanes per grid step
    bb = B if _use_batch_fold() else 1
    if B % bb != 0:
        bb = 1
    G = B // bb
    N = bb * L

    xin_g = xin.reshape(G, N, CPAD)
    pos_g = pos_c.reshape(G, N, DIM)
    rowp_g = jnp.tile(rowp, (bb, 1)) if bb > 1 else rowp    # (N, 2*DIM)

    # additive attention bias: key-padding (enc_mask semantics: key-only
    # padding) + block-diagonal structure across folded batch elements.
    keyneg = jnp.where(mask_c, jnp.float32(-1e9), jnp.float32(0.0))       # (B, L)
    km = keyneg.reshape(G, bb, L)
    eye = jnp.eye(bb, dtype=jnp.float32)
    bias = jnp.where(eye[None, :, None, :, None] > 0.5,
                     km[:, None, None, :, :], jnp.float32(-1e9))
    bias = jnp.broadcast_to(bias, (G, bb, L, bb, L)).reshape(G, N, N)

    encoded = run_fused(xin_g, pos_g, bias, rowp_g,
                        params["packed"]["slab"], params["packed"]["wA"])
    encoded = encoded.reshape(B, L, DIM)
    return encoded, mask_c, shapes_arr


# --------------------------------------------------------------------------
# Deterministic parameter init (natural shapes drawn, then packed into slabs)
# --------------------------------------------------------------------------
def init_params(key):
    keys = jax.random.split(key, 64)
    kit = iter(keys)

    def nrm(shape, scale=0.05):
        return (scale * jax.random.normal(next(kit), shape)).astype(jnp.float32)

    feat_ids = [int(math.log(s, 2)) - 1 for s in STRIDES]
    backbone_w = [nrm((3, c)) for c in BACKBONE_DIMS]
    backbone_b = [nrm((c,)) for c in BACKBONE_DIMS]

    c0, c1 = BACKBONE_DIMS[feat_ids[0]], BACKBONE_DIMS[feat_ids[1]]
    cpad = -(-(c0 + c1 + 2) // 8) * 8          # round up to multiple of 8 (sublane align)

    # input_proj per level (Linear C->DIM, LayerNorm DIM; torch-default LN init)
    proj_w = [nrm((c0, DIM)), nrm((c1, DIM))]
    proj_b = [nrm((DIM,)), nrm((DIM,))]
    proj_g = [jnp.ones((DIM,), jnp.float32), jnp.ones((DIM,), jnp.float32)]
    proj_be = [jnp.zeros((DIM,), jnp.float32), jnp.zeros((DIM,), jnp.float32)]

    # encoder weights (natural MHA layout; per-head slices along output columns)
    wq, wk, wv, wo = nrm((DIM, DIM)), nrm((DIM, DIM)), nrm((DIM, DIM)), nrm((DIM, DIM))
    bq, bk, bv, bo = nrm((DIM,)), nrm((DIM,)), nrm((DIM,)), nrm((DIM,))
    w1, b1 = nrm((DIM, FFN_DIM)), nrm((FFN_DIM,))
    w2, b2 = nrm((FFN_DIM, DIM)), nrm((DIM,))
    ln1_g, ln1_b = jnp.ones((DIM,), jnp.float32), jnp.zeros((DIM,), jnp.float32)
    ln2_g, ln2_b = jnp.ones((DIM,), jnp.float32), jnp.zeros((DIM,), jnp.float32)
    out_g, out_b = jnp.ones((DIM,), jnp.float32), jnp.zeros((DIM,), jnp.float32)

    # fold attention scale 1/sqrt(head_dim) into Wq/bq at pack time
    scale = 1.0 / math.sqrt(DIM // NUM_HEADS)
    wq = wq * scale
    bq = bq * scale

    # merged projection weight block (cpad, DIM): [proj_w0; proj_w1; b0; b1; 0-pad]
    wP = jnp.zeros((cpad, DIM), jnp.float32)
    wP = wP.at[0:c0].set(proj_w[0])
    wP = wP.at[c0:c0 + c1].set(proj_w[1])
    wP = wP.at[c0 + c1].set(proj_b[0])
    wP = wP.at[c0 + c1 + 1].set(proj_b[1])

    def pad_row(v):
        return jnp.pad(v, (0, SLAB_W - v.shape[0]))

    vec = jnp.stack([
        pad_row(jnp.concatenate([bq, bk, bv])),            # +0
        pad_row(bo), pad_row(ln1_g), pad_row(ln1_b),       # +1 +2 +3
        pad_row(b1),                                       # +4
        pad_row(b2), pad_row(ln2_g), pad_row(ln2_b),       # +5 +6 +7
        pad_row(out_g), pad_row(out_b),                    # +8 +9
    ], axis=0)                                             # (10, 128)

    def pad_cols(m):
        return jnp.pad(m, ((0, 0), (0, SLAB_W - m.shape[1])))

    slab = jnp.concatenate([pad_cols(wP), pad_cols(w2), vec], axis=0)  # (cpad+FFN+10, 128)
    wA = jnp.concatenate([wq, wk, wv, wo, w1], axis=1)     # (DIM, 4*DIM+FFN_DIM)
    proj_ln = jnp.stack([jnp.concatenate([proj_g[0], proj_be[0]]),
                         jnp.concatenate([proj_g[1], proj_be[1]])], axis=0)  # (2, 2*DIM)

    packed = {"slab": slab, "wA": wA, "proj_ln": proj_ln, "cpad": cpad}
    # level_embed exists in the PyTorch module but is never used in forward().
    return {"backbone_w": backbone_w, "backbone_b": backbone_b, "packed": packed}


if __name__ == "__main__":
    key = jax.random.PRNGKey(0)
    pkey, ikey = jax.random.split(key)
    params = init_params(pkey)

    B, H, W = 2, 32, 32
    images = jax.random.normal(ikey, (B, 3, H, W), dtype=jnp.float32)   # NCHW, like torch
    masks = jnp.zeros((B, H, W), dtype=bool)
    masks = masks.at[1, :, 24:].set(True)                               # padded region

    out, mask, shapes = hybrid_transformer_forward(params, images, masks)
    out = jax.block_until_ready(out)
    mask = jax.block_until_ready(mask)
    shapes = jax.block_until_ready(shapes)

    L = (W // 8) * (H // 8) + (W // 16) * (H // 16)                     # 16 + 4 = 20
    assert out.shape == (B, L, DIM) and out.dtype == jnp.float32
    assert mask.shape == (B, L) and mask.dtype == jnp.bool_
    assert shapes.shape == (len(STRIDES), 2)
    assert bool(jnp.all(jnp.isfinite(out)))
    print("KERNEL_OK")
</pallas_src>

<mosaic_0001>
module attributes {stable_mosaic.version = 11 : i64} {
  func.func @_fused_kernel(%arg0: i32, %arg1: memref<1x40x104xf32, #tpu.memory_space<vmem>>, %arg2: memref<1x40x32xf32, #tpu.memory_space<vmem>>, %arg3: memref<1x40x40xf32, #tpu.memory_space<vmem>>, %arg4: memref<40x64xf32, #tpu.memory_space<vmem>>, %arg5: memref<178x128xf32, #tpu.memory_space<vmem>>, %arg6: memref<32x192xf32, #tpu.memory_space<vmem>>, %arg7: memref<1x40x32xf32, #tpu.memory_space<vmem>>) attributes {dimension_semantics = [#tpu.dimension_semantics<parallel>], iteration_bounds = array<i64: 1>, scalar_prefetch = 0 : i64, scratch_operands = 0 : i64, tpu.core_type = #tpu.core_type<tc>, window_params = [{transform_indices = @transform_0, window_bounds = array<i64: 1, 40, 104>}, {transform_indices = @transform_1, window_bounds = array<i64: 1, 40, 32>}, {transform_indices = @transform_2, window_bounds = array<i64: 1, 40, 40>}, {pipeline_mode = #tpu.pipeline_mode<synchronous>, transform_indices = @transform_3, window_bounds = array<i64: 40, 64>}, {pipeline_mode = #tpu.pipeline_mode<synchronous>, transform_indices = @transform_4, window_bounds = array<i64: 178, 128>}, {pipeline_mode = #tpu.pipeline_mode<synchronous>, transform_indices = @transform_5, window_bounds = array<i64: 32, 192>}, {transform_indices = @transform_6, window_bounds = array<i64: 1, 40, 32>}]} {
    %c0 = arith.constant 0 : index
    %c0_0 = arith.constant 0 : index
    %0 = vector.load %arg5[%c0, %c0_0] : memref<178x128xf32, #tpu.memory_space<vmem>>, vector<104x32xf32>
    %c104 = arith.constant 104 : index
    %c0_1 = arith.constant 0 : index
    %1 = vector.load %arg5[%c104, %c0_1] : memref<178x128xf32, #tpu.memory_space<vmem>>, vector<64x32xf32>
    %c0_2 = arith.constant 0 : index
    %c0_3 = arith.constant 0 : index
    %c0_4 = arith.constant 0 : index
    %2 = vector.load %arg1[%c0_2, %c0_3, %c0_4] : memref<1x40x104xf32, #tpu.memory_space<vmem>>, vector<1x40x104xf32>
    %3 = vector.shape_cast %2 : vector<1x40x104xf32> to vector<40x104xf32>
    %cst = arith.constant dense<0.000000e+00> : vector<40x32xf32>
    %4 = tpu.matmul %3, %0, %cst {dimension_numbers = #tpu.dot_dimension_numbers<[1], [0], [0], [1], [0, 0, 1, 1], [], []>, precision = #tpu.contract_precision<fp32>} : vector<40x104xf32>, vector<104x32xf32>, vector<40x32xf32> -> vector<40x32xf32>
    %c0_5 = arith.constant 0 : index
    %c0_6 = arith.constant 0 : index
    %5 = vector.load %arg4[%c0_5, %c0_6] : memref<40x64xf32, #tpu.memory_space<vmem>>, vector<40x32xf32>
    %c0_7 = arith.constant 0 : index
    %c32 = arith.constant 32 : index
    %6 = vector.load %arg4[%c0_7, %c32] : memref<40x64xf32, #tpu.memory_space<vmem>>, vector<40x32xf32>
    %cst_8 = arith.constant dense<0.000000e+00> : vector<40xf32>
    %7 = vector.multi_reduction <add>, %4, %cst_8 [1] : vector<40x32xf32> to vector<40xf32>
    %8 = vector.shape_cast %7 : vector<40xf32> to vector<40x1xf32>
    %cst_9 = arith.constant 3.200000e+01 : f32
    %9 = vector.broadcast %cst_9 : f32 to vector<40x1xf32>
    %10 = arith.divf %8, %9 : vector<40x1xf32>
    %11 = vector.broadcast %10 : vector<40x1xf32> to vector<40x32xf32>
    %12 = arith.subf %4, %11 : vector<40x32xf32>
    %13 = arith.mulf %12, %12 : vector<40x32xf32>
    %cst_10 = arith.constant dense<0.000000e+00> : vector<40xf32>
    %14 = vector.multi_reduction <add>, %13, %cst_10 [1] : vector<40x32xf32> to vector<40xf32>
    %15 = vector.shape_cast %14 : vector<40xf32> to vector<40x1xf32>
    %cst_11 = arith.constant 3.200000e+01 : f32
    %16 = vector.broadcast %cst_11 : f32 to vector<40x1xf32>
    %17 = arith.divf %15, %16 : vector<40x1xf32>
    %18 = vector.broadcast %10 : vector<40x1xf32> to vector<40x32xf32>
    %19 = arith.subf %4, %18 : vector<40x32xf32>
    %cst_12 = arith.constant 9.99999997E-7 : f32
    %20 = vector.broadcast %cst_12 : f32 to vector<40x1xf32>
    %21 = arith.addf %17, %20 : vector<40x1xf32>
    %22 = math.rsqrt %21 : vector<40x1xf32>
    %23 = vector.broadcast %22 : vector<40x1xf32> to vector<40x32xf32>
    %24 = arith.mulf %19, %23 : vector<40x32xf32>
    %25 = arith.mulf %24, %5 : vector<40x32xf32>
    %26 = arith.addf %25, %6 : vector<40x32xf32>
    %c0_13 = arith.constant 0 : index
    %c0_14 = arith.constant 0 : index
    %c0_15 = arith.constant 0 : index
    %27 = vector.load %arg2[%c0_13, %c0_14, %c0_15] : memref<1x40x32xf32, #tpu.memory_space<vmem>>, vector<1x40x32xf32>
    %28 = vector.shape_cast %27 : vector<1x40x32xf32> to vector<40x32xf32>
    %29 = arith.addf %26, %28 : vector<40x32xf32>
    %c0_16 = arith.constant 0 : index
    %c0_17 = arith.constant 0 : index
    %30 = vector.load %arg6[%c0_16, %c0_17] : memref<32x192xf32, #tpu.memory_space<vmem>>, vector<32x96xf32>
    %cst_18 = arith.constant dense<0.000000e+00> : vector<40x96xf32>
    %31 = tpu.matmul %29, %30, %cst_18 {dimension_numbers = #tpu.dot_dimension_numbers<[1], [0], [0], [1], [0, 0, 1, 1], [], []>, precision = #tpu.contract_precision<fp32>} : vector<40x32xf32>, vector<32x96xf32>, vector<40x96xf32> -> vector<40x96xf32>
    %c168 = arith.constant 168 : index
    %c0_19 = arith.constant 0 : index
    %32 = vector.load %arg5[%c168, %c0_19] : memref<178x128xf32, #tpu.memory_space<vmem>>, vector<1x96xf32>
    %33 = vector.broadcast %32 : vector<1x96xf32> to vector<40x96xf32>
    %34 = arith.addf %31, %33 : vector<40x96xf32>
    %c0_20 = arith.constant 0 : index
    %c0_21 = arith.constant 0 : index
    %c0_22 = arith.constant 0 : index
    %35 = vector.load %arg3[%c0_20, %c0_21, %c0_22] : memref<1x40x40xf32, #tpu.memory_space<vmem>>, vector<1x40x40xf32>
    %36 = vector.shape_cast %35 : vector<1x40x40xf32> to vector<40x40xf32>
    %37 = vector.extract_strided_slice %34 {offsets = [0, 0], sizes = [40, 8], strides = [1, 1]} : vector<40x96xf32> to vector<40x8xf32>
    %38 = vector.extract_strided_slice %34 {offsets = [0, 32], sizes = [40, 8], strides = [1, 1]} : vector<40x96xf32> to vector<40x8xf32>
    %39 = vector.extract_strided_slice %34 {offsets = [0, 64], sizes = [40, 8], strides = [1, 1]} : vector<40x96xf32> to vector<40x8xf32>
    %cst_23 = arith.constant dense<0.000000e+00> : vector<40x40xf32>
    %40 = tpu.matmul %37, %38, %cst_23 {dimension_numbers = #tpu.dot_dimension_numbers<[1], [1], [0], [0], [0, 0, 1, 0], [], []>, precision = #tpu.contract_precision<fp32>} : vector<40x8xf32>, vector<40x8xf32>, vector<40x40xf32> -> vector<40x40xf32>
    %41 = arith.addf %40, %36 : vector<40x40xf32>
    %cst_24 = arith.constant dense<0xFF800000> : vector<40xf32>
    %42 = vector.multi_reduction <maximumf>, %41, %cst_24 [1] : vector<40x40xf32> to vector<40xf32>
    %43 = vector.shape_cast %42 : vector<40xf32> to vector<40x1xf32>
    %44 = vector.broadcast %43 : vector<40x1xf32> to vector<40x40xf32>
    %45 = arith.subf %41, %44 : vector<40x40xf32>
    %46 = math.exp %45 : vector<40x40xf32>
    %cst_25 = arith.constant dense<0.000000e+00> : vector<40xf32>
    %47 = vector.multi_reduction <add>, %46, %cst_25 [1] : vector<40x40xf32> to vector<40xf32>
    %48 = vector.shape_cast %47 : vector<40xf32> to vector<40x1xf32>
    %49 = vector.broadcast %48 : vector<40x1xf32> to vector<40x40xf32>
    %50 = arith.divf %46, %49 : vector<40x40xf32>
    %cst_26 = arith.constant dense<0.000000e+00> : vector<40x8xf32>
    %51 = tpu.matmul %50, %39, %cst_26 {dimension_numbers = #tpu.dot_dimension_numbers<[1], [0], [0], [1], [0, 0, 1, 1], [], []>, precision = #tpu.contract_precision<fp32>} : vector<40x40xf32>, vector<40x8xf32>, vector<40x8xf32> -> vector<40x8xf32>
    %52 = vector.extract_strided_slice %34 {offsets = [0, 8], sizes = [40, 8], strides = [1, 1]} : vector<40x96xf32> to vector<40x8xf32>
    %53 = vector.extract_strided_slice %34 {offsets = [0, 40], sizes = [40, 8], strides = [1, 1]} : vector<40x96xf32> to vector<40x8xf32>
    %54 = vector.extract_strided_slice %34 {offsets = [0, 72], sizes = [40, 8], strides = [1, 1]} : vector<40x96xf32> to vector<40x8xf32>
    %cst_27 = arith.constant dense<0.000000e+00> : vector<40x40xf32>
    %55 = tpu.matmul %52, %53, %cst_27 {dimension_numbers = #tpu.dot_dimension_numbers<[1], [1], [0], [0], [0, 0, 1, 0], [], []>, precision = #tpu.contract_precision<fp32>} : vector<40x8xf32>, vector<40x8xf32>, vector<40x40xf32> -> vector<40x40xf32>
    %56 = arith.addf %55, %36 : vector<40x40xf32>
    %cst_28 = arith.constant dense<0xFF800000> : vector<40xf32>
    %57 = vector.multi_reduction <maximumf>, %56, %cst_28 [1] : vector<40x40xf32> to vector<40xf32>
    %58 = vector.shape_cast %57 : vector<40xf32> to vector<40x1xf32>
    %59 = vector.broadcast %58 : vector<40x1xf32> to vector<40x40xf32>
    %60 = arith.subf %56, %59 : vector<40x40xf32>
    %61 = math.exp %60 : vector<40x40xf32>
    %cst_29 = arith.constant dense<0.000000e+00> : vector<40xf32>
    %62 = vector.multi_reduction <add>, %61, %cst_29 [1] : vector<40x40xf32> to vector<40xf32>
    %63 = vector.shape_cast %62 : vector<40xf32> to vector<40x1xf32>
    %64 = vector.broadcast %63 : vector<40x1xf32> to vector<40x40xf32>
    %65 = arith.divf %61, %64 : vector<40x40xf32>
    %cst_30 = arith.constant dense<0.000000e+00> : vector<40x8xf32>
    %66 = tpu.matmul %65, %54, %cst_30 {dimension_numbers = #tpu.dot_dimension_numbers<[1], [0], [0], [1], [0, 0, 1, 1], [], []>, precision = #tpu.contract_precision<fp32>} : vector<40x40xf32>, vector<40x8xf32>, vector<40x8xf32> -> vector<40x8xf32>
    %67 = vector.extract_strided_slice %34 {offsets = [0, 16], sizes = [40, 8], strides = [1, 1]} : vector<40x96xf32> to vector<40x8xf32>
    %68 = vector.extract_strided_slice %34 {offsets = [0, 48], sizes = [40, 8], strides = [1, 1]} : vector<40x96xf32> to vector<40x8xf32>
    %69 = vector.extract_strided_slice %34 {offsets = [0, 80], sizes = [40, 8], strides = [1, 1]} : vector<40x96xf32> to vector<40x8xf32>
    %cst_31 = arith.constant dense<0.000000e+00> : vector<40x40xf32>
    %70 = tpu.matmul %67, %68, %cst_31 {dimension_numbers = #tpu.dot_dimension_numbers<[1], [1], [0], [0], [0, 0, 1, 0], [], []>, precision = #tpu.contract_precision<fp32>} : vector<40x8xf32>, vector<40x8xf32>, vector<40x40xf32> -> vector<40x40xf32>
    %71 = arith.addf %70, %36 : vector<40x40xf32>
    %cst_32 = arith.constant dense<0xFF800000> : vector<40xf32>
    %72 = vector.multi_reduction <maximumf>, %71, %cst_32 [1] : vector<40x40xf32> to vector<40xf32>
    %73 = vector.shape_cast %72 : vector<40xf32> to vector<40x1xf32>
    %74 = vector.broadcast %73 : vector<40x1xf32> to vector<40x40xf32>
    %75 = arith.subf %71, %74 : vector<40x40xf32>
    %76 = math.exp %75 : vector<40x40xf32>
    %cst_33 = arith.constant dense<0.000000e+00> : vector<40xf32>
    %77 = vector.multi_reduction <add>, %76, %cst_33 [1] : vector<40x40xf32> to vector<40xf32>
    %78 = vector.shape_cast %77 : vector<40xf32> to vector<40x1xf32>
    %79 = vector.broadcast %78 : vector<40x1xf32> to vector<40x40xf32>
    %80 = arith.divf %76, %79 : vector<40x40xf32>
    %cst_34 = arith.constant dense<0.000000e+00> : vector<40x8xf32>
    %81 = tpu.matmul %80, %69, %cst_34 {dimension_numbers = #tpu.dot_dimension_numbers<[1], [0], [0], [1], [0, 0, 1, 1], [], []>, precision = #tpu.contract_precision<fp32>} : vector<40x40xf32>, vector<40x8xf32>, vector<40x8xf32> -> vector<40x8xf32>
    %82 = vector.extract_strided_slice %34 {offsets = [0, 24], sizes = [40, 8], strides = [1, 1]} : vector<40x96xf32> to vector<40x8xf32>
    %83 = vector.extract_strided_slice %34 {offsets = [0, 56], sizes = [40, 8], strides = [1, 1]} : vector<40x96xf32> to vector<40x8xf32>
    %84 = vector.extract_strided_slice %34 {offsets = [0, 88], sizes = [40, 8], strides = [1, 1]} : vector<40x96xf32> to vector<40x8xf32>
    %cst_35 = arith.constant dense<0.000000e+00> : vector<40x40xf32>
    %85 = tpu.matmul %82, %83, %cst_35 {dimension_numbers = #tpu.dot_dimension_numbers<[1], [1], [0], [0], [0, 0, 1, 0], [], []>, precision = #tpu.contract_precision<fp32>} : vector<40x8xf32>, vector<40x8xf32>, vector<40x40xf32> -> vector<40x40xf32>
    %86 = arith.addf %85, %36 : vector<40x40xf32>
    %cst_36 = arith.constant dense<0xFF800000> : vector<40xf32>
    %87 = vector.multi_reduction <maximumf>, %86, %cst_36 [1] : vector<40x40xf32> to vector<40xf32>
    %88 = vector.shape_cast %87 : vector<40xf32> to vector<40x1xf32>
    %89 = vector.broadcast %88 : vector<40x1xf32> to vector<40x40xf32>
    %90 = arith.subf %86, %89 : vector<40x40xf32>
    %91 = math.exp %90 : vector<40x40xf32>
    %cst_37 = arith.constant dense<0.000000e+00> : vector<40xf32>
    %92 = vector.multi_reduction <add>, %91, %cst_37 [1] : vector<40x40xf32> to vector<40xf32>
    %93 = vector.shape_cast %92 : vector<40xf32> to vector<40x1xf32>
    %94 = vector.broadcast %93 : vector<40x1xf32> to vector<40x40xf32>
    %95 = arith.divf %91, %94 : vector<40x40xf32>
    %cst_38 = arith.constant dense<0.000000e+00> : vector<40x8xf32>
    %96 = tpu.matmul %95, %84, %cst_38 {dimension_numbers = #tpu.dot_dimension_numbers<[1], [0], [0], [1], [0, 0, 1, 1], [], []>, precision = #tpu.contract_precision<fp32>} : vector<40x40xf32>, vector<40x8xf32>, vector<40x8xf32> -> vector<40x8xf32>
    %97 = tpu.concatenate %51, %66, %81, %96 in 1 : vector<40x8xf32>, vector<40x8xf32>, vector<40x8xf32>, vector<40x8xf32> -> vector<40x32xf32>
    %c0_39 = arith.constant 0 : index
    %c96 = arith.constant 96 : index
    %98 = vector.load %arg6[%c0_39, %c96] : memref<32x192xf32, #tpu.memory_space<vmem>>, vector<32x32xf32>
    %cst_40 = arith.constant dense<0.000000e+00> : vector<40x32xf32>
    %99 = tpu.matmul %97, %98, %cst_40 {dimension_numbers = #tpu.dot_dimension_numbers<[1], [0], [0], [1], [0, 0, 1, 1], [], []>, precision = #tpu.contract_precision<fp32>} : vector<40x32xf32>, vector<32x32xf32>, vector<40x32xf32> -> vector<40x32xf32>
    %c169 = arith.constant 169 : index
    %c0_41 = arith.constant 0 : index
    %100 = vector.load %arg5[%c169, %c0_41] : memref<178x128xf32, #tpu.memory_space<vmem>>, vector<1x32xf32>
    %101 = vector.broadcast %100 : vector<1x32xf32> to vector<40x32xf32>
    %102 = arith.addf %99, %101 : vector<40x32xf32>
    %103 = arith.addf %29, %102 : vector<40x32xf32>
    %c170 = arith.constant 170 : index
    %c0_42 = arith.constant 0 : index
    %104 = vector.load %arg5[%c170, %c0_42] : memref<178x128xf32, #tpu.memory_space<vmem>>, vector<1x32xf32>
    %c171 = arith.constant 171 : index
    %c0_43 = arith.constant 0 : index
    %105 = vector.load %arg5[%c171, %c0_43] : memref<178x128xf32, #tpu.memory_space<vmem>>, vector<1x32xf32>
    %cst_44 = arith.constant dense<0.000000e+00> : vector<40xf32>
    %106 = vector.multi_reduction <add>, %103, %cst_44 [1] : vector<40x32xf32> to vector<40xf32>
    %107 = vector.shape_cast %106 : vector<40xf32> to vector<40x1xf32>
    %cst_45 = arith.constant 3.200000e+01 : f32
    %108 = vector.broadcast %cst_45 : f32 to vector<40x1xf32>
    %109 = arith.divf %107, %108 : vector<40x1xf32>
    %110 = vector.broadcast %109 : vector<40x1xf32> to vector<40x32xf32>
    %111 = arith.subf %103, %110 : vector<40x32xf32>
    %112 = arith.mulf %111, %111 : vector<40x32xf32>
    %cst_46 = arith.constant dense<0.000000e+00> : vector<40xf32>
    %113 = vector.multi_reduction <add>, %112, %cst_46 [1] : vector<40x32xf32> to vector<40xf32>
    %114 = vector.shape_cast %113 : vector<40xf32> to vector<40x1xf32>
    %cst_47 = arith.constant 3.200000e+01 : f32
    %115 = vector.broadcast %cst_47 : f32 to vector<40x1xf32>
    %116 = arith.divf %114, %115 : vector<40x1xf32>
    %117 = vector.broadcast %109 : vector<40x1xf32> to vector<40x32xf32>
    %118 = arith.subf %103, %117 : vector<40x32xf32>
    %cst_48 = arith.constant 9.99999997E-7 : f32
    %119 = vector.broadcast %cst_48 : f32 to vector<40x1xf32>
    %120 = arith.addf %116, %119 : vector<40x1xf32>
    %121 = math.rsqrt %120 : vector<40x1xf32>
    %122 = vector.broadcast %121 : vector<40x1xf32> to vector<40x32xf32>
    %123 = arith.mulf %118, %122 : vector<40x32xf32>
    %124 = vector.broadcast %104 : vector<1x32xf32> to vector<40x32xf32>
    %125 = arith.mulf %123, %124 : vector<40x32xf32>
    %126 = vector.broadcast %105 : vector<1x32xf32> to vector<40x32xf32>
    %127 = arith.addf %125, %126 : vector<40x32xf32>
    %c0_49 = arith.constant 0 : index
    %c128 = arith.constant 128 : index
    %128 = vector.load %arg6[%c0_49, %c128] : memref<32x192xf32, #tpu.memory_space<vmem>>, vector<32x64xf32>
    %cst_50 = arith.constant dense<0.000000e+00> : vector<40x64xf32>
    %129 = tpu.matmul %127, %128, %cst_50 {dimension_numbers = #tpu.dot_dimension_numbers<[1], [0], [0], [1], [0, 0, 1, 1], [], []>, precision = #tpu.contract_precision<fp32>} : vector<40x32xf32>, vector<32x64xf32>, vector<40x64xf32> -> vector<40x64xf32>
    %c172 = arith.constant 172 : index
    %c0_51 = arith.constant 0 : index
    %130 = vector.load %arg5[%c172, %c0_51] : memref<178x128xf32, #tpu.memory_space<vmem>>, vector<1x64xf32>
    %131 = vector.broadcast %130 : vector<1x64xf32> to vector<40x64xf32>
    %132 = arith.addf %129, %131 : vector<40x64xf32>
    %cst_52 = arith.constant 0.000000e+00 : f32
    %133 = vector.broadcast %cst_52 : f32 to vector<40x64xf32>
    %134 = arith.maximumf %132, %133 : vector<40x64xf32>
    %cst_53 = arith.constant dense<0.000000e+00> : vector<40x32xf32>
    %135 = tpu.matmul %134, %1, %cst_53 {dimension_numbers = #tpu.dot_dimension_numbers<[1], [0], [0], [1], [0, 0, 1, 1], [], []>, precision = #tpu.contract_precision<fp32>} : vector<40x64xf32>, vector<64x32xf32>, vector<40x32xf32> -> vector<40x32xf32>
    %c173 = arith.constant 173 : index
    %c0_54 = arith.constant 0 : index
    %136 = vector.load %arg5[%c173, %c0_54] : memref<178x128xf32, #tpu.memory_space<vmem>>, vector<1x32xf32>
    %137 = vector.broadcast %136 : vector<1x32xf32> to vector<40x32xf32>
    %138 = arith.addf %135, %137 : vector<40x32xf32>
    %139 = arith.addf %127, %138 : vector<40x32xf32>
    %c174 = arith.constant 174 : index
    %c0_55 = arith.constant 0 : index
    %140 = vector.load %arg5[%c174, %c0_55] : memref<178x128xf32, #tpu.memory_space<vmem>>, vector<1x32xf32>
    %c175 = arith.constant 175 : index
    %c0_56 = arith.constant 0 : index
    %141 = vector.load %arg5[%c175, %c0_56] : memref<178x128xf32, #tpu.memory_space<vmem>>, vector<1x32xf32>
    %cst_57 = arith.constant dense<0.000000e+00> : vector<40xf32>
    %142 = vector.multi_reduction <add>, %139, %cst_57 [1] : vector<40x32xf32> to vector<40xf32>
    %143 = vector.shape_cast %142 : vector<40xf32> to vector<40x1xf32>
    %cst_58 = arith.constant 3.200000e+01 : f32
    %144 = vector.broadcast %cst_58 : f32 to vector<40x1xf32>
    %145 = arith.divf %143, %144 : vector<40x1xf32>
    %146 = vector.broadcast %145 : vector<40x1xf32> to vector<40x32xf32>
    %147 = arith.subf %139, %146 : vector<40x32xf32>
    %148 = arith.mulf %147, %147 : vector<40x32xf32>
    %cst_59 = arith.constant dense<0.000000e+00> : vector<40xf32>
    %149 = vector.multi_reduction <add>, %148, %cst_59 [1] : vector<40x32xf32> to vector<40xf32>
    %150 = vector.shape_cast %149 : vector<40xf32> to vector<40x1xf32>
    %cst_60 = arith.constant 3.200000e+01 : f32
    %151 = vector.broadcast %cst_60 : f32 to vector<40x1xf32>
    %152 = arith.divf %150, %151 : vector<40x1xf32>
    %153 = vector.broadcast %145 : vector<40x1xf32> to vector<40x32xf32>
    %154 = arith.subf %139, %153 : vector<40x32xf32>
    %cst_61 = arith.constant 9.99999997E-7 : f32
    %155 = vector.broadcast %cst_61 : f32 to vector<40x1xf32>
    %156 = arith.addf %152, %155 : vector<40x1xf32>
    %157 = math.rsqrt %156 : vector<40x1xf32>
    %158 = vector.broadcast %157 : vector<40x1xf32> to vector<40x32xf32>
    %159 = arith.mulf %154, %158 : vector<40x32xf32>
    %160 = vector.broadcast %140 : vector<1x32xf32> to vector<40x32xf32>
    %161 = arith.mulf %159, %160 : vector<40x32xf32>
    %162 = vector.broadcast %141 : vector<1x32xf32> to vector<40x32xf32>
    %163 = arith.addf %161, %162 : vector<40x32xf32>
    %c176 = arith.constant 176 : index
    %c0_62 = arith.constant 0 : index
    %164 = vector.load %arg5[%c176, %c0_62] : memref<178x128xf32, #tpu.memory_space<vmem>>, vector<1x32xf32>
    %c177 = arith.constant 177 : index
    %c0_63 = arith.constant 0 : index
    %165 = vector.load %arg5[%c177, %c0_63] : memref<178x128xf32, #tpu.memory_space<vmem>>, vector<1x32xf32>
    %cst_64 = arith.constant dense<0.000000e+00> : vector<40xf32>
    %166 = vector.multi_reduction <add>, %163, %cst_64 [1] : vector<40x32xf32> to vector<40xf32>
    %167 = vector.shape_cast %166 : vector<40xf32> to vector<40x1xf32>
    %cst_65 = arith.constant 3.200000e+01 : f32
    %168 = vector.broadcast %cst_65 : f32 to vector<40x1xf32>
    %169 = arith.divf %167, %168 : vector<40x1xf32>
    %170 = vector.broadcast %169 : vector<40x1xf32> to vector<40x32xf32>
    %171 = arith.subf %163, %170 : vector<40x32xf32>
    %172 = arith.mulf %171, %171 : vector<40x32xf32>
    %cst_66 = arith.constant dense<0.000000e+00> : vector<40xf32>
    %173 = vector.multi_reduction <add>, %172, %cst_66 [1] : vector<40x32xf32> to vector<40xf32>
    %174 = vector.shape_cast %173 : vector<40xf32> to vector<40x1xf32>
    %cst_67 = arith.constant 3.200000e+01 : f32
    %175 = vector.broadcast %cst_67 : f32 to vector<40x1xf32>
    %176 = arith.divf %174, %175 : vector<40x1xf32>
    %177 = vector.broadcast %169 : vector<40x1xf32> to vector<40x32xf32>
    %178 = arith.subf %163, %177 : vector<40x32xf32>
    %cst_68 = arith.constant 9.99999997E-7 : f32
    %179 = vector.broadcast %cst_68 : f32 to vector<40x1xf32>
    %180 = arith.addf %176, %179 : vector<40x1xf32>
    %181 = math.rsqrt %180 : vector<40x1xf32>
    %182 = vector.broadcast %181 : vector<40x1xf32> to vector<40x32xf32>
    %183 = arith.mulf %178, %182 : vector<40x32xf32>
    %184 = vector.broadcast %164 : vector<1x32xf32> to vector<40x32xf32>
    %185 = arith.mulf %183, %184 : vector<40x32xf32>
    %186 = vector.broadcast %165 : vector<1x32xf32> to vector<40x32xf32>
    %187 = arith.addf %185, %186 : vector<40x32xf32>
    %c0_69 = arith.constant 0 : index
    %c0_70 = arith.constant 0 : index
    %c0_71 = arith.constant 0 : index
    %188 = vector.load %arg7[%c0_69, %c0_70, %c0_71] : memref<1x40x32xf32, #tpu.memory_space<vmem>>, vector<1x40x32xf32>
    %189 = vector.shape_cast %188 : vector<1x40x32xf32> to vector<40x32xf32>
    %190 = vector.shape_cast %187 : vector<40x32xf32> to vector<1x40x32xf32>
    tpu.vector_store %arg7[%c0_69, %c0_70, %c0_71], %190 {strides = array<i32>} : memref<1x40x32xf32, #tpu.memory_space<vmem>>, vector<1x40x32xf32>,
    return
  }
  func.func @transform_0(%arg0: i32) -> (i32, i32, i32) {
    %c0_i32 = arith.constant 0 : i32
    %c0_i32_0 = arith.constant 0 : i32
    %c0_i32_1 = arith.constant 0 : i32
    return %arg0, %c0_i32, %c0_i32_0 : i32, i32, i32
  }
  func.func @transform_1(%arg0: i32) -> (i32, i32, i32) {
    %c0_i32 = arith.constant 0 : i32
    %c0_i32_0 = arith.constant 0 : i32
    %c0_i32_1 = arith.constant 0 : i32
    return %arg0, %c0_i32, %c0_i32_0 : i32, i32, i32
  }
  func.func @transform_2(%arg0: i32) -> (i32, i32, i32) {
    %c0_i32 = arith.constant 0 : i32
    %c0_i32_0 = arith.constant 0 : i32
    %c0_i32_1 = arith.constant 0 : i32
    return %arg0, %c0_i32, %c0_i32_0 : i32, i32, i32
  }
  func.func @transform_3(%arg0: i32) -> (i32, i32) {
    %c0_i32 = arith.constant 0 : i32
    %c0_i32_0 = arith.constant 0 : i32
    %c0_i32_1 = arith.constant 0 : i32
    return %c0_i32, %c0_i32_0 : i32, i32
  }
  func.func @transform_4(%arg0: i32) -> (i32, i32) {
    %c0_i32 = arith.constant 0 : i32
    %c0_i32_0 = arith.constant 0 : i32
    %c0_i32_1 = arith.constant 0 : i32
    return %c0_i32, %c0_i32_0 : i32, i32
  }
  func.func @transform_5(%arg0: i32) -> (i32, i32) {
    %c0_i32 = arith.constant 0 : i32
    %c0_i32_0 = arith.constant 0 : i32
    %c0_i32_1 = arith.constant 0 : i32
    return %c0_i32, %c0_i32_0 : i32, i32
  }
  func.func @transform_6(%arg0: i32) -> (i32, i32, i32) {
    %c0_i32 = arith.constant 0 : i32
    %c0_i32_0 = arith.constant 0 : i32
    %c0_i32_1 = arith.constant 0 : i32
    return %arg0, %c0_i32, %c0_i32_0 : i32, i32, i32
  }
}

</mosaic_0001>

<llo_original>
// kernel: tpu_custom_call.1
$region0: #{tpu_custom_call.1}
  #allocation0 [shape = 'u32[]', space=smem, size = 0x4, offset = 0x4, fixed_abs, tag = 'smem constant byte address 0x4 - core index']
  #allocation1 [shape = 'u32[72,128]{1,0:T(1,128)}', space=vmem, size = 0x9000, scoped, tag = 'internal scratch']
  %s0 = inlined_call_operand.hbm [shape: f32[1,40,104], index: 0, kind: input, shape index: {}]
  %s1 = inlined_call_operand.vmem [shape: f32[1,40,32], index: 1, kind: input, shape index: {}]
  %s2 = inlined_call_operand.hbm [shape: f32[1,40,40], index: 2, kind: input, shape index: {}]
  %s3 = inlined_call_operand.hbm [shape: f32[40,64], index: 3, kind: input, shape index: {}]
  %s4 = inlined_call_operand.hbm [shape: f32[178,128], index: 4, kind: input, shape index: {}]
  %s5 = inlined_call_operand.vmem [shape: f32[32,192], index: 5, kind: input, shape index: {}]
  %s6 = inlined_call_operand.vmem [shape: f32[1,40,32], index: 6, kind: output, shape index: {}]
  %s7 = sld [smem:[#allocation0]]
  $region50: #{tpu_custom_call.1} parent=0
    _
  %s9 = ssub.s32 1, %s7
  %s10 = scalar_select 0, %s9, %s7
  $region1: #{tpu_custom_call.1} parent=0
    #allocation2 [shape = 'u8[20480]{0}', space=vmem, size = 0x5000, scoped, tag = 'input window, operand 0, single buffered']
    #allocation3 [shape = 's32[1]{0}', space=sflag, size = 0x4, scoped, tag = 'scoped memory for tpu_custom_call.1']
    #allocation4 [shape = 'u8[20480]{0}', space=vmem, size = 0x5000, scoped, tag = 'input window, operand 2, single buffered']
    #allocation5 [shape = 's32[1]{0}', space=sflag, size = 0x4, scoped, tag = 'scoped memory for tpu_custom_call.1']
    #allocation6 [shape = 'u8[20480]{0}', space=vmem, size = 0x5000, scoped, tag = 'input window, operand 3, single buffered']
    #allocation7 [shape = 'u8[94208]{0}', space=vmem, size = 0x17000, scoped, tag = 'input window, operand 4, single buffered']
    #allocation8 [shape = 's32[1]{0}', space=sflag, size = 0x4, scoped, tag = 'scoped memory for tpu_custom_call.1']
    %11 = vsyncpa [#allocation3], 0
    %12 = vsyncpa [#allocation5], 0
    %13 = vsyncpa [#allocation8], 0
    // Predicated region
    $region2: #{tpu_custom_call.1} parent=1 // pred_check
      _
    $region3: #{tpu_custom_call.1} parent=1 // pred_check_branch
      %15 = sbr.rel (0) target = $region5
    $region4: #{tpu_custom_call.1} parent=1 // pred_region
      %17 = vsyncadd [#allocation3], 0
      %s18 = sshll.u32 %s0, 4
      %s19 = int_to_ptr.hbm [resolvable:$true] %s18
      %s20 = sshll.u32 [#allocation2], 4
      %s21 = int_to_ptr.vmem [resolvable:$true] %s20
      %26 = dma.hbm_to_vmem [thread:$0]  %s19, 640, %s21, [#allocation3], 128, 128, 8
    $region5: #{tpu_custom_call.1} parent=1 // pred_fallthru
      _
    // Predicated region
    $region6: #{tpu_custom_call.1} parent=1 // pred_check
      _
    $region7: #{tpu_custom_call.1} parent=1 // pred_check_branch
      %28 = sbr.rel (0) target = $region9
    $region8: #{tpu_custom_call.1} parent=1 // pred_region
      _
    $region9: #{tpu_custom_call.1} parent=1 // pred_fallthru
      _
    // Predicated region
    $region10: #{tpu_custom_call.1} parent=1 // pred_check
      _
    $region11: #{tpu_custom_call.1} parent=1 // pred_check_branch
      %30 = sbr.rel (0) target = $region13
    $region12: #{tpu_custom_call.1} parent=1 // pred_region
      %32 = vsyncadd [#allocation5], 0
      %s33 = sshll.u32 %s2, 4
      %s34 = int_to_ptr.hbm [resolvable:$true] %s33
      %s35 = sshll.u32 [#allocation4], 4
      %s36 = int_to_ptr.vmem [resolvable:$true] %s35
      %41 = dma.hbm_to_vmem [thread:$0]  %s34, 640, %s36, [#allocation5], 128, 128, 8
    $region13: #{tpu_custom_call.1} parent=1 // pred_fallthru
      _
    // Predicated region
    $region14: #{tpu_custom_call.1} parent=1 // pred_check
      _
    $region15: #{tpu_custom_call.1} parent=1 // pred_check_branch
      %43 = sbr.rel (0) target = $region17
    $region16: #{tpu_custom_call.1} parent=1 // pred_region
      %45 = vsyncadd [#allocation5], 0
      %s46 = sshll.u32 %s3, 4
      %s47 = int_to_ptr.hbm [resolvable:$true] %s46
      %s48 = sshll.u32 [#allocation6], 4
      %s49 = int_to_ptr.vmem [resolvable:$true] %s48
      %54 = dma.hbm_to_vmem [thread:$0]  %s47, 640, %s49, [#allocation5], 128, 128, 8
    $region17: #{tpu_custom_call.1} parent=1 // pred_fallthru
      _
    // Predicated region
    $region18: #{tpu_custom_call.1} parent=1 // pred_check
      _
    $region19: #{tpu_custom_call.1} parent=1 // pred_check_branch
      %56 = sbr.rel (0) target = $region21
    $region20: #{tpu_custom_call.1} parent=1 // pred_region
      %58 = vsyncadd [#allocation8], 0
      %s59 = sshll.u32 %s4, 4
      %s60 = int_to_ptr.hbm [resolvable:$true] %s59
      %s61 = sshll.u32 [#allocation7], 4
      %s62 = int_to_ptr.vmem [resolvable:$true] %s61
      %67 = dma.hbm_to_vmem [thread:$0]  %s60, 2944, %s62, [#allocation8], 128, 128, 8
    $region21: #{tpu_custom_call.1} parent=1 // pred_fallthru
      _
    // Predicated region
    $region22: #{tpu_custom_call.1} parent=1 // pred_check
      _
    $region23: #{tpu_custom_call.1} parent=1 // pred_check_branch
      %69 = sbr.rel (0) target = $region25
    $region24: #{tpu_custom_call.1} parent=1 // pred_region
      _
    $region25: #{tpu_custom_call.1} parent=1 // pred_fallthru
      _
    // Predicated region
    $region26: #{tpu_custom_call.1} parent=1 // pred_check
      _
    $region27: #{tpu_custom_call.1} parent=1 // pred_check_branch
      %71 = sbr.rel (0) target = $region29
    $region28: #{tpu_custom_call.1} parent=1 // pred_region
      %73 = dma.done [#allocation3], 640
    $region29: #{tpu_custom_call.1} parent=1 // pred_fallthru
      _
    // Predicated region
    $region30: #{tpu_custom_call.1} parent=1 // pred_check
      _
    $region31: #{tpu_custom_call.1} parent=1 // pred_check_branch
      %75 = sbr.rel (0) target = $region33
    $region32: #{tpu_custom_call.1} parent=1 // pred_region
      %77 = dma.done [#allocation5], 640
    $region33: #{tpu_custom_call.1} parent=1 // pred_fallthru
      _
    // Predicated region
    $region34: #{tpu_custom_call.1} parent=1 // pred_check
      _
    $region35: #{tpu_custom_call.1} parent=1 // pred_check_branch
      %79 = sbr.rel (0) target = $region37
    $region36: #{tpu_custom_call.1} parent=1 // pred_region
      %81 = dma.done [#allocation5], 640
    $region37: #{tpu_custom_call.1} parent=1 // pred_fallthru
      _
    // Predicated region
    $region38: #{tpu_custom_call.1} parent=1 // pred_check
      _
    $region39: #{tpu_custom_call.1} parent=1 // pred_check_branch
      %83 = sbr.rel (0) target = $region41
    $region40: #{tpu_custom_call.1} parent=1 // pred_region
      %85 = dma.done [#allocation8], 2944
    $region41: #{tpu_custom_call.1} parent=1 // pred_fallthru
      _
    %v86 = vld [vmem:[#allocation7] sm:$0xff]
    %v87 = vld [vmem:[#allocation7 + $0x8] sm:$0xff]
    %v88 = vld [vmem:[#allocation7 + $0x10] sm:$0xff]
    %v89 = vld [vmem:[#allocation7 + $0x18] sm:$0xff]
    %v90 = vld [vmem:[#allocation7 + $0x20] sm:$0xff]
    %v91 = vld [vmem:[#allocation7 + $0x28] sm:$0xff]
    %v92 = vld [vmem:[#allocation7 + $0x30] sm:$0xff]
    %v93 = vld [vmem:[#allocation7 + $0x38] sm:$0xff]
    %v94 = vld [vmem:[#allocation7 + $0x40] sm:$0xff]
    %v95 = vld [vmem:[#allocation7 + $0x48] sm:$0xff]
    %v96 = vld [vmem:[#allocation7 + $0x50] sm:$0xff]
    %v97 = vld [vmem:[#allocation7 + $0x58] sm:$0xff]
    %v98 = vld [vmem:[#allocation7 + $0x60] sm:$0xff]
    %v99 = vld [vmem:[#allocation7 + $0x68] sm:$0xff]
    %v100 = vld [vmem:[#allocation7 + $0x70] sm:$0xff]
    %v101 = vld [vmem:[#allocation7 + $0x78] sm:$0xff]
    %v102 = vld [vmem:[#allocation7 + $0x80] sm:$0xff]
    %v103 = vld [vmem:[#allocation7 + $0x88] sm:$0xff]
    %v104 = vld [vmem:[#allocation7 + $0x90] sm:$0xff]
    %v105 = vld [vmem:[#allocation7 + $0x98] sm:$0xff]
    %v106 = vld [vmem:[#allocation7 + $0xa0] sm:$0xff]
    %v107 = vld [vmem:[#allocation2] sm:$0xff]
    %v108 = vld [vmem:[#allocation2 + $0x8] sm:$0xff]
    %v109 = vld [vmem:[#allocation2 + $0x10] sm:$0xff]
    %v110 = vld [vmem:[#allocation2 + $0x18] sm:$0xff]
    %v111 = vld [vmem:[#allocation2 + $0x20] sm:$0xff]
    %vm112 = vcmask 850944
    %v114 = vsel %vm112, %v107, 0
    %v117 = vsel %vm112, %v108, 0
    %v120 = vsel %vm112, %v109, 0
    %v123 = vsel %vm112, %v110, 0
    %v126 = vsel %vm112, %v111, 0
    %128 = vmatpush.msra.mxu0 0.0
    %129 = vmatpush.msra.mxu0 0.0
    %130 = vmatpush.msra.mxu0 0.0
    %v131 = vand.u32 %v98, 4294901760
    %132 = vmatpush.msra.mxu0 %v131
    %v133 = vand.u32 %v97, 4294901760
    %134 = vmatpush.msra.mxu0 %v133
    %v135 = vand.u32 %v96, 4294901760
    %136 = vmatpush.msra.mxu0 %v135
    %v137 = vand.u32 %v95, 4294901760
    %138 = vmatpush.msra.mxu0 %v137
    %v139 = vand.u32 %v94, 4294901760
    %140 = vmatpush.msra.mxu0 %v139
    %v141 = vand.u32 %v93, 4294901760
    %142 = vmatpush.msra.mxu0 %v141
    %v143 = vand.u32 %v92, 4294901760
    %144 = vmatpush.msra.mxu0 %v143
    %v145 = vand.u32 %v91, 4294901760
    %146 = vmatpush.msra.mxu0 %v145
    %v147 = vand.u32 %v90, 4294901760
    %148 = vmatpush.msra.mxu0 %v147
    %v149 = vand.u32 %v89, 4294901760
    %150 = vmatpush.msra.mxu0 %v149
    %v151 = vand.u32 %v88, 4294901760
    %152 = vmatpush.msra.mxu0 %v151
    %v153 = vand.u32 %v87, 4294901760
    %154 = vmatpush.msra.mxu0 %v153
    %v155 = vand.u32 %v86, 4294901760
    %156 = vmatpush.msra.mxu0 %v155
    %v157 = vand.u32 %v114, 4294901760
    %v158 = vsub.f32 %v114, %v157
    %v159 = vand.u32 %v158, 4294901760
    %v160 = vsub.f32 %v158, %v159
    %v161 = vand.u32 %v160, 4294901760
    %162 = vmatmul.f32.gmra.mxu0 %v161
    %v163 = vpop.f32.mrf.mxu0
    %v164 = vadd.f32 0.0, %v163
    %v165 = vand.u32 %v117, 4294901760
    %v166 = vsub.f32 %v117, %v165
    %v167 = vand.u32 %v166, 4294901760
    %v168 = vsub.f32 %v166, %v167
    %v169 = vand.u32 %v168, 4294901760
    %170 = vmatmul.f32.gmra.mxu0 %v169
    %v171 = vpop.f32.mrf.mxu0
    %v172 = vadd.f32 0.0, %v171
    %v173 = vand.u32 %v120, 4294901760
    %v174 = vsub.f32 %v120, %v173
    %v175 = vand.u32 %v174, 4294901760
    %v176 = vsub.f32 %v174, %v175
    %v177 = vand.u32 %v176, 4294901760
    %178 = vmatmul.f32.gmra.mxu0 %v177
    %v179 = vpop.f32.mrf.mxu0
    %v180 = vadd.f32 0.0, %v179
    %v181 = vand.u32 %v123, 4294901760
    %v182 = vsub.f32 %v123, %v181
    %v183 = vand.u32 %v182, 4294901760
    %v184 = vsub.f32 %v182, %v183
    %v185 = vand.u32 %v184, 4294901760
    %186 = vmatmul.f32.gmra.mxu0 %v185
    %v187 = vpop.f32.mrf.mxu0
    %v188 = vadd.f32 0.0, %v187
    %v189 = vand.u32 %v126, 4294901760
    %v190 = vsub.f32 %v126, %v189
    %v191 = vand.u32 %v190, 4294901760
    %v192 = vsub.f32 %v190, %v191
    %v193 = vand.u32 %v192, 4294901760
    %194 = vmatmul.f32.gmra.mxu0 %v193
    %v195 = vpop.f32.mrf.mxu0
    %v196 = vadd.f32 0.0, %v195
    %197 = vdwg.mxu0
    %198 = vmatpush.msra.mxu0 0.0
    %199 = vmatpush.msra.mxu0 0.0
    %200 = vmatpush.msra.mxu0 0.0
    %v201 = vand.u32 %v98, 4294901760
    %v202 = vsub.f32 %v98, %v201
    %v203 = vand.u32 %v202, 4294901760
    %v204 = vsub.f32 %v202, %v203
    %v205 = vand.u32 %v204, 4294901760
    %206 = vmatpush.msra.mxu0 %v205
    %v207 = vand.u32 %v97, 4294901760
    %v208 = vsub.f32 %v97, %v207
    %v209 = vand.u32 %v208, 4294901760
    %v210 = vsub.f32 %v208, %v209
    %v211 = vand.u32 %v210, 4294901760
    %212 = vmatpush.msra.mxu0 %v211
    %v213 = vand.u32 %v96, 4294901760
    %v214 = vsub.f32 %v96, %v213
    %v215 = vand.u32 %v214, 4294901760
    %v216 = vsub.f32 %v214, %v215
    %v217 = vand.u32 %v216, 4294901760
    %218 = vmatpush.msra.mxu0 %v217
    %v219 = vand.u32 %v95, 4294901760
    %v220 = vsub.f32 %v95, %v219
    %v221 = vand.u32 %v220, 4294901760
    %v222 = vsub.f32 %v220, %v221
    %v223 = vand.u32 %v222, 4294901760
    %224 = vmatpush.msra.mxu0 %v223
    %v225 = vand.u32 %v94, 4294901760
    %v226 = vsub.f32 %v94, %v225
    %v227 = vand.u32 %v226, 4294901760
    %v228 = vsub.f32 %v226, %v227
    %v229 = vand.u32 %v228, 4294901760
    %230 = vmatpush.msra.mxu0 %v229
    %v231 = vand.u32 %v93, 4294901760
    %v232 = vsub.f32 %v93, %v231
    %v233 = vand.u32 %v232, 4294901760
    %v234 = vsub.f32 %v232, %v233
    %v235 = vand.u32 %v234, 4294901760
    %236 = vmatpush.msra.mxu0 %v235
    %v237 = vand.u32 %v92, 4294901760
    %v238 = vsub.f32 %v92, %v237
    %v239 = vand.u32 %v238, 4294901760
    %v240 = vsub.f32 %v238, %v239
    %v241 = vand.u32 %v240, 4294901760
    %242 = vmatpush.msra.mxu0 %v241
    %v243 = vand.u32 %v91, 4294901760
    %v244 = vsub.f32 %v91, %v243
    %v245 = vand.u32 %v244, 4294901760
    %v246 = vsub.f32 %v244, %v245
    %v247 = vand.u32 %v246, 4294901760
    %248 = vmatpush.msra.mxu0 %v247
    %v249 = vand.u32 %v90, 4294901760
    %v250 = vsub.f32 %v90, %v249
    %v251 = vand.u32 %v250, 4294901760
    %v252 = vsub.f32 %v250, %v251
    %v253 = vand.u32 %v252, 4294901760
    %254 = vmatpush.msra.mxu0 %v253
    %v255 = vand.u32 %v89, 4294901760
    %v256 = vsub.f32 %v89, %v255
    %v257 = vand.u32 %v256, 4294901760
    %v258 = vsub.f32 %v256, %v257
    %v259 = vand.u32 %v258, 4294901760
    %260 = vmatpush.msra.mxu0 %v259
    %v261 = vand.u32 %v88, 4294901760
    %v262 = vsub.f32 %v88, %v261
    %v263 = vand.u32 %v262, 4294901760
    %v264 = vsub.f32 %v262, %v263
    %v265 = vand.u32 %v264, 4294901760
    %266 = vmatpush.msra.mxu0 %v265
    %v267 = vand.u32 %v87, 4294901760
    %v268 = vsub.f32 %v87, %v267
    %v269 = vand.u32 %v268, 4294901760
    %v270 = vsub.f32 %v268, %v269
    %v271 = vand.u32 %v270, 4294901760
    %272 = vmatpush.msra.mxu0 %v271
    %v273 = vand.u32 %v86, 4294901760
    %v274 = vsub.f32 %v86, %v273
    %v275 = vand.u32 %v274, 4294901760
    %v276 = vsub.f32 %v274, %v275
    %v277 = vand.u32 %v276, 4294901760
    %278 = vmatpush.msra.mxu0 %v277
    %v279 = vand.u32 %v114, 4294901760
    %280 = vmatmul.f32.gmra.mxu0 %v279
    %v281 = vpop.f32.mrf.mxu0
    %v282 = vadd.f32 %v164, %v281
    %v283 = vand.u32 %v117, 4294901760
    %284 = vmatmul.f32.gmra.mxu0 %v283
    %v285 = vpop.f32.mrf.mxu0
    %v286 = vadd.f32 %v172, %v285
    %v287 = vand.u32 %v120, 4294901760
    %288 = vmatmul.f32.gmra.mxu0 %v287
    %v289 = vpop.f32.mrf.mxu0
    %v290 = vadd.f32 %v180, %v289
    %v291 = vand.u32 %v123, 4294901760
    %292 = vmatmul.f32.gmra.mxu0 %v291
    %v293 = vpop.f32.mrf.mxu0
    %v294 = vadd.f32 %v188, %v293
    %v295 = vand.u32 %v126, 4294901760
    %296 = vmatmul.f32.gmra.mxu0 %v295
    %v297 = vpop.f32.mrf.mxu0
    %v298 = vadd.f32 %v196, %v297
    %299 = vdwg.mxu0
    %300 = vmatpush.msra.mxu0 0.0
    %301 = vmatpush.msra.mxu0 0.0
    %302 = vmatpush.msra.mxu0 0.0
    %v303 = vand.u32 %v98, 4294901760
    %v304 = vsub.f32 %v98, %v303
    %305 = vmatpush.msra.mxu0 %v304
    %v306 = vand.u32 %v97, 4294901760
    %v307 = vsub.f32 %v97, %v306
    %308 = vmatpush.msra.mxu0 %v307
    %v309 = vand.u32 %v96, 4294901760
    %v310 = vsub.f32 %v96, %v309
    %311 = vmatpush.msra.mxu0 %v310
    %v312 = vand.u32 %v95, 4294901760
    %v313 = vsub.f32 %v95, %v312
    %314 = vmatpush.msra.mxu0 %v313
    %v315 = vand.u32 %v94, 4294901760
    %v316 = vsub.f32 %v94, %v315
    %317 = vmatpush.msra.mxu0 %v316
    %v318 = vand.u32 %v93, 4294901760
    %v319 = vsub.f32 %v93, %v318
    %320 = vmatpush.msra.mxu0 %v319
    %v321 = vand.u32 %v92, 4294901760
    %v322 = vsub.f32 %v92, %v321
    %323 = vmatpush.msra.mxu0 %v322
    %v324 = vand.u32 %v91, 4294901760
    %v325 = vsub.f32 %v91, %v324
    %326 = vmatpush.msra.mxu0 %v325
    %v327 = vand.u32 %v90, 4294901760
    %v328 = vsub.f32 %v90, %v327
    %329 = vmatpush.msra.mxu0 %v328
    %v330 = vand.u32 %v89, 4294901760
    %v331 = vsub.f32 %v89, %v330
    %332 = vmatpush.msra.mxu0 %v331
    %v333 = vand.u32 %v88, 4294901760
    %v334 = vsub.f32 %v88, %v333
    %335 = vmatpush.msra.mxu0 %v334
    %v336 = vand.u32 %v87, 4294901760
    %v337 = vsub.f32 %v87, %v336
    %338 = vmatpush.msra.mxu0 %v337
    %v339 = vand.u32 %v86, 4294901760
    %v340 = vsub.f32 %v86, %v339
    %341 = vmatpush.msra.mxu0 %v340
    %v342 = vand.u32 %v114, 4294901760
    %v343 = vsub.f32 %v114, %v342
    %344 = vmatmul.f32.gmra.mxu0 %v343
    %v345 = vpop.f32.mrf.mxu0
    %v346 = vadd.f32 %v282, %v345
    %v347 = vand.u32 %v117, 4294901760
    %v348 = vsub.f32 %v117, %v347
    %349 = vmatmul.f32.gmra.mxu0 %v348
    %v350 = vpop.f32.mrf.mxu0
    %v351 = vadd.f32 %v286, %v350
    %v352 = vand.u32 %v120, 4294901760
    %v353 = vsub.f32 %v120, %v352
    %354 = vmatmul.f32.gmra.mxu0 %v353
    %v355 = vpop.f32.mrf.mxu0
    %v356 = vadd.f32 %v290, %v355
    %v357 = vand.u32 %v123, 4294901760
    %v358 = vsub.f32 %v123, %v357
    %359 = vmatmul.f32.gmra.mxu0 %v358
    %v360 = vpop.f32.mrf.mxu0
    %v361 = vadd.f32 %v294, %v360
    %v362 = vand.u32 %v126, 4294901760
    %v363 = vsub.f32 %v126, %v362
    %364 = vmatmul.f32.gmra.mxu0 %v363
    %v365 = vpop.f32.mrf.mxu0
    %v366 = vadd.f32 %v298, %v365
    %367 = vdwg.mxu0
    %368 = vmatpush.msra.mxu0 0.0
    %369 = vmatpush.msra.mxu0 0.0
    %370 = vmatpush.msra.mxu0 0.0
    %v371 = vand.u32 %v98, 4294901760
    %372 = vmatpush.msra.mxu0 %v371
    %v373 = vand.u32 %v97, 4294901760
    %374 = vmatpush.msra.mxu0 %v373
    %v375 = vand.u32 %v96, 4294901760
    %376 = vmatpush.msra.mxu0 %v375
    %v377 = vand.u32 %v95, 4294901760
    %378 = vmatpush.msra.mxu0 %v377
    %v379 = vand.u32 %v94, 4294901760
    %380 = vmatpush.msra.mxu0 %v379
    %v381 = vand.u32 %v93, 4294901760
    %382 = vmatpush.msra.mxu0 %v381
    %v383 = vand.u32 %v92, 4294901760
    %384 = vmatpush.msra.mxu0 %v383
    %v385 = vand.u32 %v91, 4294901760
    %386 = vmatpush.msra.mxu0 %v385
    %v387 = vand.u32 %v90, 4294901760
    %388 = vmatpush.msra.mxu0 %v387
    %v389 = vand.u32 %v89, 4294901760
    %390 = vmatpush.msra.mxu0 %v389
    %v391 = vand.u32 %v88, 4294901760
    %392 = vmatpush.msra.mxu0 %v391
    %v393 = vand.u32 %v87, 4294901760
    %394 = vmatpush.msra.mxu0 %v393
    %v395 = vand.u32 %v86, 4294901760
    %396 = vmatpush.msra.mxu0 %v395
    %v397 = vand.u32 %v114, 4294901760
    %v398 = vsub.f32 %v114, %v397
    %v399 = vand.u32 %v398, 4294901760
    %400 = vmatmul.f32.gmra.mxu0 %v399
    %v401 = vpop.f32.mrf.mxu0
    %v402 = vadd.f32 %v346, %v401
    %v403 = vand.u32 %v117, 4294901760
    %v404 = vsub.f32 %v117, %v403
    %v405 = vand.u32 %v404, 4294901760
    %406 = vmatmul.f32.gmra.mxu0 %v405
    %v407 = vpop.f32.mrf.mxu0
    %v408 = vadd.f32 %v351, %v407
    %v409 = vand.u32 %v120, 4294901760
    %v410 = vsub.f32 %v120, %v409
    %v411 = vand.u32 %v410, 4294901760
    %412 = vmatmul.f32.gmra.mxu0 %v411
    %v413 = vpop.f32.mrf.mxu0
    %v414 = vadd.f32 %v356, %v413
    %v415 = vand.u32 %v123, 4294901760
    %v416 = vsub.f32 %v123, %v415
    %v417 = vand.u32 %v416, 4294901760
    %418 = vmatmul.f32.gmra.mxu0 %v417
    %v419 = vpop.f32.mrf.mxu0
    %v420 = vadd.f32 %v361, %v419
    %v421 = vand.u32 %v126, 4294901760
    %v422 = vsub.f32 %v126, %v421
    %v423 = vand.u32 %v422, 4294901760
    %424 = vmatmul.f32.gmra.mxu0 %v423
    %v425 = vpop.f32.mrf.mxu0
    %v426 = vadd.f32 %v366, %v425
    %427 = vdwg.mxu0
    %428 = vmatpush.msra.mxu0 0.0
    %429 = vmatpush.msra.mxu0 0.0
    %430 = vmatpush.msra.mxu0 0.0
    %v431 = vand.u32 %v98, 4294901760
    %v432 = vsub.f32 %v98, %v431
    %v433 = vand.u32 %v432, 4294901760
    %434 = vmatpush.msra.mxu0 %v433
    %v435 = vand.u32 %v97, 4294901760
    %v436 = vsub.f32 %v97, %v435
    %v437 = vand.u32 %v436, 4294901760
    %438 = vmatpush.msra.mxu0 %v437
    %v439 = vand.u32 %v96, 4294901760
    %v440 = vsub.f32 %v96, %v439
    %v441 = vand.u32 %v440, 4294901760
    %442 = vmatpush.msra.mxu0 %v441
    %v443 = vand.u32 %v95, 4294901760
    %v444 = vsub.f32 %v95, %v443
    %v445 = vand.u32 %v444, 4294901760
    %446 = vmatpush.msra.mxu0 %v445
    %v447 = vand.u32 %v94, 4294901760
    %v448 = vsub.f32 %v94, %v447
    %v449 = vand.u32 %v448, 4294901760
    %450 = vmatpush.msra.mxu0 %v449
    %v451 = vand.u32 %v93, 4294901760
    %v452 = vsub.f32 %v93, %v451
    %v453 = vand.u32 %v452, 4294901760
    %454 = vmatpush.msra.mxu0 %v453
    %v455 = vand.u32 %v92, 4294901760
    %v456 = vsub.f32 %v92, %v455
    %v457 = vand.u32 %v456, 4294901760
    %458 = vmatpush.msra.mxu0 %v457
    %v459 = vand.u32 %v91, 4294901760
    %v460 = vsub.f32 %v91, %v459
    %v461 = vand.u32 %v460, 4294901760
    %462 = vmatpush.msra.mxu0 %v461
    %v463 = vand.u32 %v90, 4294901760
    %v464 = vsub.f32 %v90, %v463
    %v465 = vand.u32 %v464, 4294901760
    %466 = vmatpush.msra.mxu0 %v465
    %v467 = vand.u32 %v89, 4294901760
    %v468 = vsub.f32 %v89, %v467
    %v469 = vand.u32 %v468, 4294901760
    %470 = vmatpush.msra.mxu0 %v469
    %v471 = vand.u32 %v88, 4294901760
    %v472 = vsub.f32 %v88, %v471
    %v473 = vand.u32 %v472, 4294901760
    %474 = vmatpush.msra.mxu0 %v473
    %v475 = vand.u32 %v87, 4294901760
    %v476 = vsub.f32 %v87, %v475
    %v477 = vand.u32 %v476, 4294901760
    %478 = vmatpush.msra.mxu0 %v477
    %v479 = vand.u32 %v86, 4294901760
    %v480 = vsub.f32 %v86, %v479
    %v481 = vand.u32 %v480, 4294901760
    %482 = vmatpush.msra.mxu0 %v481
    %v483 = vand.u32 %v114, 4294901760
    %484 = vmatmul.f32.gmra.mxu0 %v483
    %v485 = vpop.f32.mrf.mxu0
    %v486 = vadd.f32 %v402, %v485
    %v487 = vand.u32 %v117, 4294901760
    %488 = vmatmul.f32.gmra.mxu0 %v487
    %v489 = vpop.f32.mrf.mxu0
    %v490 = vadd.f32 %v408, %v489
    %v491 = vand.u32 %v120, 4294901760
    %492 = vmatmul.f32.gmra.mxu0 %v491
    %v493 = vpop.f32.mrf.mxu0
    %v494 = vadd.f32 %v414, %v493
    %v495 = vand.u32 %v123, 4294901760
    %496 = vmatmul.f32.gmra.mxu0 %v495
    %v497 = vpop.f32.mrf.mxu0
    %v498 = vadd.f32 %v420, %v497
    %v499 = vand.u32 %v126, 4294901760
    %500 = vmatmul.f32.gmra.mxu0 %v499
    %v501 = vpop.f32.mrf.mxu0
    %v502 = vadd.f32 %v426, %v501
    %503 = vdwg.mxu0
    %504 = vmatpush.msra.mxu0 0.0
    %505 = vmatpush.msra.mxu0 0.0
    %506 = vmatpush.msra.mxu0 0.0
    %v507 = vand.u32 %v98, 4294901760
    %508 = vmatpush.msra.mxu0 %v507
    %v509 = vand.u32 %v97, 4294901760
    %510 = vmatpush.msra.mxu0 %v509
    %v511 = vand.u32 %v96, 4294901760
    %512 = vmatpush.msra.mxu0 %v511
    %v513 = vand.u32 %v95, 4294901760
    %514 = vmatpush.msra.mxu0 %v513
    %v515 = vand.u32 %v94, 4294901760
    %516 = vmatpush.msra.mxu0 %v515
    %v517 = vand.u32 %v93, 4294901760
    %518 = vmatpush.msra.mxu0 %v517
    %v519 = vand.u32 %v92, 4294901760
    %520 = vmatpush.msra.mxu0 %v519
    %v521 = vand.u32 %v91, 4294901760
    %522 = vmatpush.msra.mxu0 %v521
    %v523 = vand.u32 %v90, 4294901760
    %524 = vmatpush.msra.mxu0 %v523
    %v525 = vand.u32 %v89, 4294901760
    %526 = vmatpush.msra.mxu0 %v525
    %v527 = vand.u32 %v88, 4294901760
    %528 = vmatpush.msra.mxu0 %v527
    %v529 = vand.u32 %v87, 4294901760
    %530 = vmatpush.msra.mxu0 %v529
    %v531 = vand.u32 %v86, 4294901760
    %532 = vmatpush.msra.mxu0 %v531
    %v533 = vand.u32 %v114, 4294901760
    %534 = vmatmul.f32.gmra.mxu0 %v533
    %v535 = vpop.f32.mrf.mxu0
    %v536 = vadd.f32 %v486, %v535
    %v537 = vand.u32 %v117, 4294901760
    %538 = vmatmul.f32.gmra.mxu0 %v537
    %v539 = vpop.f32.mrf.mxu0
    %v540 = vadd.f32 %v490, %v539
    %v541 = vand.u32 %v120, 4294901760
    %542 = vmatmul.f32.gmra.mxu0 %v541
    %v543 = vpop.f32.mrf.mxu0
    %v544 = vadd.f32 %v494, %v543
    %v545 = vand.u32 %v123, 4294901760
    %546 = vmatmul.f32.gmra.mxu0 %v545
    %v547 = vpop.f32.mrf.mxu0
    %v548 = vadd.f32 %v498, %v547
    %v549 = vand.u32 %v126, 4294901760
    %550 = vmatmul.f32.gmra.mxu0 %v549
    %v551 = vpop.f32.mrf.mxu0
    %v552 = vadd.f32 %v502, %v551
    %553 = vdwg.mxu0
    %v554 = vld [vmem:[#allocation6] sm:$0xff]
    %v555 = vld [vmem:[#allocation6 + $0x8] sm:$0xff]
    %v556 = vld [vmem:[#allocation6 + $0x10] sm:$0xff]
    %v557 = vld [vmem:[#allocation6 + $0x18] sm:$0xff]
    %v558 = vld [vmem:[#allocation6 + $0x20] sm:$0xff]
    %vm559 = vcmask 261120
    %v560 = vsel %vm559, %v536, 0.0
    %561 = vadd.xlane.f32.xlu0 %v560
    %v562 = vpop.xlane.xlu0 %561
    %v563 = vsel %vm559, %v540, 0.0
    %564 = vadd.xlane.f32.xlu0 %v563
    %v565 = vpop.xlane.xlu0 %564
    %v566 = vsel %vm559, %v544, 0.0
    %567 = vadd.xlane.f32.xlu0 %v566
    %v568 = vpop.xlane.xlu0 %567
    %v569 = vsel %vm559, %v548, 0.0
    %570 = vadd.xlane.f32.xlu0 %v569
    %v571 = vpop.xlane.xlu0 %570
    %v572 = vsel %vm559, %v552, 0.0
    %573 = vadd.xlane.f32.xlu0 %v572
    %v574 = vpop.xlane.xlu0 %573
    %v575 = vrcp.pop 32.0
    %v576 = vmul.f32 32.0, %v575
    %v577 = vsub.f32 1.0, %v576
    %v578 = vmul.f32 %v575, %v577
    %v579 = vadd.f32 %v575, %v578
    %vm580 = vweird.f32 %v575
    %v581 = vsel %vm580, %v575, %v579
    %v582 = vmul.f32 %v562, %v581
    %v583 = vmul.f32 %v565, %v581
    %v584 = vmul.f32 %v568, %v581
    %v585 = vmul.f32 %v571, %v581
    %v586 = vmul.f32 %v574, %v581
    %v587 = vsub.f32 %v536, %v582
    %v588 = vsub.f32 %v540, %v583
    %v589 = vsub.f32 %v544, %v584
    %v590 = vsub.f32 %v548, %v585
    %v591 = vsub.f32 %v552, %v586
    %v592 = vmul.f32 %v587, %v587
    %v593 = vmul.f32 %v588, %v588
    %v594 = vmul.f32 %v589, %v589
    %v595 = vmul.f32 %v590, %v590
    %v596 = vmul.f32 %v591, %v591
    %v597 = vsel %vm559, %v592, 0.0
    %598 = vadd.xlane.f32.xlu0 %v597
    %v599 = vpop.xlane.xlu0 %598
    %v600 = vsel %vm559, %v593, 0.0
    %601 = vadd.xlane.f32.xlu0 %v600
    %v602 = vpop.xlane.xlu0 %601
    %v603 = vsel %vm559, %v594, 0.0
    %604 = vadd.xlane.f32.xlu0 %v603
    %v605 = vpop.xlane.xlu0 %604
    %v606 = vsel %vm559, %v595, 0.0
    %607 = vadd.xlane.f32.xlu0 %v606
    %v608 = vpop.xlane.xlu0 %607
    %v609 = vsel %vm559, %v596, 0.0
    %610 = vadd.xlane.f32.xlu0 %v609
    %v611 = vpop.xlane.xlu0 %610
    %v612 = vmul.f32 %v599, %v581
    %v613 = vmul.f32 %v602, %v581
    %v614 = vmul.f32 %v605, %v581
    %v615 = vmul.f32 %v608, %v581
    %v616 = vmul.f32 %v611, %v581
    %v617 = vadd.f32 %v612, 1e-06
    %v618 = vadd.f32 %v613, 1e-06
    %v619 = vadd.f32 %v614, 1e-06
    %v620 = vadd.f32 %v615, 1e-06
    %v621 = vadd.f32 %v616, 1e-06
    %v622 = vrsqrt.pop %v617
    %v623 = vmul.f32 %v622, %v617
    %v624 = vmul.f32 %v623, %v622
    %v625 = vmul.f32 0.5, %v624
    %v626 = vsub.f32 1.5, %v625
    %v627 = vmul.f32 %v622, %v626
    %vm628 = vweird.f32 %v617
    %vm629 = vweird.f32 %v622
    %vm630 = vmor %vm628, %vm629
    %v631 = vsel %vm630, %v622, %v627
    %v632 = vrsqrt.pop %v618
    %v633 = vmul.f32 %v632, %v618
    %v634 = vmul.f32 %v633, %v632
    %v635 = vmul.f32 0.5, %v634
    %v636 = vsub.f32 1.5, %v635
    %v637 = vmul.f32 %v632, %v636
    %vm638 = vweird.f32 %v618
    %vm639 = vweird.f32 %v632
    %vm640 = vmor %vm638, %vm639
    %v641 = vsel %vm640, %v632, %v637
    %v642 = vrsqrt.pop %v619
    %v643 = vmul.f32 %v642, %v619
    %v644 = vmul.f32 %v643, %v642
    %v645 = vmul.f32 0.5, %v644
    %v646 = vsub.f32 1.5, %v645
    %v647 = vmul.f32 %v642, %v646
    %vm648 = vweird.f32 %v619
    %vm649 = vweird.f32 %v642
    %vm650 = vmor %vm648, %vm649
    %v651 = vsel %vm650, %v642, %v647
    %v652 = vrsqrt.pop %v620
    %v653 = vmul.f32 %v652, %v620
    %v654 = vmul.f32 %v653, %v652
    %v655 = vmul.f32 0.5, %v654
    %v656 = vsub.f32 1.5, %v655
    %v657 = vmul.f32 %v652, %v656
    %vm658 = vweird.f32 %v620
    %vm659 = vweird.f32 %v652
    %vm660 = vmor %vm658, %vm659
    %v661 = vsel %vm660, %v652, %v657
    %v662 = vrsqrt.pop %v621
    %v663 = vmul.f32 %v662, %v621
    %v664 = vmul.f32 %v663, %v662
    %v665 = vmul.f32 0.5, %v664
    %v666 = vsub.f32 1.5, %v665
    %v667 = vmul.f32 %v662, %v666
    %vm668 = vweird.f32 %v621
    %vm669 = vweird.f32 %v662
    %vm670 = vmor %vm668, %vm669
    %v671 = vsel %vm670, %v662, %v667
    %v672 = vmul.f32 %v587, %v631
    %v673 = vmul.f32 %v588, %v641
    %v674 = vmul.f32 %v589, %v651
    %v675 = vmul.f32 %v590, %v661
    %v676 = vmul.f32 %v591, %v671
    %v677 = vmul.f32 %v672, %v554
    %v678 = vmul.f32 %v673, %v555
    %v679 = vmul.f32 %v674, %v556
    %v680 = vmul.f32 %v675, %v557
    %v681 = vmul.f32 %v676, %v558
    %687 = vrot.lane.b32.xlu0 %v554, 96
    %v688 = vpop.permute.xlu0 %687
    %689 = vrot.lane.b32.xlu0 %v555, 96
    %v690 = vpop.permute.xlu0 %689
    %691 = vrot.lane.b32.xlu0 %v556, 96
    %v692 = vpop.permute.xlu0 %691
    %693 = vrot.lane.b32.xlu0 %v557, 96
    %v694 = vpop.permute.xlu0 %693
    %695 = vrot.lane.b32.xlu0 %v558, 96
    %v696 = vpop.permute.xlu0 %695
    %v702 = vadd.f32 %v677, %v688
    %v703 = vadd.f32 %v678, %v690
    %v704 = vadd.f32 %v679, %v692
    %v705 = vadd.f32 %v680, %v694
    %v706 = vadd.f32 %v681, %v696
    %v707 = vld [vmem:[%s1] sm:$0xff]
    %v708 = vld [vmem:[%s1 + $0x8] sm:$0xff]
    %v709 = vld [vmem:[%s1 + $0x10] sm:$0xff]
    %v710 = vld [vmem:[%s1 + $0x18] sm:$0xff]
    %v711 = vld [vmem:[%s1 + $0x20] sm:$0xff]
    %v712 = vadd.f32 %v702, %v707
    %v713 = vadd.f32 %v703, %v708
    %v714 = vadd.f32 %v704, %v709
    %v715 = vadd.f32 %v705, %v710
    %v716 = vadd.f32 %v706, %v711
    %v717 = vld [vmem:[%s5] sm:$0xff]
    %v718 = vld [vmem:[%s5 + $0x10] sm:$0xff]
    %v719 = vld [vmem:[%s5 + $0x20] sm:$0xff]
    %v720 = vld [vmem:[%s5 + $0x30] sm:$0xff]
    %v721 = vld [vmem:[#allocation7 + $0xa8] sm:$0x1]
    %v722 = vperm.slane %v721, 0
    %v724 = vsel %vm559, %v712, 0
    %v727 = vsel %vm559, %v713, 0
    %v730 = vsel %vm559, %v714, 0
    %v733 = vsel %vm559, %v715, 0
    %v736 = vsel %vm559, %v716, 0
    %738 = vmatpush.msra.mxu0 0.0
    %739 = vmatpush.msra.mxu0 0.0
    %740 = vmatpush.msra.mxu0 0.0
    %741 = vmatpush.msra.mxu0 0.0
    %742 = vmatpush.msra.mxu0 0.0
    %743 = vmatpush.msra.mxu0 0.0
    %744 = vmatpush.msra.mxu0 0.0
    %745 = vmatpush.msra.mxu0 0.0
    %746 = vmatpush.msra.mxu0 0.0
    %747 = vmatpush.msra.mxu0 0.0
    %748 = vmatpush.msra.mxu0 0.0
    %749 = vmatpush.msra.mxu0 0.0
    %v750 = vand.u32 %v720, 4294901760
    %751 = vmatpush.msra.mxu0 %v750
    %v752 = vand.u32 %v719, 4294901760
    %753 = vmatpush.msra.mxu0 %v752
    %v754 = vand.u32 %v718, 4294901760
    %755 = vmatpush.msra.mxu0 %v754
    %v756 = vand.u32 %v717, 4294901760
    %757 = vmatpush.msra.mxu0 %v756
    %v758 = vand.u32 %v724, 4294901760
    %v759 = vsub.f32 %v724, %v758
    %v760 = vand.u32 %v759, 4294901760
    %v761 = vsub.f32 %v759, %v760
    %v762 = vand.u32 %v761, 4294901760
    %763 = vmatmul.f32.gmra.mxu0 %v762
    %v764 = vpop.f32.mrf.mxu0
    %v765 = vadd.f32 %v722, %v764
    %v766 = vand.u32 %v727, 4294901760
    %v767 = vsub.f32 %v727, %v766
    %v768 = vand.u32 %v767, 4294901760
    %v769 = vsub.f32 %v767, %v768
    %v770 = vand.u32 %v769, 4294901760
    %771 = vmatmul.f32.gmra.mxu0 %v770
    %v772 = vpop.f32.mrf.mxu0
    %v773 = vadd.f32 %v722, %v772
    %v774 = vand.u32 %v730, 4294901760
    %v775 = vsub.f32 %v730, %v774
    %v776 = vand.u32 %v775, 4294901760
    %v777 = vsub.f32 %v775, %v776
    %v778 = vand.u32 %v777, 4294901760
    %779 = vmatmul.f32.gmra.mxu0 %v778
    %v780 = vpop.f32.mrf.mxu0
    %v781 = vadd.f32 %v722, %v780
    %v782 = vand.u32 %v733, 4294901760
    %v783 = vsub.f32 %v733, %v782
    %v784 = vand.u32 %v783, 4294901760
    %v785 = vsub.f32 %v783, %v784
    %v786 = vand.u32 %v785, 4294901760
    %787 = vmatmul.f32.gmra.mxu0 %v786
    %v788 = vpop.f32.mrf.mxu0
    %v789 = vadd.f32 %v722, %v788
    %v790 = vand.u32 %v736, 4294901760
    %v791 = vsub.f32 %v736, %v790
    %v792 = vand.u32 %v791, 4294901760
    %v793 = vsub.f32 %v791, %v792
    %v794 = vand.u32 %v793, 4294901760
    %795 = vmatmul.f32.gmra.mxu0 %v794
    %v796 = vpop.f32.mrf.mxu0
    %v797 = vadd.f32 %v722, %v796
    %798 = vdwg.mxu0
    %799 = vmatpush.msra.mxu0 0.0
    %800 = vmatpush.msra.mxu0 0.0
    %801 = vmatpush.msra.mxu0 0.0
    %802 = vmatpush.msra.mxu0 0.0
    %803 = vmatpush.msra.mxu0 0.0
    %804 = vmatpush.msra.mxu0 0.0
    %805 = vmatpush.msra.mxu0 0.0
    %806 = vmatpush.msra.mxu0 0.0
    %807 = vmatpush.msra.mxu0 0.0
    %808 = vmatpush.msra.mxu0 0.0
    %809 = vmatpush.msra.mxu0 0.0
    %810 = vmatpush.msra.mxu0 0.0
    %v811 = vand.u32 %v720, 4294901760
    %v812 = vsub.f32 %v720, %v811
    %v813 = vand.u32 %v812, 4294901760
    %v814 = vsub.f32 %v812, %v813
    %v815 = vand.u32 %v814, 4294901760
    %816 = vmatpush.msra.mxu0 %v815
    %v817 = vand.u32 %v719, 4294901760
    %v818 = vsub.f32 %v719, %v817
    %v819 = vand.u32 %v818, 4294901760
    %v820 = vsub.f32 %v818, %v819
    %v821 = vand.u32 %v820, 4294901760
    %822 = vmatpush.msra.mxu0 %v821
    %v823 = vand.u32 %v718, 4294901760
    %v824 = vsub.f32 %v718, %v823
    %v825 = vand.u32 %v824, 4294901760
    %v826 = vsub.f32 %v824, %v825
    %v827 = vand.u32 %v826, 4294901760
    %828 = vmatpush.msra.mxu0 %v827
    %v829 = vand.u32 %v717, 4294901760
    %v830 = vsub.f32 %v717, %v829
    %v831 = vand.u32 %v830, 4294901760
    %v832 = vsub.f32 %v830, %v831
    %v833 = vand.u32 %v832, 4294901760
    %834 = vmatpush.msra.mxu0 %v833
    %v835 = vand.u32 %v724, 4294901760
    %836 = vmatmul.f32.gmra.mxu0 %v835
    %v837 = vpop.f32.mrf.mxu0
    %v838 = vadd.f32 %v765, %v837
    %v839 = vand.u32 %v727, 4294901760
    %840 = vmatmul.f32.gmra.mxu0 %v839
    %v841 = vpop.f32.mrf.mxu0
    %v842 = vadd.f32 %v773, %v841
    %v843 = vand.u32 %v730, 4294901760
    %844 = vmatmul.f32.gmra.mxu0 %v843
    %v845 = vpop.f32.mrf.mxu0
    %v846 = vadd.f32 %v781, %v845
    %v847 = vand.u32 %v733, 4294901760
    %848 = vmatmul.f32.gmra.mxu0 %v847
    %v849 = vpop.f32.mrf.mxu0
    %v850 = vadd.f32 %v789, %v849
    %v851 = vand.u32 %v736, 4294901760
    %852 = vmatmul.f32.gmra.mxu0 %v851
    %v853 = vpop.f32.mrf.mxu0
    %v854 = vadd.f32 %v797, %v853
    %855 = vdwg.mxu0
    %856 = vmatpush.msra.mxu0 0.0
    %857 = vmatpush.msra.mxu0 0.0
    %858 = vmatpush.msra.mxu0 0.0
    %859 = vmatpush.msra.mxu0 0.0
    %860 = vmatpush.msra.mxu0 0.0
    %861 = vmatpush.msra.mxu0 0.0
    %862 = vmatpush.msra.mxu0 0.0
    %863 = vmatpush.msra.mxu0 0.0
    %864 = vmatpush.msra.mxu0 0.0
    %865 = vmatpush.msra.mxu0 0.0
    %866 = vmatpush.msra.mxu0 0.0
    %867 = vmatpush.msra.mxu0 0.0
    %v868 = vand.u32 %v720, 4294901760
    %v869 = vsub.f32 %v720, %v868
    %870 = vmatpush.msra.mxu0 %v869
    %v871 = vand.u32 %v719, 4294901760
    %v872 = vsub.f32 %v719, %v871
    %873 = vmatpush.msra.mxu0 %v872
    %v874 = vand.u32 %v718, 4294901760
    %v875 = vsub.f32 %v718, %v874
    %876 = vmatpush.msra.mxu0 %v875
    %v877 = vand.u32 %v717, 4294901760
    %v878 = vsub.f32 %v717, %v877
    %879 = vmatpush.msra.mxu0 %v878
    %v880 = vand.u32 %v724, 4294901760
    %v881 = vsub.f32 %v724, %v880
    %882 = vmatmul.f32.gmra.mxu0 %v881
    %v883 = vpop.f32.mrf.mxu0
    %v884 = vadd.f32 %v838, %v883
    %v885 = vand.u32 %v727, 4294901760
    %v886 = vsub.f32 %v727, %v885
    %887 = vmatmul.f32.gmra.mxu0 %v886
    %v888 = vpop.f32.mrf.mxu0
    %v889 = vadd.f32 %v842, %v888
    %v890 = vand.u32 %v730, 4294901760
    %v891 = vsub.f32 %v730, %v890
    %892 = vmatmul.f32.gmra.mxu0 %v891
    %v893 = vpop.f32.mrf.mxu0
    %v894 = vadd.f32 %v846, %v893
    %v895 = vand.u32 %v733, 4294901760
    %v896 = vsub.f32 %v733, %v895
    %897 = vmatmul.f32.gmra.mxu0 %v896
    %v898 = vpop.f32.mrf.mxu0
    %v899 = vadd.f32 %v850, %v898
    %v900 = vand.u32 %v736, 4294901760
    %v901 = vsub.f32 %v736, %v900
    %902 = vmatmul.f32.gmra.mxu0 %v901
    %v903 = vpop.f32.mrf.mxu0
    %v904 = vadd.f32 %v854, %v903
    %905 = vdwg.mxu0
    %906 = vmatpush.msra.mxu0 0.0
    %907 = vmatpush.msra.mxu0 0.0
    %908 = vmatpush.msra.mxu0 0.0
    %909 = vmatpush.msra.mxu0 0.0
    %910 = vmatpush.msra.mxu0 0.0
    %911 = vmatpush.msra.mxu0 0.0
    %912 = vmatpush.msra.mxu0 0.0
    %913 = vmatpush.msra.mxu0 0.0
    %914 = vmatpush.msra.mxu0 0.0
    %915 = vmatpush.msra.mxu0 0.0
    %916 = vmatpush.msra.mxu0 0.0
    %917 = vmatpush.msra.mxu0 0.0
    %v918 = vand.u32 %v720, 4294901760
    %919 = vmatpush.msra.mxu0 %v918
    %v920 = vand.u32 %v719, 4294901760
    %921 = vmatpush.msra.mxu0 %v920
    %v922 = vand.u32 %v718, 4294901760
    %923 = vmatpush.msra.mxu0 %v922
    %v924 = vand.u32 %v717, 4294901760
    %925 = vmatpush.msra.mxu0 %v924
    %v926 = vand.u32 %v724, 4294901760
    %v927 = vsub.f32 %v724, %v926
    %v928 = vand.u32 %v927, 4294901760
    %929 = vmatmul.f32.gmra.mxu0 %v928
    %v930 = vpop.f32.mrf.mxu0
    %v931 = vadd.f32 %v884, %v930
    %v932 = vand.u32 %v727, 4294901760
    %v933 = vsub.f32 %v727, %v932
    %v934 = vand.u32 %v933, 4294901760
    %935 = vmatmul.f32.gmra.mxu0 %v934
    %v936 = vpop.f32.mrf.mxu0
    %v937 = vadd.f32 %v889, %v936
    %v938 = vand.u32 %v730, 4294901760
    %v939 = vsub.f32 %v730, %v938
    %v940 = vand.u32 %v939, 4294901760
    %941 = vmatmul.f32.gmra.mxu0 %v940
    %v942 = vpop.f32.mrf.mxu0
    %v943 = vadd.f32 %v894, %v942
    %v944 = vand.u32 %v733, 4294901760
    %v945 = vsub.f32 %v733, %v944
    %v946 = vand.u32 %v945, 4294901760
    %947 = vmatmul.f32.gmra.mxu0 %v946
    %v948 = vpop.f32.mrf.mxu0
    %v949 = vadd.f32 %v899, %v948
    %v950 = vand.u32 %v736, 4294901760
    %v951 = vsub.f32 %v736, %v950
    %v952 = vand.u32 %v951, 4294901760
    %953 = vmatmul.f32.gmra.mxu0 %v952
    %v954 = vpop.f32.mrf.mxu0
    %v955 = vadd.f32 %v904, %v954
    %956 = vdwg.mxu0
    %957 = vmatpush.msra.mxu0 0.0
    %958 = vmatpush.msra.mxu0 0.0
    %959 = vmatpush.msra.mxu0 0.0
    %960 = vmatpush.msra.mxu0 0.0
    %961 = vmatpush.msra.mxu0 0.0
    %962 = vmatpush.msra.mxu0 0.0
    %963 = vmatpush.msra.mxu0 0.0
    %964 = vmatpush.msra.mxu0 0.0
    %965 = vmatpush.msra.mxu0 0.0
    %966 = vmatpush.msra.mxu0 0.0
    %967 = vmatpush.msra.mxu0 0.0
    %968 = vmatpush.msra.mxu0 0.0
    %v969 = vand.u32 %v720, 4294901760
    %v970 = vsub.f32 %v720, %v969
    %v971 = vand.u32 %v970, 4294901760
    %972 = vmatpush.msra.mxu0 %v971
    %v973 = vand.u32 %v719, 4294901760
    %v974 = vsub.f32 %v719, %v973
    %v975 = vand.u32 %v974, 4294901760
    %976 = vmatpush.msra.mxu0 %v975
    %v977 = vand.u32 %v718, 4294901760
    %v978 = vsub.f32 %v718, %v977
    %v979 = vand.u32 %v978, 4294901760
    %980 = vmatpush.msra.mxu0 %v979
    %v981 = vand.u32 %v717, 4294901760
    %v982 = vsub.f32 %v717, %v981
    %v983 = vand.u32 %v982, 4294901760
    %984 = vmatpush.msra.mxu0 %v983
    %v985 = vand.u32 %v724, 4294901760
    %986 = vmatmul.f32.gmra.mxu0 %v985
    %v987 = vpop.f32.mrf.mxu0
    %v988 = vadd.f32 %v931, %v987
    %v989 = vand.u32 %v727, 4294901760
    %990 = vmatmul.f32.gmra.mxu0 %v989
    %v991 = vpop.f32.mrf.mxu0
    %v992 = vadd.f32 %v937, %v991
    %v993 = vand.u32 %v730, 4294901760
    %994 = vmatmul.f32.gmra.mxu0 %v993
    %v995 = vpop.f32.mrf.mxu0
    %v996 = vadd.f32 %v943, %v995
    %v997 = vand.u32 %v733, 4294901760
    %998 = vmatmul.f32.gmra.mxu0 %v997
    %v999 = vpop.f32.mrf.mxu0
    %v1000 = vadd.f32 %v949, %v999
    %v1001 = vand.u32 %v736, 4294901760
    %1002 = vmatmul.f32.gmra.mxu0 %v1001
    %v1003 = vpop.f32.mrf.mxu0
    %v1004 = vadd.f32 %v955, %v1003
    %1005 = vdwg.mxu0
    %1006 = vmatpush.msra.mxu0 0.0
    %1007 = vmatpush.msra.mxu0 0.0
    %1008 = vmatpush.msra.mxu0 0.0
    %1009 = vmatpush.msra.mxu0 0.0
    %1010 = vmatpush.msra.mxu0 0.0
    %1011 = vmatpush.msra.mxu0 0.0
    %1012 = vmatpush.msra.mxu0 0.0
    %1013 = vmatpush.msra.mxu0 0.0
    %1014 = vmatpush.msra.mxu0 0.0
    %1015 = vmatpush.msra.mxu0 0.0
    %1016 = vmatpush.msra.mxu0 0.0
    %1017 = vmatpush.msra.mxu0 0.0
    %v1018 = vand.u32 %v720, 4294901760
    %1019 = vmatpush.msra.mxu0 %v1018
    %v1020 = vand.u32 %v719, 4294901760
    %1021 = vmatpush.msra.mxu0 %v1020
    %v1022 = vand.u32 %v718, 4294901760
    %1023 = vmatpush.msra.mxu0 %v1022
    %v1024 = vand.u32 %v717, 4294901760
    %1025 = vmatpush.msra.mxu0 %v1024
    %v1026 = vand.u32 %v724, 4294901760
    %1027 = vmatmul.f32.gmra.mxu0 %v1026
    %v1028 = vpop.f32.mrf.mxu0
    %v1029 = vadd.f32 %v988, %v1028
    %v1030 = vand.u32 %v727, 4294901760
    %1031 = vmatmul.f32.gmra.mxu0 %v1030
    %v1032 = vpop.f32.mrf.mxu0
    %v1033 = vadd.f32 %v992, %v1032
    %v1034 = vand.u32 %v730, 4294901760
    %1035 = vmatmul.f32.gmra.mxu0 %v1034
    %v1036 = vpop.f32.mrf.mxu0
    %v1037 = vadd.f32 %v996, %v1036
    %v1038 = vand.u32 %v733, 4294901760
    %1039 = vmatmul.f32.gmra.mxu0 %v1038
    %v1040 = vpop.f32.mrf.mxu0
    %v1041 = vadd.f32 %v1000, %v1040
    %v1042 = vand.u32 %v736, 4294901760
    %1043 = vmatmul.f32.gmra.mxu0 %v1042
    %v1044 = vpop.f32.mrf.mxu0
    %v1045 = vadd.f32 %v1004, %v1044
    %1046 = vdwg.mxu0
    %v1047 = vld [vmem:[#allocation4] sm:$0xff]
    %v1048 = vld [vmem:[#allocation4 + $0x8] sm:$0xff]
    %v1049 = vld [vmem:[#allocation4 + $0x10] sm:$0xff]
    %v1050 = vld [vmem:[#allocation4 + $0x18] sm:$0xff]
    %v1051 = vld [vmem:[#allocation4 + $0x20] sm:$0xff]
    %1057 = vrot.lane.b32.xlu0 %v1029, 96
    %v1058 = vpop.permute.xlu0 %1057
    %1059 = vrot.lane.b32.xlu0 %v1033, 96
    %v1060 = vpop.permute.xlu0 %1059
    %1061 = vrot.lane.b32.xlu0 %v1037, 96
    %v1062 = vpop.permute.xlu0 %1061
    %1063 = vrot.lane.b32.xlu0 %v1041, 96
    %v1064 = vpop.permute.xlu0 %1063
    %1065 = vrot.lane.b32.xlu0 %v1045, 96
    %v1066 = vpop.permute.xlu0 %1065
    %vm1067 = vcmask 64512
    %v1068 = vsel %vm1067, %v1029, 0
    %v1070 = vsel %vm1067, %v1033, 0
    %v1072 = vsel %vm1067, %v1037, 0
    %v1074 = vsel %vm1067, %v1041, 0
    %v1076 = vsel %vm1067, %v1045, 0
    %v1078 = vsel %vm1067, %v1058, 0
    %v1080 = vsel %vm1067, %v1060, 0
    %v1082 = vsel %vm1067, %v1062, 0
    %v1084 = vsel %vm1067, %v1064, 0
    %v1086 = vsel %vm1067, %v1066, 0
    %1088 = vmatpush.xpose.msra.mxu0 0.0
    %1089 = vmatpush.xpose.msra.mxu0 0.0
    %1090 = vmatpush.xpose.msra.mxu0 0.0
    %1091 = vmatpush.xpose.msra.mxu0 0.0
    %1092 = vmatpush.xpose.msra.mxu0 0.0
    %1093 = vmatpush.xpose.msra.mxu0 0.0
    %1094 = vmatpush.xpose.msra.mxu0 0.0
    %1095 = vmatpush.xpose.msra.mxu0 0.0
    %1096 = vmatpush.xpose.msra.mxu0 0.0
    %1097 = vmatpush.xpose.msra.mxu0 0.0
    %1098 = vmatpush.xpose.msra.mxu0 0.0
    %v1099 = vand.u32 %v1086, 4294901760
    %1100 = vmatpush.xpose.msra.mxu0 %v1099
    %v1101 = vand.u32 %v1084, 4294901760
    %1102 = vmatpush.xpose.msra.mxu0 %v1101
    %v1103 = vand.u32 %v1082, 4294901760
    %1104 = vmatpush.xpose.msra.mxu0 %v1103
    %v1105 = vand.u32 %v1080, 4294901760
    %1106 = vmatpush.xpose.msra.mxu0 %v1105
    %v1107 = vand.u32 %v1078, 4294901760
    %1108 = vmatpush.xpose.msra.mxu0 %v1107
    %v1109 = vand.u32 %v1068, 4294901760
    %v1110 = vsub.f32 %v1068, %v1109
    %v1111 = vand.u32 %v1110, 4294901760
    %v1112 = vsub.f32 %v1110, %v1111
    %v1113 = vand.u32 %v1112, 4294901760
    %1114 = vmatmul.f32.gmra.mxu0 %v1113
    %v1115 = vpop.f32.mrf.mxu0
    %v1116 = vadd.f32 %v1047, %v1115
    %v1117 = vand.u32 %v1070, 4294901760
    %v1118 = vsub.f32 %v1070, %v1117
    %v1119 = vand.u32 %v1118, 4294901760
    %v1120 = vsub.f32 %v1118, %v1119
    %v1121 = vand.u32 %v1120, 4294901760
    %1122 = vmatmul.f32.gmra.mxu0 %v1121
    %v1123 = vpop.f32.mrf.mxu0
    %v1124 = vadd.f32 %v1048, %v1123
    %v1125 = vand.u32 %v1072, 4294901760
    %v1126 = vsub.f32 %v1072, %v1125
    %v1127 = vand.u32 %v1126, 4294901760
    %v1128 = vsub.f32 %v1126, %v1127
    %v1129 = vand.u32 %v1128, 4294901760
    %1130 = vmatmul.f32.gmra.mxu0 %v1129
    %v1131 = vpop.f32.mrf.mxu0
    %v1132 = vadd.f32 %v1049, %v1131
    %v1133 = vand.u32 %v1074, 4294901760
    %v1134 = vsub.f32 %v1074, %v1133
    %v1135 = vand.u32 %v1134, 4294901760
    %v1136 = vsub.f32 %v1134, %v1135
    %v1137 = vand.u32 %v1136, 4294901760
    %1138 = vmatmul.f32.gmra.mxu0 %v1137
    %v1139 = vpop.f32.mrf.mxu0
    %v1140 = vadd.f32 %v1050, %v1139
    %v1141 = vand.u32 %v1076, 4294901760
    %v1142 = vsub.f32 %v1076, %v1141
    %v1143 = vand.u32 %v1142, 4294901760
    %v1144 = vsub.f32 %v1142, %v1143
    %v1145 = vand.u32 %v1144, 4294901760
    %1146 = vmatmul.f32.gmra.mxu0 %v1145
    %v1147 = vpop.f32.mrf.mxu0
    %v1148 = vadd.f32 %v1051, %v1147
    %1149 = vdwg.mxu0
    %1150 = vmatpush.xpose.msra.mxu0 0.0
    %1151 = vmatpush.xpose.msra.mxu0 0.0
    %1152 = vmatpush.xpose.msra.mxu0 0.0
    %1153 = vmatpush.xpose.msra.mxu0 0.0
    %1154 = vmatpush.xpose.msra.mxu0 0.0
    %1155 = vmatpush.xpose.msra.mxu0 0.0
    %1156 = vmatpush.xpose.msra.mxu0 0.0
    %1157 = vmatpush.xpose.msra.mxu0 0.0
    %1158 = vmatpush.xpose.msra.mxu0 0.0
    %1159 = vmatpush.xpose.msra.mxu0 0.0
    %1160 = vmatpush.xpose.msra.mxu0 0.0
    %v1161 = vand.u32 %v1086, 4294901760
    %v1162 = vsub.f32 %v1086, %v1161
    %v1163 = vand.u32 %v1162, 4294901760
    %v1164 = vsub.f32 %v1162, %v1163
    %v1165 = vand.u32 %v1164, 4294901760
    %1166 = vmatpush.xpose.msra.mxu0 %v1165
    %v1167 = vand.u32 %v1084, 4294901760
    %v1168 = vsub.f32 %v1084, %v1167
    %v1169 = vand.u32 %v1168, 4294901760
    %v1170 = vsub.f32 %v1168, %v1169
    %v1171 = vand.u32 %v1170, 4294901760
    %1172 = vmatpush.xpose.msra.mxu0 %v1171
    %v1173 = vand.u32 %v1082, 4294901760
    %v1174 = vsub.f32 %v1082, %v1173
    %v1175 = vand.u32 %v1174, 4294901760
    %v1176 = vsub.f32 %v1174, %v1175
    %v1177 = vand.u32 %v1176, 4294901760
    %1178 = vmatpush.xpose.msra.mxu0 %v1177
    %v1179 = vand.u32 %v1080, 4294901760
    %v1180 = vsub.f32 %v1080, %v1179
    %v1181 = vand.u32 %v1180, 4294901760
    %v1182 = vsub.f32 %v1180, %v1181
    %v1183 = vand.u32 %v1182, 4294901760
    %1184 = vmatpush.xpose.msra.mxu0 %v1183
    %v1185 = vand.u32 %v1078, 4294901760
    %v1186 = vsub.f32 %v1078, %v1185
    %v1187 = vand.u32 %v1186, 4294901760
    %v1188 = vsub.f32 %v1186, %v1187
    %v1189 = vand.u32 %v1188, 4294901760
    %1190 = vmatpush.xpose.msra.mxu0 %v1189
    %v1191 = vand.u32 %v1068, 4294901760
    %1192 = vmatmul.f32.gmra.mxu0 %v1191
    %v1193 = vpop.f32.mrf.mxu0
    %v1194 = vadd.f32 %v1116, %v1193
    %v1195 = vand.u32 %v1070, 4294901760
    %1196 = vmatmul.f32.gmra.mxu0 %v1195
    %v1197 = vpop.f32.mrf.mxu0
    %v1198 = vadd.f32 %v1124, %v1197
    %v1199 = vand.u32 %v1072, 4294901760
    %1200 = vmatmul.f32.gmra.mxu0 %v1199
    %v1201 = vpop.f32.mrf.mxu0
    %v1202 = vadd.f32 %v1132, %v1201
    %v1203 = vand.u32 %v1074, 4294901760
    %1204 = vmatmul.f32.gmra.mxu0 %v1203
    %v1205 = vpop.f32.mrf.mxu0
    %v1206 = vadd.f32 %v1140, %v1205
    %v1207 = vand.u32 %v1076, 4294901760
    %1208 = vmatmul.f32.gmra.mxu0 %v1207
    %v1209 = vpop.f32.mrf.mxu0
    %v1210 = vadd.f32 %v1148, %v1209
    %1211 = vdwg.mxu0
    %1212 = vmatpush.xpose.msra.mxu0 0.0
    %1213 = vmatpush.xpose.msra.mxu0 0.0
    %1214 = vmatpush.xpose.msra.mxu0 0.0
    %1215 = vmatpush.xpose.msra.mxu0 0.0
    %1216 = vmatpush.xpose.msra.mxu0 0.0
    %1217 = vmatpush.xpose.msra.mxu0 0.0
    %1218 = vmatpush.xpose.msra.mxu0 0.0
    %1219 = vmatpush.xpose.msra.mxu0 0.0
    %1220 = vmatpush.xpose.msra.mxu0 0.0
    %1221 = vmatpush.xpose.msra.mxu0 0.0
    %1222 = vmatpush.xpose.msra.mxu0 0.0
    %v1223 = vand.u32 %v1086, 4294901760
    %v1224 = vsub.f32 %v1086, %v1223
    %1225 = vmatpush.xpose.msra.mxu0 %v1224
    %v1226 = vand.u32 %v1084, 4294901760
    %v1227 = vsub.f32 %v1084, %v1226
    %1228 = vmatpush.xpose.msra.mxu0 %v1227
    %v1229 = vand.u32 %v1082, 4294901760
    %v1230 = vsub.f32 %v1082, %v1229
    %1231 = vmatpush.xpose.msra.mxu0 %v1230
    %v1232 = vand.u32 %v1080, 4294901760
    %v1233 = vsub.f32 %v1080, %v1232
    %1234 = vmatpush.xpose.msra.mxu0 %v1233
    %v1235 = vand.u32 %v1078, 4294901760
    %v1236 = vsub.f32 %v1078, %v1235
    %1237 = vmatpush.xpose.msra.mxu0 %v1236
    %v1238 = vand.u32 %v1068, 4294901760
    %v1239 = vsub.f32 %v1068, %v1238
    %1240 = vmatmul.f32.gmra.mxu0 %v1239
    %v1241 = vpop.f32.mrf.mxu0
    %v1242 = vadd.f32 %v1194, %v1241
    %v1243 = vand.u32 %v1070, 4294901760
    %v1244 = vsub.f32 %v1070, %v1243
    %1245 = vmatmul.f32.gmra.mxu0 %v1244
    %v1246 = vpop.f32.mrf.mxu0
    %v1247 = vadd.f32 %v1198, %v1246
    %v1248 = vand.u32 %v1072, 4294901760
    %v1249 = vsub.f32 %v1072, %v1248
    %1250 = vmatmul.f32.gmra.mxu0 %v1249
    %v1251 = vpop.f32.mrf.mxu0
    %v1252 = vadd.f32 %v1202, %v1251
    %v1253 = vand.u32 %v1074, 4294901760
    %v1254 = vsub.f32 %v1074, %v1253
    %1255 = vmatmul.f32.gmra.mxu0 %v1254
    %v1256 = vpop.f32.mrf.mxu0
    %v1257 = vadd.f32 %v1206, %v1256
    %v1258 = vand.u32 %v1076, 4294901760
    %v1259 = vsub.f32 %v1076, %v1258
    %1260 = vmatmul.f32.gmra.mxu0 %v1259
    %v1261 = vpop.f32.mrf.mxu0
    %v1262 = vadd.f32 %v1210, %v1261
    %1263 = vdwg.mxu0
    %1264 = vmatpush.xpose.msra.mxu0 0.0
    %1265 = vmatpush.xpose.msra.mxu0 0.0
    %1266 = vmatpush.xpose.msra.mxu0 0.0
    %1267 = vmatpush.xpose.msra.mxu0 0.0
    %1268 = vmatpush.xpose.msra.mxu0 0.0
    %1269 = vmatpush.xpose.msra.mxu0 0.0
    %1270 = vmatpush.xpose.msra.mxu0 0.0
    %1271 = vmatpush.xpose.msra.mxu0 0.0
    %1272 = vmatpush.xpose.msra.mxu0 0.0
    %1273 = vmatpush.xpose.msra.mxu0 0.0
    %1274 = vmatpush.xpose.msra.mxu0 0.0
    %v1275 = vand.u32 %v1086, 4294901760
    %1276 = vmatpush.xpose.msra.mxu0 %v1275
    %v1277 = vand.u32 %v1084, 4294901760
    %1278 = vmatpush.xpose.msra.mxu0 %v1277
    %v1279 = vand.u32 %v1082, 4294901760
    %1280 = vmatpush.xpose.msra.mxu0 %v1279
    %v1281 = vand.u32 %v1080, 4294901760
    %1282 = vmatpush.xpose.msra.mxu0 %v1281
    %v1283 = vand.u32 %v1078, 4294901760
    %1284 = vmatpush.xpose.msra.mxu0 %v1283
    %v1285 = vand.u32 %v1068, 4294901760
    %v1286 = vsub.f32 %v1068, %v1285
    %v1287 = vand.u32 %v1286, 4294901760
    %1288 = vmatmul.f32.gmra.mxu0 %v1287
    %v1289 = vpop.f32.mrf.mxu0
    %v1290 = vadd.f32 %v1242, %v1289
    %v1291 = vand.u32 %v1070, 4294901760
    %v1292 = vsub.f32 %v1070, %v1291
    %v1293 = vand.u32 %v1292, 4294901760
    %1294 = vmatmul.f32.gmra.mxu0 %v1293
    %v1295 = vpop.f32.mrf.mxu0
    %v1296 = vadd.f32 %v1247, %v1295
    %v1297 = vand.u32 %v1072, 4294901760
    %v1298 = vsub.f32 %v1072, %v1297
    %v1299 = vand.u32 %v1298, 4294901760
    %1300 = vmatmul.f32.gmra.mxu0 %v1299
    %v1301 = vpop.f32.mrf.mxu0
    %v1302 = vadd.f32 %v1252, %v1301
    %v1303 = vand.u32 %v1074, 4294901760
    %v1304 = vsub.f32 %v1074, %v1303
    %v1305 = vand.u32 %v1304, 4294901760
    %1306 = vmatmul.f32.gmra.mxu0 %v1305
    %v1307 = vpop.f32.mrf.mxu0
    %v1308 = vadd.f32 %v1257, %v1307
    %v1309 = vand.u32 %v1076, 4294901760
    %v1310 = vsub.f32 %v1076, %v1309
    %v1311 = vand.u32 %v1310, 4294901760
    %1312 = vmatmul.f32.gmra.mxu0 %v1311
    %v1313 = vpop.f32.mrf.mxu0
    %v1314 = vadd.f32 %v1262, %v1313
    %1315 = vdwg.mxu0
    %1316 = vmatpush.xpose.msra.mxu0 0.0
    %1317 = vmatpush.xpose.msra.mxu0 0.0
    %1318 = vmatpush.xpose.msra.mxu0 0.0
    %1319 = vmatpush.xpose.msra.mxu0 0.0
    %1320 = vmatpush.xpose.msra.mxu0 0.0
    %1321 = vmatpush.xpose.msra.mxu0 0.0
    %1322 = vmatpush.xpose.msra.mxu0 0.0
    %1323 = vmatpush.xpose.msra.mxu0 0.0
    %1324 = vmatpush.xpose.msra.mxu0 0.0
    %1325 = vmatpush.xpose.msra.mxu0 0.0
    %1326 = vmatpush.xpose.msra.mxu0 0.0
    %v1327 = vand.u32 %v1086, 4294901760
    %v1328 = vsub.f32 %v1086, %v1327
    %v1329 = vand.u32 %v1328, 4294901760
    %1330 = vmatpush.xpose.msra.mxu0 %v1329
    %v1331 = vand.u32 %v1084, 4294901760
    %v1332 = vsub.f32 %v1084, %v1331
    %v1333 = vand.u32 %v1332, 4294901760
    %1334 = vmatpush.xpose.msra.mxu0 %v1333
    %v1335 = vand.u32 %v1082, 4294901760
    %v1336 = vsub.f32 %v1082, %v1335
    %v1337 = vand.u32 %v1336, 4294901760
    %1338 = vmatpush.xpose.msra.mxu0 %v1337
    %v1339 = vand.u32 %v1080, 4294901760
    %v1340 = vsub.f32 %v1080, %v1339
    %v1341 = vand.u32 %v1340, 4294901760
    %1342 = vmatpush.xpose.msra.mxu0 %v1341
    %v1343 = vand.u32 %v1078, 4294901760
    %v1344 = vsub.f32 %v1078, %v1343
    %v1345 = vand.u32 %v1344, 4294901760
    %1346 = vmatpush.xpose.msra.mxu0 %v1345
    %v1347 = vand.u32 %v1068, 4294901760
    %1348 = vmatmul.f32.gmra.mxu0 %v1347
    %v1349 = vpop.f32.mrf.mxu0
    %v1350 = vadd.f32 %v1290, %v1349
    %v1351 = vand.u32 %v1070, 4294901760
    %1352 = vmatmul.f32.gmra.mxu0 %v1351
    %v1353 = vpop.f32.mrf.mxu0
    %v1354 = vadd.f32 %v1296, %v1353
    %v1355 = vand.u32 %v1072, 4294901760
    %1356 = vmatmul.f32.gmra.mxu0 %v1355
    %v1357 = vpop.f32.mrf.mxu0
    %v1358 = vadd.f32 %v1302, %v1357
    %v1359 = vand.u32 %v1074, 4294901760
    %1360 = vmatmul.f32.gmra.mxu0 %v1359
    %v1361 = vpop.f32.mrf.mxu0
    %v1362 = vadd.f32 %v1308, %v1361
    %v1363 = vand.u32 %v1076, 4294901760
    %1364 = vmatmul.f32.gmra.mxu0 %v1363
    %v1365 = vpop.f32.mrf.mxu0
    %v1366 = vadd.f32 %v1314, %v1365
    %1367 = vdwg.mxu0
    %1368 = vmatpush.xpose.msra.mxu0 0.0
    %1369 = vmatpush.xpose.msra.mxu0 0.0
    %1370 = vmatpush.xpose.msra.mxu0 0.0
    %1371 = vmatpush.xpose.msra.mxu0 0.0
    %1372 = vmatpush.xpose.msra.mxu0 0.0
    %1373 = vmatpush.xpose.msra.mxu0 0.0
    %1374 = vmatpush.xpose.msra.mxu0 0.0
    %1375 = vmatpush.xpose.msra.mxu0 0.0
    %1376 = vmatpush.xpose.msra.mxu0 0.0
    %1377 = vmatpush.xpose.msra.mxu0 0.0
    %1378 = vmatpush.xpose.msra.mxu0 0.0
    %v1379 = vand.u32 %v1086, 4294901760
    %1380 = vmatpush.xpose.msra.mxu0 %v1379
    %v1381 = vand.u32 %v1084, 4294901760
    %1382 = vmatpush.xpose.msra.mxu0 %v1381
    %v1383 = vand.u32 %v1082, 4294901760
    %1384 = vmatpush.xpose.msra.mxu0 %v1383
    %v1385 = vand.u32 %v1080, 4294901760
    %1386 = vmatpush.xpose.msra.mxu0 %v1385
    %v1387 = vand.u32 %v1078, 4294901760
    %1388 = vmatpush.xpose.msra.mxu0 %v1387
    %v1389 = vand.u32 %v1068, 4294901760
    %1390 = vmatmul.f32.gmra.mxu0 %v1389
    %v1391 = vpop.f32.mrf.mxu0
    %v1392 = vadd.f32 %v1350, %v1391
    %v1393 = vand.u32 %v1070, 4294901760
    %1394 = vmatmul.f32.gmra.mxu0 %v1393
    %v1395 = vpop.f32.mrf.mxu0
    %v1396 = vadd.f32 %v1354, %v1395
    %v1397 = vand.u32 %v1072, 4294901760
    %1398 = vmatmul.f32.gmra.mxu0 %v1397
    %v1399 = vpop.f32.mrf.mxu0
    %v1400 = vadd.f32 %v1358, %v1399
    %v1401 = vand.u32 %v1074, 4294901760
    %1402 = vmatmul.f32.gmra.mxu0 %v1401
    %v1403 = vpop.f32.mrf.mxu0
    %v1404 = vadd.f32 %v1362, %v1403
    %v1405 = vand.u32 %v1076, 4294901760
    %1406 = vmatmul.f32.gmra.mxu0 %v1405
    %v1407 = vpop.f32.mrf.mxu0
    %v1408 = vadd.f32 %v1366, %v1407
    %1409 = vdwg.mxu0
    %vm1410 = vcmask 326656
    %v1411 = vsel %vm1410, %v1392, -inf
    %1412 = vmax.xlane.f32.xlu0 %v1411
    %v1413 = vpop.xlane.xlu0 %1412
    %v1414 = vsel %vm1410, %v1396, -inf
    %1415 = vmax.xlane.f32.xlu0 %v1414
    %v1416 = vpop.xlane.xlu0 %1415
    %v1417 = vsel %vm1410, %v1400, -inf
    %1418 = vmax.xlane.f32.xlu0 %v1417
    %v1419 = vpop.xlane.xlu0 %1418
    %v1420 = vsel %vm1410, %v1404, -inf
    %1421 = vmax.xlane.f32.xlu0 %v1420
    %v1422 = vpop.xlane.xlu0 %1421
    %v1423 = vsel %vm1410, %v1408, -inf
    %1424 = vmax.xlane.f32.xlu0 %v1423
    %v1425 = vpop.xlane.xlu0 %1424
    %v1426 = vsub.f32 %v1392, %v1413
    %v1427 = vsub.f32 %v1396, %v1416
    %v1428 = vsub.f32 %v1400, %v1419
    %v1429 = vsub.f32 %v1404, %v1422
    %v1430 = vsub.f32 %v1408, %v1425
    %v1431 = vmul.f32 %v1426, 1.442695
    %v1432 = vpow.pop %v1431
    %v1433 = vmul.f32 %v1427, 1.442695
    %v1434 = vpow.pop %v1433
    %v1435 = vmul.f32 %v1428, 1.442695
    %v1436 = vpow.pop %v1435
    %v1437 = vmul.f32 %v1429, 1.442695
    %v1438 = vpow.pop %v1437
    %v1439 = vmul.f32 %v1430, 1.442695
    %v1440 = vpow.pop %v1439
    %v1441 = vsel %vm1410, %v1432, 0.0
    %1442 = vadd.xlane.f32.xlu0 %v1441
    %v1443 = vpop.xlane.xlu0 %1442
    %v1444 = vsel %vm1410, %v1434, 0.0
    %1445 = vadd.xlane.f32.xlu0 %v1444
    %v1446 = vpop.xlane.xlu0 %1445
    %v1447 = vsel %vm1410, %v1436, 0.0
    %1448 = vadd.xlane.f32.xlu0 %v1447
    %v1449 = vpop.xlane.xlu0 %1448
    %v1450 = vsel %vm1410, %v1438, 0.0
    %1451 = vadd.xlane.f32.xlu0 %v1450
    %v1452 = vpop.xlane.xlu0 %1451
    %v1453 = vsel %vm1410, %v1440, 0.0
    %1454 = vadd.xlane.f32.xlu0 %v1453
    %v1455 = vpop.xlane.xlu0 %1454
    %v1456 = vrcp.pop %v1443
    %v1457 = vmul.f32 %v1443, %v1456
    %v1458 = vsub.f32 1.0, %v1457
    %v1459 = vmul.f32 %v1456, %v1458
    %v1460 = vadd.f32 %v1456, %v1459
    %vm1461 = vweird.f32 %v1443
    %vm1462 = vweird.f32 %v1456
    %vm1463 = vmor %vm1461, %vm1462
    %v1464 = vsel %vm1463, %v1456, %v1460
    %v1465 = vand.u32 2147483647, %v1443
    %vm1466 = vcmp.eq.f32.partialorder %v1465, 8.507059e+37
    %v1467 = vand.u32 %v1443, 2147483648
    %v1468 = vor.u32 1.1754944e-38, %v1467
    %v1469 = vsel %vm1466, %v1468, %v1464
    %v1470 = vmul.f32 %v1432, %v1469
    %v1471 = vrcp.pop %v1446
    %v1472 = vmul.f32 %v1446, %v1471
    %v1473 = vsub.f32 1.0, %v1472
    %v1474 = vmul.f32 %v1471, %v1473
    %v1475 = vadd.f32 %v1471, %v1474
    %vm1476 = vweird.f32 %v1446
    %vm1477 = vweird.f32 %v1471
    %vm1478 = vmor %vm1476, %vm1477
    %v1479 = vsel %vm1478, %v1471, %v1475
    %v1480 = vand.u32 2147483647, %v1446
    %vm1481 = vcmp.eq.f32.partialorder %v1480, 8.507059e+37
    %v1482 = vand.u32 %v1446, 2147483648
    %v1483 = vor.u32 1.1754944e-38, %v1482
    %v1484 = vsel %vm1481, %v1483, %v1479
    %v1485 = vmul.f32 %v1434, %v1484
    %v1486 = vrcp.pop %v1449
    %v1487 = vmul.f32 %v1449, %v1486
    %v1488 = vsub.f32 1.0, %v1487
    %v1489 = vmul.f32 %v1486, %v1488
    %v1490 = vadd.f32 %v1486, %v1489
    %vm1491 = vweird.f32 %v1449
    %vm1492 = vweird.f32 %v1486
    %vm1493 = vmor %vm1491, %vm1492
    %v1494 = vsel %vm1493, %v1486, %v1490
    %v1495 = vand.u32 2147483647, %v1449
    %vm1496 = vcmp.eq.f32.partialorder %v1495, 8.507059e+37
    %v1497 = vand.u32 %v1449, 2147483648
    %v1498 = vor.u32 1.1754944e-38, %v1497
    %v1499 = vsel %vm1496, %v1498, %v1494
    %v1500 = vmul.f32 %v1436, %v1499
    %v1501 = vrcp.pop %v1452
    %v1502 = vmul.f32 %v1452, %v1501
    %v1503 = vsub.f32 1.0, %v1502
    %v1504 = vmul.f32 %v1501, %v1503
    %v1505 = vadd.f32 %v1501, %v1504
    %vm1506 = vweird.f32 %v1452
    %vm1507 = vweird.f32 %v1501
    %vm1508 = vmor %vm1506, %vm1507
    %v1509 = vsel %vm1508, %v1501, %v1505
    %v1510 = vand.u32 2147483647, %v1452
    %vm1511 = vcmp.eq.f32.partialorder %v1510, 8.507059e+37
    %v1512 = vand.u32 %v1452, 2147483648
    %v1513 = vor.u32 1.1754944e-38, %v1512
    %v1514 = vsel %vm1511, %v1513, %v1509
    %v1515 = vmul.f32 %v1438, %v1514
    %v1516 = vrcp.pop %v1455
    %v1517 = vmul.f32 %v1455, %v1516
    %v1518 = vsub.f32 1.0, %v1517
    %v1519 = vmul.f32 %v1516, %v1518
    %v1520 = vadd.f32 %v1516, %v1519
    %vm1521 = vweird.f32 %v1455
    %vm1522 = vweird.f32 %v1516
    %vm1523 = vmor %vm1521, %vm1522
    %v1524 = vsel %vm1523, %v1516, %v1520
    %v1525 = vand.u32 2147483647, %v1455
    %vm1526 = vcmp.eq.f32.partialorder %v1525, 8.507059e+37
    %v1527 = vand.u32 %v1455, 2147483648
    %v1528 = vor.u32 1.1754944e-38, %v1527
    %v1529 = vsel %vm1526, %v1528, %v1524
    %v1530 = vmul.f32 %v1440, %v1529
    %1531 = vrot.lane.b32.xlu0 %v1029, 64
    %v1532 = vpop.permute.xlu0 %1531
    %1533 = vrot.lane.b32.xlu0 %v1033, 64
    %v1534 = vpop.permute.xlu0 %1533
    %1535 = vrot.lane.b32.xlu0 %v1037, 64
    %v1536 = vpop.permute.xlu0 %1535
    %1537 = vrot.lane.b32.xlu0 %v1041, 64
    %v1538 = vpop.permute.xlu0 %1537
    %1539 = vrot.lane.b32.xlu0 %v1045, 64
    %v1540 = vpop.permute.xlu0 %1539
    %v1547 = vsel %vm1410, %v1470, 0
    %v1550 = vsel %vm1410, %v1485, 0
    %v1553 = vsel %vm1410, %v1500, 0
    %v1556 = vsel %vm1410, %v1515, 0
    %v1559 = vsel %vm1410, %v1530, 0
    %1561 = vmatpush.msra.mxu0 0.0
    %1562 = vmatpush.msra.mxu0 0.0
    %1563 = vmatpush.msra.mxu0 0.0
    %1564 = vmatpush.msra.mxu0 0.0
    %1565 = vmatpush.msra.mxu0 0.0
    %1566 = vmatpush.msra.mxu0 0.0
    %1567 = vmatpush.msra.mxu0 0.0
    %1568 = vmatpush.msra.mxu0 0.0
    %1569 = vmatpush.msra.mxu0 0.0
    %1570 = vmatpush.msra.mxu0 0.0
    %1571 = vmatpush.msra.mxu0 0.0
    %v1572 = vand.u32 %v1540, 4294901760
    %1573 = vmatpush.msra.mxu0 %v1572
    %v1574 = vand.u32 %v1538, 4294901760
    %1575 = vmatpush.msra.mxu0 %v1574
    %v1576 = vand.u32 %v1536, 4294901760
    %1577 = vmatpush.msra.mxu0 %v1576
    %v1578 = vand.u32 %v1534, 4294901760
    %1579 = vmatpush.msra.mxu0 %v1578
    %v1580 = vand.u32 %v1532, 4294901760
    %1581 = vmatpush.msra.mxu0 %v1580
    %v1582 = vand.u32 %v1547, 4294901760
    %v1583 = vsub.f32 %v1547, %v1582
    %v1584 = vand.u32 %v1583, 4294901760
    %v1585 = vsub.f32 %v1583, %v1584
    %v1586 = vand.u32 %v1585, 4294901760
    %1587 = vmatmul.f32.gmra.mxu0 %v1586
    %v1588 = vpop.f32.mrf.mxu0
    %v1589 = vadd.f32 0.0, %v1588
    %v1590 = vand.u32 %v1550, 4294901760
    %v1591 = vsub.f32 %v1550, %v1590
    %v1592 = vand.u32 %v1591, 4294901760
    %v1593 = vsub.f32 %v1591, %v1592
    %v1594 = vand.u32 %v1593, 4294901760
    %1595 = vmatmul.f32.gmra.mxu0 %v1594
    %v1596 = vpop.f32.mrf.mxu0
    %v1597 = vadd.f32 0.0, %v1596
    %v1598 = vand.u32 %v1553, 4294901760
    %v1599 = vsub.f32 %v1553, %v1598
    %v1600 = vand.u32 %v1599, 4294901760
    %v1601 = vsub.f32 %v1599, %v1600
    %v1602 = vand.u32 %v1601, 4294901760
    %1603 = vmatmul.f32.gmra.mxu0 %v1602
    %v1604 = vpop.f32.mrf.mxu0
    %v1605 = vadd.f32 0.0, %v1604
    %v1606 = vand.u32 %v1556, 4294901760
    %v1607 = vsub.f32 %v1556, %v1606
    %v1608 = vand.u32 %v1607, 4294901760
    %v1609 = vsub.f32 %v1607, %v1608
    %v1610 = vand.u32 %v1609, 4294901760
    %1611 = vmatmul.f32.gmra.mxu0 %v1610
    %v1612 = vpop.f32.mrf.mxu0
    %v1613 = vadd.f32 0.0, %v1612
    %v1614 = vand.u32 %v1559, 4294901760
    %v1615 = vsub.f32 %v1559, %v1614
    %v1616 = vand.u32 %v1615, 4294901760
    %v1617 = vsub.f32 %v1615, %v1616
    %v1618 = vand.u32 %v1617, 4294901760
    %1619 = vmatmul.f32.gmra.mxu0 %v1618
    %v1620 = vpop.f32.mrf.mxu0
    %v1621 = vadd.f32 0.0, %v1620
    %1622 = vdwg.mxu0
    %1623 = vmatpush.msra.mxu0 0.0
    %1624 = vmatpush.msra.mxu0 0.0
    %1625 = vmatpush.msra.mxu0 0.0
    %1626 = vmatpush.msra.mxu0 0.0
    %1627 = vmatpush.msra.mxu0 0.0
    %1628 = vmatpush.msra.mxu0 0.0
    %1629 = vmatpush.msra.mxu0 0.0
    %1630 = vmatpush.msra.mxu0 0.0
    %1631 = vmatpush.msra.mxu0 0.0
    %1632 = vmatpush.msra.mxu0 0.0
    %1633 = vmatpush.msra.mxu0 0.0
    %v1634 = vand.u32 %v1540, 4294901760
    %v1635 = vsub.f32 %v1540, %v1634
    %v1636 = vand.u32 %v1635, 4294901760
    %v1637 = vsub.f32 %v1635, %v1636
    %v1638 = vand.u32 %v1637, 4294901760
    %1639 = vmatpush.msra.mxu0 %v1638
    %v1640 = vand.u32 %v1538, 4294901760
    %v1641 = vsub.f32 %v1538, %v1640
    %v1642 = vand.u32 %v1641, 4294901760
    %v1643 = vsub.f32 %v1641, %v1642
    %v1644 = vand.u32 %v1643, 4294901760
    %1645 = vmatpush.msra.mxu0 %v1644
    %v1646 = vand.u32 %v1536, 4294901760
    %v1647 = vsub.f32 %v1536, %v1646
    %v1648 = vand.u32 %v1647, 4294901760
    %v1649 = vsub.f32 %v1647, %v1648
    %v1650 = vand.u32 %v1649, 4294901760
    %1651 = vmatpush.msra.mxu0 %v1650
    %v1652 = vand.u32 %v1534, 4294901760
    %v1653 = vsub.f32 %v1534, %v1652
    %v1654 = vand.u32 %v1653, 4294901760
    %v1655 = vsub.f32 %v1653, %v1654
    %v1656 = vand.u32 %v1655, 4294901760
    %1657 = vmatpush.msra.mxu0 %v1656
    %v1658 = vand.u32 %v1532, 4294901760
    %v1659 = vsub.f32 %v1532, %v1658
    %v1660 = vand.u32 %v1659, 4294901760
    %v1661 = vsub.f32 %v1659, %v1660
    %v1662 = vand.u32 %v1661, 4294901760
    %1663 = vmatpush.msra.mxu0 %v1662
    %v1664 = vand.u32 %v1547, 4294901760
    %1665 = vmatmul.f32.gmra.mxu0 %v1664
    %v1666 = vpop.f32.mrf.mxu0
    %v1667 = vadd.f32 %v1589, %v1666
    %v1668 = vand.u32 %v1550, 4294901760
    %1669 = vmatmul.f32.gmra.mxu0 %v1668
    %v1670 = vpop.f32.mrf.mxu0
    %v1671 = vadd.f32 %v1597, %v1670
    %v1672 = vand.u32 %v1553, 4294901760
    %1673 = vmatmul.f32.gmra.mxu0 %v1672
    %v1674 = vpop.f32.mrf.mxu0
    %v1675 = vadd.f32 %v1605, %v1674
    %v1676 = vand.u32 %v1556, 4294901760
    %1677 = vmatmul.f32.gmra.mxu0 %v1676
    %v1678 = vpop.f32.mrf.mxu0
    %v1679 = vadd.f32 %v1613, %v1678
    %v1680 = vand.u32 %v1559, 4294901760
    %1681 = vmatmul.f32.gmra.mxu0 %v1680
    %v1682 = vpop.f32.mrf.mxu0
    %v1683 = vadd.f32 %v1621, %v1682
    %1684 = vdwg.mxu0
    %1685 = vmatpush.msra.mxu0 0.0
    %1686 = vmatpush.msra.mxu0 0.0
    %1687 = vmatpush.msra.mxu0 0.0
    %1688 = vmatpush.msra.mxu0 0.0
    %1689 = vmatpush.msra.mxu0 0.0
    %1690 = vmatpush.msra.mxu0 0.0
    %1691 = vmatpush.msra.mxu0 0.0
    %1692 = vmatpush.msra.mxu0 0.0
    %1693 = vmatpush.msra.mxu0 0.0
    %1694 = vmatpush.msra.mxu0 0.0
    %1695 = vmatpush.msra.mxu0 0.0
    %v1696 = vand.u32 %v1540, 4294901760
    %v1697 = vsub.f32 %v1540, %v1696
    %1698 = vmatpush.msra.mxu0 %v1697
    %v1699 = vand.u32 %v1538, 4294901760
    %v1700 = vsub.f32 %v1538, %v1699
    %1701 = vmatpush.msra.mxu0 %v1700
    %v1702 = vand.u32 %v1536, 4294901760
    %v1703 = vsub.f32 %v1536, %v1702
    %1704 = vmatpush.msra.mxu0 %v1703
    %v1705 = vand.u32 %v1534, 4294901760
    %v1706 = vsub.f32 %v1534, %v1705
    %1707 = vmatpush.msra.mxu0 %v1706
    %v1708 = vand.u32 %v1532, 4294901760
    %v1709 = vsub.f32 %v1532, %v1708
    %1710 = vmatpush.msra.mxu0 %v1709
    %v1711 = vand.u32 %v1547, 4294901760
    %v1712 = vsub.f32 %v1547, %v1711
    %1713 = vmatmul.f32.gmra.mxu0 %v1712
    %v1714 = vpop.f32.mrf.mxu0
    %v1715 = vadd.f32 %v1667, %v1714
    %v1716 = vand.u32 %v1550, 4294901760
    %v1717 = vsub.f32 %v1550, %v1716
    %1718 = vmatmul.f32.gmra.mxu0 %v1717
    %v1719 = vpop.f32.mrf.mxu0
    %v1720 = vadd.f32 %v1671, %v1719
    %v1721 = vand.u32 %v1553, 4294901760
    %v1722 = vsub.f32 %v1553, %v1721
    %1723 = vmatmul.f32.gmra.mxu0 %v1722
    %v1724 = vpop.f32.mrf.mxu0
    %v1725 = vadd.f32 %v1675, %v1724
    %v1726 = vand.u32 %v1556, 4294901760
    %v1727 = vsub.f32 %v1556, %v1726
    %1728 = vmatmul.f32.gmra.mxu0 %v1727
    %v1729 = vpop.f32.mrf.mxu0
    %v1730 = vadd.f32 %v1679, %v1729
    %v1731 = vand.u32 %v1559, 4294901760
    %v1732 = vsub.f32 %v1559, %v1731
    %1733 = vmatmul.f32.gmra.mxu0 %v1732
    %v1734 = vpop.f32.mrf.mxu0
    %v1735 = vadd.f32 %v1683, %v1734
    %1736 = vdwg.mxu0
    %1737 = vmatpush.msra.mxu0 0.0
    %1738 = vmatpush.msra.mxu0 0.0
    %1739 = vmatpush.msra.mxu0 0.0
    %1740 = vmatpush.msra.mxu0 0.0
    %1741 = vmatpush.msra.mxu0 0.0
    %1742 = vmatpush.msra.mxu0 0.0
    %1743 = vmatpush.msra.mxu0 0.0
    %1744 = vmatpush.msra.mxu0 0.0
    %1745 = vmatpush.msra.mxu0 0.0
    %1746 = vmatpush.msra.mxu0 0.0
    %1747 = vmatpush.msra.mxu0 0.0
    %v1748 = vand.u32 %v1540, 4294901760
    %1749 = vmatpush.msra.mxu0 %v1748
    %v1750 = vand.u32 %v1538, 4294901760
    %1751 = vmatpush.msra.mxu0 %v1750
    %v1752 = vand.u32 %v1536, 4294901760
    %1753 = vmatpush.msra.mxu0 %v1752
    %v1754 = vand.u32 %v1534, 4294901760
    %1755 = vmatpush.msra.mxu0 %v1754
    %v1756 = vand.u32 %v1532, 4294901760
    %1757 = vmatpush.msra.mxu0 %v1756
    %v1758 = vand.u32 %v1547, 4294901760
    %v1759 = vsub.f32 %v1547, %v1758
    %v1760 = vand.u32 %v1759, 4294901760
    %1761 = vmatmul.f32.gmra.mxu0 %v1760
    %v1762 = vpop.f32.mrf.mxu0
    %v1763 = vadd.f32 %v1715, %v1762
    %v1764 = vand.u32 %v1550, 4294901760
    %v1765 = vsub.f32 %v1550, %v1764
    %v1766 = vand.u32 %v1765, 4294901760
    %1767 = vmatmul.f32.gmra.mxu0 %v1766
    %v1768 = vpop.f32.mrf.mxu0
    %v1769 = vadd.f32 %v1720, %v1768
    %v1770 = vand.u32 %v1553, 4294901760
    %v1771 = vsub.f32 %v1553, %v1770
    %v1772 = vand.u32 %v1771, 4294901760
    %1773 = vmatmul.f32.gmra.mxu0 %v1772
    %v1774 = vpop.f32.mrf.mxu0
    %v1775 = vadd.f32 %v1725, %v1774
    %v1776 = vand.u32 %v1556, 4294901760
    %v1777 = vsub.f32 %v1556, %v1776
    %v1778 = vand.u32 %v1777, 4294901760
    %1779 = vmatmul.f32.gmra.mxu0 %v1778
    %v1780 = vpop.f32.mrf.mxu0
    %v1781 = vadd.f32 %v1730, %v1780
    %v1782 = vand.u32 %v1559, 4294901760
    %v1783 = vsub.f32 %v1559, %v1782
    %v1784 = vand.u32 %v1783, 4294901760
    %1785 = vmatmul.f32.gmra.mxu0 %v1784
    %v1786 = vpop.f32.mrf.mxu0
    %v1787 = vadd.f32 %v1735, %v1786
    %1788 = vdwg.mxu0
    %1789 = vmatpush.msra.mxu0 0.0
    %1790 = vmatpush.msra.mxu0 0.0
    %1791 = vmatpush.msra.mxu0 0.0
    %1792 = vmatpush.msra.mxu0 0.0
    %1793 = vmatpush.msra.mxu0 0.0
    %1794 = vmatpush.msra.mxu0 0.0
    %1795 = vmatpush.msra.mxu0 0.0
    %1796 = vmatpush.msra.mxu0 0.0
    %1797 = vmatpush.msra.mxu0 0.0
    %1798 = vmatpush.msra.mxu0 0.0
    %1799 = vmatpush.msra.mxu0 0.0
    %v1800 = vand.u32 %v1540, 4294901760
    %v1801 = vsub.f32 %v1540, %v1800
    %v1802 = vand.u32 %v1801, 4294901760
    %1803 = vmatpush.msra.mxu0 %v1802
    %v1804 = vand.u32 %v1538, 4294901760
    %v1805 = vsub.f32 %v1538, %v1804
    %v1806 = vand.u32 %v1805, 4294901760
    %1807 = vmatpush.msra.mxu0 %v1806
    %v1808 = vand.u32 %v1536, 4294901760
    %v1809 = vsub.f32 %v1536, %v1808
    %v1810 = vand.u32 %v1809, 4294901760
    %1811 = vmatpush.msra.mxu0 %v1810
    %v1812 = vand.u32 %v1534, 4294901760
    %v1813 = vsub.f32 %v1534, %v1812
    %v1814 = vand.u32 %v1813, 4294901760
    %1815 = vmatpush.msra.mxu0 %v1814
    %v1816 = vand.u32 %v1532, 4294901760
    %v1817 = vsub.f32 %v1532, %v1816
    %v1818 = vand.u32 %v1817, 4294901760
    %1819 = vmatpush.msra.mxu0 %v1818
    %v1820 = vand.u32 %v1547, 4294901760
    %1821 = vmatmul.f32.gmra.mxu0 %v1820
    %v1822 = vpop.f32.mrf.mxu0
    %v1823 = vadd.f32 %v1763, %v1822
    %v1824 = vand.u32 %v1550, 4294901760
    %1825 = vmatmul.f32.gmra.mxu0 %v1824
    %v1826 = vpop.f32.mrf.mxu0
    %v1827 = vadd.f32 %v1769, %v1826
    %v1828 = vand.u32 %v1553, 4294901760
    %1829 = vmatmul.f32.gmra.mxu0 %v1828
    %v1830 = vpop.f32.mrf.mxu0
    %v1831 = vadd.f32 %v1775, %v1830
    %v1832 = vand.u32 %v1556, 4294901760
    %1833 = vmatmul.f32.gmra.mxu0 %v1832
    %v1834 = vpop.f32.mrf.mxu0
    %v1835 = vadd.f32 %v1781, %v1834
    %v1836 = vand.u32 %v1559, 4294901760
    %1837 = vmatmul.f32.gmra.mxu0 %v1836
    %v1838 = vpop.f32.mrf.mxu0
    %v1839 = vadd.f32 %v1787, %v1838
    %1840 = vdwg.mxu0
    %1841 = vmatpush.msra.mxu0 0.0
    %1842 = vmatpush.msra.mxu0 0.0
    %1843 = vmatpush.msra.mxu0 0.0
    %1844 = vmatpush.msra.mxu0 0.0
    %1845 = vmatpush.msra.mxu0 0.0
    %1846 = vmatpush.msra.mxu0 0.0
    %1847 = vmatpush.msra.mxu0 0.0
    %1848 = vmatpush.msra.mxu0 0.0
    %1849 = vmatpush.msra.mxu0 0.0
    %1850 = vmatpush.msra.mxu0 0.0
    %1851 = vmatpush.msra.mxu0 0.0
    %v1852 = vand.u32 %v1540, 4294901760
    %1853 = vmatpush.msra.mxu0 %v1852
    %v1854 = vand.u32 %v1538, 4294901760
    %1855 = vmatpush.msra.mxu0 %v1854
    %v1856 = vand.u32 %v1536, 4294901760
    %1857 = vmatpush.msra.mxu0 %v1856
    %v1858 = vand.u32 %v1534, 4294901760
    %1859 = vmatpush.msra.mxu0 %v1858
    %v1860 = vand.u32 %v1532, 4294901760
    %1861 = vmatpush.msra.mxu0 %v1860
    %v1862 = vand.u32 %v1547, 4294901760
    %1863 = vmatmul.f32.gmra.mxu0 %v1862
    %v1864 = vpop.f32.mrf.mxu0
    %v1865 = vadd.f32 %v1823, %v1864
    %v1866 = vand.u32 %v1550, 4294901760
    %1867 = vmatmul.f32.gmra.mxu0 %v1866
    %v1868 = vpop.f32.mrf.mxu0
    %v1869 = vadd.f32 %v1827, %v1868
    %v1870 = vand.u32 %v1553, 4294901760
    %1871 = vmatmul.f32.gmra.mxu0 %v1870
    %v1872 = vpop.f32.mrf.mxu0
    %v1873 = vadd.f32 %v1831, %v1872
    %v1874 = vand.u32 %v1556, 4294901760
    %1875 = vmatmul.f32.gmra.mxu0 %v1874
    %v1876 = vpop.f32.mrf.mxu0
    %v1877 = vadd.f32 %v1835, %v1876
    %v1878 = vand.u32 %v1559, 4294901760
    %1879 = vmatmul.f32.gmra.mxu0 %v1878
    %v1880 = vpop.f32.mrf.mxu0
    %v1881 = vadd.f32 %v1839, %v1880
    %1882 = vdwg.mxu0
    %1883 = vrot.lane.b32.xlu0 %v1029, 120
    %v1884 = vpop.permute.xlu0 %1883
    %1885 = vrot.lane.b32.xlu0 %v1033, 120
    %v1886 = vpop.permute.xlu0 %1885
    %1887 = vrot.lane.b32.xlu0 %v1037, 120
    %v1888 = vpop.permute.xlu0 %1887
    %1889 = vrot.lane.b32.xlu0 %v1041, 120
    %v1890 = vpop.permute.xlu0 %1889
    %1891 = vrot.lane.b32.xlu0 %v1045, 120
    %v1892 = vpop.permute.xlu0 %1891
    %1893 = vrot.lane.b32.xlu0 %v1029, 88
    %v1894 = vpop.permute.xlu0 %1893
    %1895 = vrot.lane.b32.xlu0 %v1033, 88
    %v1896 = vpop.permute.xlu0 %1895
    %1897 = vrot.lane.b32.xlu0 %v1037, 88
    %v1898 = vpop.permute.xlu0 %1897
    %1899 = vrot.lane.b32.xlu0 %v1041, 88
    %v1900 = vpop.permute.xlu0 %1899
    %1901 = vrot.lane.b32.xlu0 %v1045, 88
    %v1902 = vpop.permute.xlu0 %1901
    %v1903 = vsel %vm1067, %v1884, 0
    %v1905 = vsel %vm1067, %v1886, 0
    %v1907 = vsel %vm1067, %v1888, 0
    %v1909 = vsel %vm1067, %v1890, 0
    %v1911 = vsel %vm1067, %v1892, 0
    %v1913 = vsel %vm1067, %v1894, 0
    %v1915 = vsel %vm1067, %v1896, 0
    %v1917 = vsel %vm1067, %v1898, 0
    %v1919 = vsel %vm1067, %v1900, 0
    %v1921 = vsel %vm1067, %v1902, 0
    %1923 = vmatpush.xpose.msra.mxu0 0.0
    %1924 = vmatpush.xpose.msra.mxu0 0.0
    %1925 = vmatpush.xpose.msra.mxu0 0.0
    %1926 = vmatpush.xpose.msra.mxu0 0.0
    %1927 = vmatpush.xpose.msra.mxu0 0.0
    %1928 = vmatpush.xpose.msra.mxu0 0.0
    %1929 = vmatpush.xpose.msra.mxu0 0.0
    %1930 = vmatpush.xpose.msra.mxu0 0.0
    %1931 = vmatpush.xpose.msra.mxu0 0.0
    %1932 = vmatpush.xpose.msra.mxu0 0.0
    %1933 = vmatpush.xpose.msra.mxu0 0.0
    %v1934 = vand.u32 %v1921, 4294901760
    %1935 = vmatpush.xpose.msra.mxu0 %v1934
    %v1936 = vand.u32 %v1919, 4294901760
    %1937 = vmatpush.xpose.msra.mxu0 %v1936
    %v1938 = vand.u32 %v1917, 4294901760
    %1939 = vmatpush.xpose.msra.mxu0 %v1938
    %v1940 = vand.u32 %v1915, 4294901760
    %1941 = vmatpush.xpose.msra.mxu0 %v1940
    %v1942 = vand.u32 %v1913, 4294901760
    %1943 = vmatpush.xpose.msra.mxu0 %v1942
    %v1944 = vand.u32 %v1903, 4294901760
    %v1945 = vsub.f32 %v1903, %v1944
    %v1946 = vand.u32 %v1945, 4294901760
    %v1947 = vsub.f32 %v1945, %v1946
    %v1948 = vand.u32 %v1947, 4294901760
    %1949 = vmatmul.f32.gmra.mxu0 %v1948
    %v1950 = vpop.f32.mrf.mxu0
    %v1951 = vadd.f32 %v1047, %v1950
    %v1952 = vand.u32 %v1905, 4294901760
    %v1953 = vsub.f32 %v1905, %v1952
    %v1954 = vand.u32 %v1953, 4294901760
    %v1955 = vsub.f32 %v1953, %v1954
    %v1956 = vand.u32 %v1955, 4294901760
    %1957 = vmatmul.f32.gmra.mxu0 %v1956
    %v1958 = vpop.f32.mrf.mxu0
    %v1959 = vadd.f32 %v1048, %v1958
    %v1960 = vand.u32 %v1907, 4294901760
    %v1961 = vsub.f32 %v1907, %v1960
    %v1962 = vand.u32 %v1961, 4294901760
    %v1963 = vsub.f32 %v1961, %v1962
    %v1964 = vand.u32 %v1963, 4294901760
    %1965 = vmatmul.f32.gmra.mxu0 %v1964
    %v1966 = vpop.f32.mrf.mxu0
    %v1967 = vadd.f32 %v1049, %v1966
    %v1968 = vand.u32 %v1909, 4294901760
    %v1969 = vsub.f32 %v1909, %v1968
    %v1970 = vand.u32 %v1969, 4294901760
    %v1971 = vsub.f32 %v1969, %v1970
    %v1972 = vand.u32 %v1971, 4294901760
    %1973 = vmatmul.f32.gmra.mxu0 %v1972
    %v1974 = vpop.f32.mrf.mxu0
    %v1975 = vadd.f32 %v1050, %v1974
    %v1976 = vand.u32 %v1911, 4294901760
    %v1977 = vsub.f32 %v1911, %v1976
    %v1978 = vand.u32 %v1977, 4294901760
    %v1979 = vsub.f32 %v1977, %v1978
    %v1980 = vand.u32 %v1979, 4294901760
    %1981 = vmatmul.f32.gmra.mxu0 %v1980
    %v1982 = vpop.f32.mrf.mxu0
    %v1983 = vadd.f32 %v1051, %v1982
    %1984 = vdwg.mxu0
    %1985 = vmatpush.xpose.msra.mxu0 0.0
    %1986 = vmatpush.xpose.msra.mxu0 0.0
    %1987 = vmatpush.xpose.msra.mxu0 0.0
    %1988 = vmatpush.xpose.msra.mxu0 0.0
    %1989 = vmatpush.xpose.msra.mxu0 0.0
    %1990 = vmatpush.xpose.msra.mxu0 0.0
    %1991 = vmatpush.xpose.msra.mxu0 0.0
    %1992 = vmatpush.xpose.msra.mxu0 0.0
    %1993 = vmatpush.xpose.msra.mxu0 0.0
    %1994 = vmatpush.xpose.msra.mxu0 0.0
    %1995 = vmatpush.xpose.msra.mxu0 0.0
    %v1996 = vand.u32 %v1921, 4294901760
    %v1997 = vsub.f32 %v1921, %v1996
    %v1998 = vand.u32 %v1997, 4294901760
    %v1999 = vsub.f32 %v1997, %v1998
    %v2000 = vand.u32 %v1999, 4294901760
    %2001 = vmatpush.xpose.msra.mxu0 %v2000
    %v2002 = vand.u32 %v1919, 4294901760
    %v2003 = vsub.f32 %v1919, %v2002
    %v2004 = vand.u32 %v2003, 4294901760
    %v2005 = vsub.f32 %v2003, %v2004
    %v2006 = vand.u32 %v2005, 4294901760
    %2007 = vmatpush.xpose.msra.mxu0 %v2006
    %v2008 = vand.u32 %v1917, 4294901760
    %v2009 = vsub.f32 %v1917, %v2008
    %v2010 = vand.u32 %v2009, 4294901760
    %v2011 = vsub.f32 %v2009, %v2010
    %v2012 = vand.u32 %v2011, 4294901760
    %2013 = vmatpush.xpose.msra.mxu0 %v2012
    %v2014 = vand.u32 %v1915, 4294901760
    %v2015 = vsub.f32 %v1915, %v2014
    %v2016 = vand.u32 %v2015, 4294901760
    %v2017 = vsub.f32 %v2015, %v2016
    %v2018 = vand.u32 %v2017, 4294901760
    %2019 = vmatpush.xpose.msra.mxu0 %v2018
    %v2020 = vand.u32 %v1913, 4294901760
    %v2021 = vsub.f32 %v1913, %v2020
    %v2022 = vand.u32 %v2021, 4294901760
    %v2023 = vsub.f32 %v2021, %v2022
    %v2024 = vand.u32 %v2023, 4294901760
    %2025 = vmatpush.xpose.msra.mxu0 %v2024
    %v2026 = vand.u32 %v1903, 4294901760
    %2027 = vmatmul.f32.gmra.mxu0 %v2026
    %v2028 = vpop.f32.mrf.mxu0
    %v2029 = vadd.f32 %v1951, %v2028
    %v2030 = vand.u32 %v1905, 4294901760
    %2031 = vmatmul.f32.gmra.mxu0 %v2030
    %v2032 = vpop.f32.mrf.mxu0
    %v2033 = vadd.f32 %v1959, %v2032
    %v2034 = vand.u32 %v1907, 4294901760
    %2035 = vmatmul.f32.gmra.mxu0 %v2034
    %v2036 = vpop.f32.mrf.mxu0
    %v2037 = vadd.f32 %v1967, %v2036
    %v2038 = vand.u32 %v1909, 4294901760
    %2039 = vmatmul.f32.gmra.mxu0 %v2038
    %v2040 = vpop.f32.mrf.mxu0
    %v2041 = vadd.f32 %v1975, %v2040
    %v2042 = vand.u32 %v1911, 4294901760
    %2043 = vmatmul.f32.gmra.mxu0 %v2042
    %v2044 = vpop.f32.mrf.mxu0
    %v2045 = vadd.f32 %v1983, %v2044
    %2046 = vdwg.mxu0
    %2047 = vmatpush.xpose.msra.mxu0 0.0
    %2048 = vmatpush.xpose.msra.mxu0 0.0
    %2049 = vmatpush.xpose.msra.mxu0 0.0
    %2050 = vmatpush.xpose.msra.mxu0 0.0
    %2051 = vmatpush.xpose.msra.mxu0 0.0
    %2052 = vmatpush.xpose.msra.mxu0 0.0
    %2053 = vmatpush.xpose.msra.mxu0 0.0
    %2054 = vmatpush.xpose.msra.mxu0 0.0
    %2055 = vmatpush.xpose.msra.mxu0 0.0
    %2056 = vmatpush.xpose.msra.mxu0 0.0
    %2057 = vmatpush.xpose.msra.mxu0 0.0
    %v2058 = vand.u32 %v1921, 4294901760
    %v2059 = vsub.f32 %v1921, %v2058
    %2060 = vmatpush.xpose.msra.mxu0 %v2059
    %v2061 = vand.u32 %v1919, 4294901760
    %v2062 = vsub.f32 %v1919, %v2061
    %2063 = vmatpush.xpose.msra.mxu0 %v2062
    %v2064 = vand.u32 %v1917, 4294901760
    %v2065 = vsub.f32 %v1917, %v2064
    %2066 = vmatpush.xpose.msra.mxu0 %v2065
    %v2067 = vand.u32 %v1915, 4294901760
    %v2068 = vsub.f32 %v1915, %v2067
    %2069 = vmatpush.xpose.msra.mxu0 %v2068
    %v2070 = vand.u32 %v1913, 4294901760
    %v2071 = vsub.f32 %v1913, %v2070
    %2072 = vmatpush.xpose.msra.mxu0 %v2071
    %v2073 = vand.u32 %v1903, 4294901760
    %v2074 = vsub.f32 %v1903, %v2073
    %2075 = vmatmul.f32.gmra.mxu0 %v2074
    %v2076 = vpop.f32.mrf.mxu0
    %v2077 = vadd.f32 %v2029, %v2076
    %v2078 = vand.u32 %v1905, 4294901760
    %v2079 = vsub.f32 %v1905, %v2078
    %2080 = vmatmul.f32.gmra.mxu0 %v2079
    %v2081 = vpop.f32.mrf.mxu0
    %v2082 = vadd.f32 %v2033, %v2081
    %v2083 = vand.u32 %v1907, 4294901760
    %v2084 = vsub.f32 %v1907, %v2083
    %2085 = vmatmul.f32.gmra.mxu0 %v2084
    %v2086 = vpop.f32.mrf.mxu0
    %v2087 = vadd.f32 %v2037, %v2086
    %v2088 = vand.u32 %v1909, 4294901760
    %v2089 = vsub.f32 %v1909, %v2088
    %2090 = vmatmul.f32.gmra.mxu0 %v2089
    %v2091 = vpop.f32.mrf.mxu0
    %v2092 = vadd.f32 %v2041, %v2091
    %v2093 = vand.u32 %v1911, 4294901760
    %v2094 = vsub.f32 %v1911, %v2093
    %2095 = vmatmul.f32.gmra.mxu0 %v2094
    %v2096 = vpop.f32.mrf.mxu0
    %v2097 = vadd.f32 %v2045, %v2096
    %2098 = vdwg.mxu0
    %2099 = vmatpush.xpose.msra.mxu0 0.0
    %2100 = vmatpush.xpose.msra.mxu0 0.0
    %2101 = vmatpush.xpose.msra.mxu0 0.0
    %2102 = vmatpush.xpose.msra.mxu0 0.0
    %2103 = vmatpush.xpose.msra.mxu0 0.0
    %2104 = vmatpush.xpose.msra.mxu0 0.0
    %2105 = vmatpush.xpose.msra.mxu0 0.0
    %2106 = vmatpush.xpose.msra.mxu0 0.0
    %2107 = vmatpush.xpose.msra.mxu0 0.0
    %2108 = vmatpush.xpose.msra.mxu0 0.0
    %2109 = vmatpush.xpose.msra.mxu0 0.0
    %v2110 = vand.u32 %v1921, 4294901760
    %2111 = vmatpush.xpose.msra.mxu0 %v2110
    %v2112 = vand.u32 %v1919, 4294901760
    %2113 = vmatpush.xpose.msra.mxu0 %v2112
    %v2114 = vand.u32 %v1917, 4294901760
    %2115 = vmatpush.xpose.msra.mxu0 %v2114
    %v2116 = vand.u32 %v1915, 4294901760
    %2117 = vmatpush.xpose.msra.mxu0 %v2116
    %v2118 = vand.u32 %v1913, 4294901760
    %2119 = vmatpush.xpose.msra.mxu0 %v2118
    %v2120 = vand.u32 %v1903, 4294901760
    %v2121 = vsub.f32 %v1903, %v2120
    %v2122 = vand.u32 %v2121, 4294901760
    %2123 = vmatmul.f32.gmra.mxu0 %v2122
    %v2124 = vpop.f32.mrf.mxu0
    %v2125 = vadd.f32 %v2077, %v2124
    %v2126 = vand.u32 %v1905, 4294901760
    %v2127 = vsub.f32 %v1905, %v2126
    %v2128 = vand.u32 %v2127, 4294901760
    %2129 = vmatmul.f32.gmra.mxu0 %v2128
    %v2130 = vpop.f32.mrf.mxu0
    %v2131 = vadd.f32 %v2082, %v2130
    %v2132 = vand.u32 %v1907, 4294901760
    %v2133 = vsub.f32 %v1907, %v2132
    %v2134 = vand.u32 %v2133, 4294901760
    %2135 = vmatmul.f32.gmra.mxu0 %v2134
    %v2136 = vpop.f32.mrf.mxu0
    %v2137 = vadd.f32 %v2087, %v2136
    %v2138 = vand.u32 %v1909, 4294901760
    %v2139 = vsub.f32 %v1909, %v2138
    %v2140 = vand.u32 %v2139, 4294901760
    %2141 = vmatmul.f32.gmra.mxu0 %v2140
    %v2142 = vpop.f32.mrf.mxu0
    %v2143 = vadd.f32 %v2092, %v2142
    %v2144 = vand.u32 %v1911, 4294901760
    %v2145 = vsub.f32 %v1911, %v2144
    %v2146 = vand.u32 %v2145, 4294901760
    %2147 = vmatmul.f32.gmra.mxu0 %v2146
    %v2148 = vpop.f32.mrf.mxu0
    %v2149 = vadd.f32 %v2097, %v2148
    %2150 = vdwg.mxu0
    %2151 = vmatpush.xpose.msra.mxu0 0.0
    %2152 = vmatpush.xpose.msra.mxu0 0.0
    %2153 = vmatpush.xpose.msra.mxu0 0.0
    %2154 = vmatpush.xpose.msra.mxu0 0.0
    %2155 = vmatpush.xpose.msra.mxu0 0.0
    %2156 = vmatpush.xpose.msra.mxu0 0.0
    %2157 = vmatpush.xpose.msra.mxu0 0.0
    %2158 = vmatpush.xpose.msra.mxu0 0.0
    %2159 = vmatpush.xpose.msra.mxu0 0.0
    %2160 = vmatpush.xpose.msra.mxu0 0.0
    %2161 = vmatpush.xpose.msra.mxu0 0.0
    %v2162 = vand.u32 %v1921, 4294901760
    %v2163 = vsub.f32 %v1921, %v2162
    %v2164 = vand.u32 %v2163, 4294901760
    %2165 = vmatpush.xpose.msra.mxu0 %v2164
    %v2166 = vand.u32 %v1919, 4294901760
    %v2167 = vsub.f32 %v1919, %v2166
    %v2168 = vand.u32 %v2167, 4294901760
    %2169 = vmatpush.xpose.msra.mxu0 %v2168
    %v2170 = vand.u32 %v1917, 4294901760
    %v2171 = vsub.f32 %v1917, %v2170
    %v2172 = vand.u32 %v2171, 4294901760
    %2173 = vmatpush.xpose.msra.mxu0 %v2172
    %v2174 = vand.u32 %v1915, 4294901760
    %v2175 = vsub.f32 %v1915, %v2174
    %v2176 = vand.u32 %v2175, 4294901760
    %2177 = vmatpush.xpose.msra.mxu0 %v2176
    %v2178 = vand.u32 %v1913, 4294901760
    %v2179 = vsub.f32 %v1913, %v2178
    %v2180 = vand.u32 %v2179, 4294901760
    %2181 = vmatpush.xpose.msra.mxu0 %v2180
    %v2182 = vand.u32 %v1903, 4294901760
    %2183 = vmatmul.f32.gmra.mxu0 %v2182
    %v2184 = vpop.f32.mrf.mxu0
    %v2185 = vadd.f32 %v2125, %v2184
    %v2186 = vand.u32 %v1905, 4294901760
    %2187 = vmatmul.f32.gmra.mxu0 %v2186
    %v2188 = vpop.f32.mrf.mxu0
    %v2189 = vadd.f32 %v2131, %v2188
    %v2190 = vand.u32 %v1907, 4294901760
    %2191 = vmatmul.f32.gmra.mxu0 %v2190
    %v2192 = vpop.f32.mrf.mxu0
    %v2193 = vadd.f32 %v2137, %v2192
    %v2194 = vand.u32 %v1909, 4294901760
    %2195 = vmatmul.f32.gmra.mxu0 %v2194
    %v2196 = vpop.f32.mrf.mxu0
    %v2197 = vadd.f32 %v2143, %v2196
    %v2198 = vand.u32 %v1911, 4294901760
    %2199 = vmatmul.f32.gmra.mxu0 %v2198
    %v2200 = vpop.f32.mrf.mxu0
    %v2201 = vadd.f32 %v2149, %v2200
    %2202 = vdwg.mxu0
    %2203 = vmatpush.xpose.msra.mxu0 0.0
    %2204 = vmatpush.xpose.msra.mxu0 0.0
    %2205 = vmatpush.xpose.msra.mxu0 0.0
    %2206 = vmatpush.xpose.msra.mxu0 0.0
    %2207 = vmatpush.xpose.msra.mxu0 0.0
    %2208 = vmatpush.xpose.msra.mxu0 0.0
    %2209 = vmatpush.xpose.msra.mxu0 0.0
    %2210 = vmatpush.xpose.msra.mxu0 0.0
    %2211 = vmatpush.xpose.msra.mxu0 0.0
    %2212 = vmatpush.xpose.msra.mxu0 0.0
    %2213 = vmatpush.xpose.msra.mxu0 0.0
    %v2214 = vand.u32 %v1921, 4294901760
    %2215 = vmatpush.xpose.msra.mxu0 %v2214
    %v2216 = vand.u32 %v1919, 4294901760
    %2217 = vmatpush.xpose.msra.mxu0 %v2216
    %v2218 = vand.u32 %v1917, 4294901760
    %2219 = vmatpush.xpose.msra.mxu0 %v2218
    %v2220 = vand.u32 %v1915, 4294901760
    %2221 = vmatpush.xpose.msra.mxu0 %v2220
    %v2222 = vand.u32 %v1913, 4294901760
    %2223 = vmatpush.xpose.msra.mxu0 %v2222
    %v2224 = vand.u32 %v1903, 4294901760
    %2225 = vmatmul.f32.gmra.mxu0 %v2224
    %v2226 = vpop.f32.mrf.mxu0
    %v2227 = vadd.f32 %v2185, %v2226
    %v2228 = vand.u32 %v1905, 4294901760
    %2229 = vmatmul.f32.gmra.mxu0 %v2228
    %v2230 = vpop.f32.mrf.mxu0
    %v2231 = vadd.f32 %v2189, %v2230
    %v2232 = vand.u32 %v1907, 4294901760
    %2233 = vmatmul.f32.gmra.mxu0 %v2232
    %v2234 = vpop.f32.mrf.mxu0
    %v2235 = vadd.f32 %v2193, %v2234
    %v2236 = vand.u32 %v1909, 4294901760
    %2237 = vmatmul.f32.gmra.mxu0 %v2236
    %v2238 = vpop.f32.mrf.mxu0
    %v2239 = vadd.f32 %v2197, %v2238
    %v2240 = vand.u32 %v1911, 4294901760
    %2241 = vmatmul.f32.gmra.mxu0 %v2240
    %v2242 = vpop.f32.mrf.mxu0
    %v2243 = vadd.f32 %v2201, %v2242
    %2244 = vdwg.mxu0
    %v2245 = vsel %vm1410, %v2227, -inf
    %2246 = vmax.xlane.f32.xlu0 %v2245
    %v2247 = vpop.xlane.xlu0 %2246
    %v2248 = vsel %vm1410, %v2231, -inf
    %2249 = vmax.xlane.f32.xlu0 %v2248
    %v2250 = vpop.xlane.xlu0 %2249
    %v2251 = vsel %vm1410, %v2235, -inf
    %2252 = vmax.xlane.f32.xlu0 %v2251
    %v2253 = vpop.xlane.xlu0 %2252
    %v2254 = vsel %vm1410, %v2239, -inf
    %2255 = vmax.xlane.f32.xlu0 %v2254
    %v2256 = vpop.xlane.xlu0 %2255
    %v2257 = vsel %vm1410, %v2243, -inf
    %2258 = vmax.xlane.f32.xlu0 %v2257
    %v2259 = vpop.xlane.xlu0 %2258
    %v2260 = vsub.f32 %v2227, %v2247
    %v2261 = vsub.f32 %v2231, %v2250
    %v2262 = vsub.f32 %v2235, %v2253
    %v2263 = vsub.f32 %v2239, %v2256
    %v2264 = vsub.f32 %v2243, %v2259
    %v2265 = vmul.f32 %v2260, 1.442695
    %v2266 = vpow.pop %v2265
    %v2267 = vmul.f32 %v2261, 1.442695
    %v2268 = vpow.pop %v2267
    %v2269 = vmul.f32 %v2262, 1.442695
    %v2270 = vpow.pop %v2269
    %v2271 = vmul.f32 %v2263, 1.442695
    %v2272 = vpow.pop %v2271
    %v2273 = vmul.f32 %v2264, 1.442695
    %v2274 = vpow.pop %v2273
    %v2275 = vsel %vm1410, %v2266, 0.0
    %2276 = vadd.xlane.f32.xlu0 %v2275
    %v2277 = vpop.xlane.xlu0 %2276
    %v2278 = vsel %vm1410, %v2268, 0.0
    %2279 = vadd.xlane.f32.xlu0 %v2278
    %v2280 = vpop.xlane.xlu0 %2279
    %v2281 = vsel %vm1410, %v2270, 0.0
    %2282 = vadd.xlane.f32.xlu0 %v2281
    %v2283 = vpop.xlane.xlu0 %2282
    %v2284 = vsel %vm1410, %v2272, 0.0
    %2285 = vadd.xlane.f32.xlu0 %v2284
    %v2286 = vpop.xlane.xlu0 %2285
    %v2287 = vsel %vm1410, %v2274, 0.0
    %2288 = vadd.xlane.f32.xlu0 %v2287
    %v2289 = vpop.xlane.xlu0 %2288
    %v2290 = vrcp.pop %v2277
    %v2291 = vmul.f32 %v2277, %v2290
    %v2292 = vsub.f32 1.0, %v2291
    %v2293 = vmul.f32 %v2290, %v2292
    %v2294 = vadd.f32 %v2290, %v2293
    %vm2295 = vweird.f32 %v2277
    %vm2296 = vweird.f32 %v2290
    %vm2297 = vmor %vm2295, %vm2296
    %v2298 = vsel %vm2297, %v2290, %v2294
    %v2299 = vand.u32 2147483647, %v2277
    %vm2300 = vcmp.eq.f32.partialorder %v2299, 8.507059e+37
    %v2301 = vand.u32 %v2277, 2147483648
    %v2302 = vor.u32 1.1754944e-38, %v2301
    %v2303 = vsel %vm2300, %v2302, %v2298
    %v2304 = vmul.f32 %v2266, %v2303
    %v2305 = vrcp.pop %v2280
    %v2306 = vmul.f32 %v2280, %v2305
    %v2307 = vsub.f32 1.0, %v2306
    %v2308 = vmul.f32 %v2305, %v2307
    %v2309 = vadd.f32 %v2305, %v2308
    %vm2310 = vweird.f32 %v2280
    %vm2311 = vweird.f32 %v2305
    %vm2312 = vmor %vm2310, %vm2311
    %v2313 = vsel %vm2312, %v2305, %v2309
    %v2314 = vand.u32 2147483647, %v2280
    %vm2315 = vcmp.eq.f32.partialorder %v2314, 8.507059e+37
    %v2316 = vand.u32 %v2280, 2147483648
    %v2317 = vor.u32 1.1754944e-38, %v2316
    %v2318 = vsel %vm2315, %v2317, %v2313
    %v2319 = vmul.f32 %v2268, %v2318
    %v2320 = vrcp.pop %v2283
    %v2321 = vmul.f32 %v2283, %v2320
    %v2322 = vsub.f32 1.0, %v2321
    %v2323 = vmul.f32 %v2320, %v2322
    %v2324 = vadd.f32 %v2320, %v2323
    %vm2325 = vweird.f32 %v2283
    %vm2326 = vweird.f32 %v2320
    %vm2327 = vmor %vm2325, %vm2326
    %v2328 = vsel %vm2327, %v2320, %v2324
    %v2329 = vand.u32 2147483647, %v2283
    %vm2330 = vcmp.eq.f32.partialorder %v2329, 8.507059e+37
    %v2331 = vand.u32 %v2283, 2147483648
    %v2332 = vor.u32 1.1754944e-38, %v2331
    %v2333 = vsel %vm2330, %v2332, %v2328
    %v2334 = vmul.f32 %v2270, %v2333
    %v2335 = vrcp.pop %v2286
    %v2336 = vmul.f32 %v2286, %v2335
    %v2337 = vsub.f32 1.0, %v2336
    %v2338 = vmul.f32 %v2335, %v2337
    %v2339 = vadd.f32 %v2335, %v2338
    %vm2340 = vweird.f32 %v2286
    %vm2341 = vweird.f32 %v2335
    %vm2342 = vmor %vm2340, %vm2341
    %v2343 = vsel %vm2342, %v2335, %v2339
    %v2344 = vand.u32 2147483647, %v2286
    %vm2345 = vcmp.eq.f32.partialorder %v2344, 8.507059e+37
    %v2346 = vand.u32 %v2286, 2147483648
    %v2347 = vor.u32 1.1754944e-38, %v2346
    %v2348 = vsel %vm2345, %v2347, %v2343
    %v2349 = vmul.f32 %v2272, %v2348
    %v2350 = vrcp.pop %v2289
    %v2351 = vmul.f32 %v2289, %v2350
    %v2352 = vsub.f32 1.0, %v2351
    %v2353 = vmul.f32 %v2350, %v2352
    %v2354 = vadd.f32 %v2350, %v2353
    %vm2355 = vweird.f32 %v2289
    %vm2356 = vweird.f32 %v2350
    %vm2357 = vmor %vm2355, %vm2356
    %v2358 = vsel %vm2357, %v2350, %v2354
    %v2359 = vand.u32 2147483647, %v2289
    %vm2360 = vcmp.eq.f32.partialorder %v2359, 8.507059e+37
    %v2361 = vand.u32 %v2289, 2147483648
    %v2362 = vor.u32 1.1754944e-38, %v2361
    %v2363 = vsel %vm2360, %v2362, %v2358
    %v2364 = vmul.f32 %v2274, %v2363
    %2365 = vrot.lane.b32.xlu0 %v1029, 56
    %v2366 = vpop.permute.xlu0 %2365
    %2367 = vrot.lane.b32.xlu0 %v1033, 56
    %v2368 = vpop.permute.xlu0 %2367
    %2369 = vrot.lane.b32.xlu0 %v1037, 56
    %v2370 = vpop.permute.xlu0 %2369
    %2371 = vrot.lane.b32.xlu0 %v1041, 56
    %v2372 = vpop.permute.xlu0 %2371
    %2373 = vrot.lane.b32.xlu0 %v1045, 56
    %v2374 = vpop.permute.xlu0 %2373
    %v2381 = vsel %vm1410, %v2304, 0
    %v2384 = vsel %vm1410, %v2319, 0
    %v2387 = vsel %vm1410, %v2334, 0
    %v2390 = vsel %vm1410, %v2349, 0
    %v2393 = vsel %vm1410, %v2364, 0
    %2395 = vmatpush.msra.mxu0 0.0
    %2396 = vmatpush.msra.mxu0 0.0
    %2397 = vmatpush.msra.mxu0 0.0
    %2398 = vmatpush.msra.mxu0 0.0
    %2399 = vmatpush.msra.mxu0 0.0
    %2400 = vmatpush.msra.mxu0 0.0
    %2401 = vmatpush.msra.mxu0 0.0
    %2402 = vmatpush.msra.mxu0 0.0
    %2403 = vmatpush.msra.mxu0 0.0
    %2404 = vmatpush.msra.mxu0 0.0
    %2405 = vmatpush.msra.mxu0 0.0
    %v2406 = vand.u32 %v2374, 4294901760
    %2407 = vmatpush.msra.mxu0 %v2406
    %v2408 = vand.u32 %v2372, 4294901760
    %2409 = vmatpush.msra.mxu0 %v2408
    %v2410 = vand.u32 %v2370, 4294901760
    %2411 = vmatpush.msra.mxu0 %v2410
    %v2412 = vand.u32 %v2368, 4294901760
    %2413 = vmatpush.msra.mxu0 %v2412
    %v2414 = vand.u32 %v2366, 4294901760
    %2415 = vmatpush.msra.mxu0 %v2414
    %v2416 = vand.u32 %v2381, 4294901760
    %v2417 = vsub.f32 %v2381, %v2416
    %v2418 = vand.u32 %v2417, 4294901760
    %v2419 = vsub.f32 %v2417, %v2418
    %v2420 = vand.u32 %v2419, 4294901760
    %2421 = vmatmul.f32.gmra.mxu0 %v2420
    %v2422 = vpop.f32.mrf.mxu0
    %v2423 = vadd.f32 0.0, %v2422
    %v2424 = vand.u32 %v2384, 4294901760
    %v2425 = vsub.f32 %v2384, %v2424
    %v2426 = vand.u32 %v2425, 4294901760
    %v2427 = vsub.f32 %v2425, %v2426
    %v2428 = vand.u32 %v2427, 4294901760
    %2429 = vmatmul.f32.gmra.mxu0 %v2428
    %v2430 = vpop.f32.mrf.mxu0
    %v2431 = vadd.f32 0.0, %v2430
    %v2432 = vand.u32 %v2387, 4294901760
    %v2433 = vsub.f32 %v2387, %v2432
    %v2434 = vand.u32 %v2433, 4294901760
    %v2435 = vsub.f32 %v2433, %v2434
    %v2436 = vand.u32 %v2435, 4294901760
    %2437 = vmatmul.f32.gmra.mxu0 %v2436
    %v2438 = vpop.f32.mrf.mxu0
    %v2439 = vadd.f32 0.0, %v2438
    %v2440 = vand.u32 %v2390, 4294901760
    %v2441 = vsub.f32 %v2390, %v2440
    %v2442 = vand.u32 %v2441, 4294901760
    %v2443 = vsub.f32 %v2441, %v2442
    %v2444 = vand.u32 %v2443, 4294901760
    %2445 = vmatmul.f32.gmra.mxu0 %v2444
    %v2446 = vpop.f32.mrf.mxu0
    %v2447 = vadd.f32 0.0, %v2446
    %v2448 = vand.u32 %v2393, 4294901760
    %v2449 = vsub.f32 %v2393, %v2448
    %v2450 = vand.u32 %v2449, 4294901760
    %v2451 = vsub.f32 %v2449, %v2450
    %v2452 = vand.u32 %v2451, 4294901760
    %2453 = vmatmul.f32.gmra.mxu0 %v2452
    %v2454 = vpop.f32.mrf.mxu0
    %v2455 = vadd.f32 0.0, %v2454
    %2456 = vdwg.mxu0
    %2457 = vmatpush.msra.mxu0 0.0
    %2458 = vmatpush.msra.mxu0 0.0
    %2459 = vmatpush.msra.mxu0 0.0
    %2460 = vmatpush.msra.mxu0 0.0
    %2461 = vmatpush.msra.mxu0 0.0
    %2462 = vmatpush.msra.mxu0 0.0
    %2463 = vmatpush.msra.mxu0 0.0
    %2464 = vmatpush.msra.mxu0 0.0
    %2465 = vmatpush.msra.mxu0 0.0
    %2466 = vmatpush.msra.mxu0 0.0
    %2467 = vmatpush.msra.mxu0 0.0
    %v2468 = vand.u32 %v2374, 4294901760
    %v2469 = vsub.f32 %v2374, %v2468
    %v2470 = vand.u32 %v2469, 4294901760
    %v2471 = vsub.f32 %v2469, %v2470
    %v2472 = vand.u32 %v2471, 4294901760
    %2473 = vmatpush.msra.mxu0 %v2472
    %v2474 = vand.u32 %v2372, 4294901760
    %v2475 = vsub.f32 %v2372, %v2474
    %v2476 = vand.u32 %v2475, 4294901760
    %v2477 = vsub.f32 %v2475, %v2476
    %v2478 = vand.u32 %v2477, 4294901760
    %2479 = vmatpush.msra.mxu0 %v2478
    %v2480 = vand.u32 %v2370, 4294901760
    %v2481 = vsub.f32 %v2370, %v2480
    %v2482 = vand.u32 %v2481, 4294901760
    %v2483 = vsub.f32 %v2481, %v2482
    %v2484 = vand.u32 %v2483, 4294901760
    %2485 = vmatpush.msra.mxu0 %v2484
    %v2486 = vand.u32 %v2368, 4294901760
    %v2487 = vsub.f32 %v2368, %v2486
    %v2488 = vand.u32 %v2487, 4294901760
    %v2489 = vsub.f32 %v2487, %v2488
    %v2490 = vand.u32 %v2489, 4294901760
    %2491 = vmatpush.msra.mxu0 %v2490
    %v2492 = vand.u32 %v2366, 4294901760
    %v2493 = vsub.f32 %v2366, %v2492
    %v2494 = vand.u32 %v2493, 4294901760
    %v2495 = vsub.f32 %v2493, %v2494
    %v2496 = vand.u32 %v2495, 4294901760
    %2497 = vmatpush.msra.mxu0 %v2496
    %v2498 = vand.u32 %v2381, 4294901760
    %2499 = vmatmul.f32.gmra.mxu0 %v2498
    %v2500 = vpop.f32.mrf.mxu0
    %v2501 = vadd.f32 %v2423, %v2500
    %v2502 = vand.u32 %v2384, 4294901760
    %2503 = vmatmul.f32.gmra.mxu0 %v2502
    %v2504 = vpop.f32.mrf.mxu0
    %v2505 = vadd.f32 %v2431, %v2504
    %v2506 = vand.u32 %v2387, 4294901760
    %2507 = vmatmul.f32.gmra.mxu0 %v2506
    %v2508 = vpop.f32.mrf.mxu0
    %v2509 = vadd.f32 %v2439, %v2508
    %v2510 = vand.u32 %v2390, 4294901760
    %2511 = vmatmul.f32.gmra.mxu0 %v2510
    %v2512 = vpop.f32.mrf.mxu0
    %v2513 = vadd.f32 %v2447, %v2512
    %v2514 = vand.u32 %v2393, 4294901760
    %2515 = vmatmul.f32.gmra.mxu0 %v2514
    %v2516 = vpop.f32.mrf.mxu0
    %v2517 = vadd.f32 %v2455, %v2516
    %2518 = vdwg.mxu0
    %2519 = vmatpush.msra.mxu0 0.0
    %2520 = vmatpush.msra.mxu0 0.0
    %2521 = vmatpush.msra.mxu0 0.0
    %2522 = vmatpush.msra.mxu0 0.0
    %2523 = vmatpush.msra.mxu0 0.0
    %2524 = vmatpush.msra.mxu0 0.0
    %2525 = vmatpush.msra.mxu0 0.0
    %2526 = vmatpush.msra.mxu0 0.0
    %2527 = vmatpush.msra.mxu0 0.0
    %2528 = vmatpush.msra.mxu0 0.0
    %2529 = vmatpush.msra.mxu0 0.0
    %v2530 = vand.u32 %v2374, 4294901760
    %v2531 = vsub.f32 %v2374, %v2530
    %2532 = vmatpush.msra.mxu0 %v2531
    %v2533 = vand.u32 %v2372, 4294901760
    %v2534 = vsub.f32 %v2372, %v2533
    %2535 = vmatpush.msra.mxu0 %v2534
    %v2536 = vand.u32 %v2370, 4294901760
    %v2537 = vsub.f32 %v2370, %v2536
    %2538 = vmatpush.msra.mxu0 %v2537
    %v2539 = vand.u32 %v2368, 4294901760
    %v2540 = vsub.f32 %v2368, %v2539
    %2541 = vmatpush.msra.mxu0 %v2540
    %v2542 = vand.u32 %v2366, 4294901760
    %v2543 = vsub.f32 %v2366, %v2542
    %2544 = vmatpush.msra.mxu0 %v2543
    %v2545 = vand.u32 %v2381, 4294901760
    %v2546 = vsub.f32 %v2381, %v2545
    %2547 = vmatmul.f32.gmra.mxu0 %v2546
    %v2548 = vpop.f32.mrf.mxu0
    %v2549 = vadd.f32 %v2501, %v2548
    %v2550 = vand.u32 %v2384, 4294901760
    %v2551 = vsub.f32 %v2384, %v2550
    %2552 = vmatmul.f32.gmra.mxu0 %v2551
    %v2553 = vpop.f32.mrf.mxu0
    %v2554 = vadd.f32 %v2505, %v2553
    %v2555 = vand.u32 %v2387, 4294901760
    %v2556 = vsub.f32 %v2387, %v2555
    %2557 = vmatmul.f32.gmra.mxu0 %v2556
    %v2558 = vpop.f32.mrf.mxu0
    %v2559 = vadd.f32 %v2509, %v2558
    %v2560 = vand.u32 %v2390, 4294901760
    %v2561 = vsub.f32 %v2390, %v2560
    %2562 = vmatmul.f32.gmra.mxu0 %v2561
    %v2563 = vpop.f32.mrf.mxu0
    %v2564 = vadd.f32 %v2513, %v2563
    %v2565 = vand.u32 %v2393, 4294901760
    %v2566 = vsub.f32 %v2393, %v2565
    %2567 = vmatmul.f32.gmra.mxu0 %v2566
    %v2568 = vpop.f32.mrf.mxu0
    %v2569 = vadd.f32 %v2517, %v2568
    %2570 = vdwg.mxu0
    %2571 = vmatpush.msra.mxu0 0.0
    %2572 = vmatpush.msra.mxu0 0.0
    %2573 = vmatpush.msra.mxu0 0.0
    %2574 = vmatpush.msra.mxu0 0.0
    %2575 = vmatpush.msra.mxu0 0.0
    %2576 = vmatpush.msra.mxu0 0.0
    %2577 = vmatpush.msra.mxu0 0.0
    %2578 = vmatpush.msra.mxu0 0.0
    %2579 = vmatpush.msra.mxu0 0.0
    %2580 = vmatpush.msra.mxu0 0.0
    %2581 = vmatpush.msra.mxu0 0.0
    %v2582 = vand.u32 %v2374, 4294901760
    %2583 = vmatpush.msra.mxu0 %v2582
    %v2584 = vand.u32 %v2372, 4294901760
    %2585 = vmatpush.msra.mxu0 %v2584
    %v2586 = vand.u32 %v2370, 4294901760
    %2587 = vmatpush.msra.mxu0 %v2586
    %v2588 = vand.u32 %v2368, 4294901760
    %2589 = vmatpush.msra.mxu0 %v2588
    %v2590 = vand.u32 %v2366, 4294901760
    %2591 = vmatpush.msra.mxu0 %v2590
    %v2592 = vand.u32 %v2381, 4294901760
    %v2593 = vsub.f32 %v2381, %v2592
    %v2594 = vand.u32 %v2593, 4294901760
    %2595 = vmatmul.f32.gmra.mxu0 %v2594
    %v2596 = vpop.f32.mrf.mxu0
    %v2597 = vadd.f32 %v2549, %v2596
    %v2598 = vand.u32 %v2384, 4294901760
    %v2599 = vsub.f32 %v2384, %v2598
    %v2600 = vand.u32 %v2599, 4294901760
    %2601 = vmatmul.f32.gmra.mxu0 %v2600
    %v2602 = vpop.f32.mrf.mxu0
    %v2603 = vadd.f32 %v2554, %v2602
    %v2604 = vand.u32 %v2387, 4294901760
    %v2605 = vsub.f32 %v2387, %v2604
    %v2606 = vand.u32 %v2605, 4294901760
    %2607 = vmatmul.f32.gmra.mxu0 %v2606
    %v2608 = vpop.f32.mrf.mxu0
    %v2609 = vadd.f32 %v2559, %v2608
    %v2610 = vand.u32 %v2390, 4294901760
    %v2611 = vsub.f32 %v2390, %v2610
    %v2612 = vand.u32 %v2611, 4294901760
    %2613 = vmatmul.f32.gmra.mxu0 %v2612
    %v2614 = vpop.f32.mrf.mxu0
    %v2615 = vadd.f32 %v2564, %v2614
    %v2616 = vand.u32 %v2393, 4294901760
    %v2617 = vsub.f32 %v2393, %v2616
    %v2618 = vand.u32 %v2617, 4294901760
    %2619 = vmatmul.f32.gmra.mxu0 %v2618
    %v2620 = vpop.f32.mrf.mxu0
    %v2621 = vadd.f32 %v2569, %v2620
    %2622 = vdwg.mxu0
    %2623 = vmatpush.msra.mxu0 0.0
    %2624 = vmatpush.msra.mxu0 0.0
    %2625 = vmatpush.msra.mxu0 0.0
    %2626 = vmatpush.msra.mxu0 0.0
    %2627 = vmatpush.msra.mxu0 0.0
    %2628 = vmatpush.msra.mxu0 0.0
    %2629 = vmatpush.msra.mxu0 0.0
    %2630 = vmatpush.msra.mxu0 0.0
    %2631 = vmatpush.msra.mxu0 0.0
    %2632 = vmatpush.msra.mxu0 0.0
    %2633 = vmatpush.msra.mxu0 0.0
    %v2634 = vand.u32 %v2374, 4294901760
    %v2635 = vsub.f32 %v2374, %v2634
    %v2636 = vand.u32 %v2635, 4294901760
    %2637 = vmatpush.msra.mxu0 %v2636
    %v2638 = vand.u32 %v2372, 4294901760
    %v2639 = vsub.f32 %v2372, %v2638
    %v2640 = vand.u32 %v2639, 4294901760
    %2641 = vmatpush.msra.mxu0 %v2640
    %v2642 = vand.u32 %v2370, 4294901760
    %v2643 = vsub.f32 %v2370, %v2642
    %v2644 = vand.u32 %v2643, 4294901760
    %2645 = vmatpush.msra.mxu0 %v2644
    %v2646 = vand.u32 %v2368, 4294901760
    %v2647 = vsub.f32 %v2368, %v2646
    %v2648 = vand.u32 %v2647, 4294901760
    %2649 = vmatpush.msra.mxu0 %v2648
    %v2650 = vand.u32 %v2366, 4294901760
    %v2651 = vsub.f32 %v2366, %v2650
    %v2652 = vand.u32 %v2651, 4294901760
    %2653 = vmatpush.msra.mxu0 %v2652
    %v2654 = vand.u32 %v2381, 4294901760
    %2655 = vmatmul.f32.gmra.mxu0 %v2654
    %v2656 = vpop.f32.mrf.mxu0
    %v2657 = vadd.f32 %v2597, %v2656
    %v2658 = vand.u32 %v2384, 4294901760
    %2659 = vmatmul.f32.gmra.mxu0 %v2658
    %v2660 = vpop.f32.mrf.mxu0
    %v2661 = vadd.f32 %v2603, %v2660
    %v2662 = vand.u32 %v2387, 4294901760
    %2663 = vmatmul.f32.gmra.mxu0 %v2662
    %v2664 = vpop.f32.mrf.mxu0
    %v2665 = vadd.f32 %v2609, %v2664
    %v2666 = vand.u32 %v2390, 4294901760
    %2667 = vmatmul.f32.gmra.mxu0 %v2666
    %v2668 = vpop.f32.mrf.mxu0
    %v2669 = vadd.f32 %v2615, %v2668
    %v2670 = vand.u32 %v2393, 4294901760
    %2671 = vmatmul.f32.gmra.mxu0 %v2670
    %v2672 = vpop.f32.mrf.mxu0
    %v2673 = vadd.f32 %v2621, %v2672
    %2674 = vdwg.mxu0
    %2675 = vmatpush.msra.mxu0 0.0
    %2676 = vmatpush.msra.mxu0 0.0
    %2677 = vmatpush.msra.mxu0 0.0
    %2678 = vmatpush.msra.mxu0 0.0
    %2679 = vmatpush.msra.mxu0 0.0
    %2680 = vmatpush.msra.mxu0 0.0
    %2681 = vmatpush.msra.mxu0 0.0
    %2682 = vmatpush.msra.mxu0 0.0
    %2683 = vmatpush.msra.mxu0 0.0
    %2684 = vmatpush.msra.mxu0 0.0
    %2685 = vmatpush.msra.mxu0 0.0
    %v2686 = vand.u32 %v2374, 4294901760
    %2687 = vmatpush.msra.mxu0 %v2686
    %v2688 = vand.u32 %v2372, 4294901760
    %2689 = vmatpush.msra.mxu0 %v2688
    %v2690 = vand.u32 %v2370, 4294901760
    %2691 = vmatpush.msra.mxu0 %v2690
    %v2692 = vand.u32 %v2368, 4294901760
    %2693 = vmatpush.msra.mxu0 %v2692
    %v2694 = vand.u32 %v2366, 4294901760
    %2695 = vmatpush.msra.mxu0 %v2694
    %v2696 = vand.u32 %v2381, 4294901760
    %2697 = vmatmul.f32.gmra.mxu0 %v2696
    %v2698 = vpop.f32.mrf.mxu0
    %v2699 = vadd.f32 %v2657, %v2698
    %v2700 = vand.u32 %v2384, 4294901760
    %2701 = vmatmul.f32.gmra.mxu0 %v2700
    %v2702 = vpop.f32.mrf.mxu0
    %v2703 = vadd.f32 %v2661, %v2702
    %v2704 = vand.u32 %v2387, 4294901760
    %2705 = vmatmul.f32.gmra.mxu0 %v2704
    %v2706 = vpop.f32.mrf.mxu0
    %v2707 = vadd.f32 %v2665, %v2706
    %v2708 = vand.u32 %v2390, 4294901760
    %2709 = vmatmul.f32.gmra.mxu0 %v2708
    %v2710 = vpop.f32.mrf.mxu0
    %v2711 = vadd.f32 %v2669, %v2710
    %v2712 = vand.u32 %v2393, 4294901760
    %2713 = vmatmul.f32.gmra.mxu0 %v2712
    %v2714 = vpop.f32.mrf.mxu0
    %v2715 = vadd.f32 %v2673, %v2714
    %2716 = vdwg.mxu0
    %2717 = vrot.lane.b32.xlu0 %v1029, 112
    %v2718 = vpop.permute.xlu0 %2717
    %2719 = vrot.lane.b32.xlu0 %v1033, 112
    %v2720 = vpop.permute.xlu0 %2719
    %2721 = vrot.lane.b32.xlu0 %v1037, 112
    %v2722 = vpop.permute.xlu0 %2721
    %2723 = vrot.lane.b32.xlu0 %v1041, 112
    %v2724 = vpop.permute.xlu0 %2723
    %2725 = vrot.lane.b32.xlu0 %v1045, 112
    %v2726 = vpop.permute.xlu0 %2725
    %2727 = vrot.lane.b32.xlu0 %v1029, 80
    %v2728 = vpop.permute.xlu0 %2727
    %2729 = vrot.lane.b32.xlu0 %v1033, 80
    %v2730 = vpop.permute.xlu0 %2729
    %2731 = vrot.lane.b32.xlu0 %v1037, 80
    %v2732 = vpop.permute.xlu0 %2731
    %2733 = vrot.lane.b32.xlu0 %v1041, 80
    %v2734 = vpop.permute.xlu0 %2733
    %2735 = vrot.lane.b32.xlu0 %v1045, 80
    %v2736 = vpop.permute.xlu0 %2735
    %v2737 = vsel %vm1067, %v2718, 0
    %v2739 = vsel %vm1067, %v2720, 0
    %v2741 = vsel %vm1067, %v2722, 0
    %v2743 = vsel %vm1067, %v2724, 0
    %v2745 = vsel %vm1067, %v2726, 0
    %v2747 = vsel %vm1067, %v2728, 0
    %v2749 = vsel %vm1067, %v2730, 0
    %v2751 = vsel %vm1067, %v2732, 0
    %v2753 = vsel %vm1067, %v2734, 0
    %v2755 = vsel %vm1067, %v2736, 0
    %2757 = vmatpush.xpose.msra.mxu0 0.0
    %2758 = vmatpush.xpose.msra.mxu0 0.0
    %2759 = vmatpush.xpose.msra.mxu0 0.0
    %2760 = vmatpush.xpose.msra.mxu0 0.0
    %2761 = vmatpush.xpose.msra.mxu0 0.0
    %2762 = vmatpush.xpose.msra.mxu0 0.0
    %2763 = vmatpush.xpose.msra.mxu0 0.0
    %2764 = vmatpush.xpose.msra.mxu0 0.0
    %2765 = vmatpush.xpose.msra.mxu0 0.0
    %2766 = vmatpush.xpose.msra.mxu0 0.0
    %2767 = vmatpush.xpose.msra.mxu0 0.0
    %v2768 = vand.u32 %v2755, 4294901760
    %2769 = vmatpush.xpose.msra.mxu0 %v2768
    %v2770 = vand.u32 %v2753, 4294901760
    %2771 = vmatpush.xpose.msra.mxu0 %v2770
    %v2772 = vand.u32 %v2751, 4294901760
    %2773 = vmatpush.xpose.msra.mxu0 %v2772
    %v2774 = vand.u32 %v2749, 4294901760
    %2775 = vmatpush.xpose.msra.mxu0 %v2774
    %v2776 = vand.u32 %v2747, 4294901760
    %2777 = vmatpush.xpose.msra.mxu0 %v2776
    %v2778 = vand.u32 %v2737, 4294901760
    %v2779 = vsub.f32 %v2737, %v2778
    %v2780 = vand.u32 %v2779, 4294901760
    %v2781 = vsub.f32 %v2779, %v2780
    %v2782 = vand.u32 %v2781, 4294901760
    %2783 = vmatmul.f32.gmra.mxu0 %v2782
    %v2784 = vpop.f32.mrf.mxu0
    %v2785 = vadd.f32 %v1047, %v2784
    %v2786 = vand.u32 %v2739, 4294901760
    %v2787 = vsub.f32 %v2739, %v2786
    %v2788 = vand.u32 %v2787, 4294901760
    %v2789 = vsub.f32 %v2787, %v2788
    %v2790 = vand.u32 %v2789, 4294901760
    %2791 = vmatmul.f32.gmra.mxu0 %v2790
    %v2792 = vpop.f32.mrf.mxu0
    %v2793 = vadd.f32 %v1048, %v2792
    %v2794 = vand.u32 %v2741, 4294901760
    %v2795 = vsub.f32 %v2741, %v2794
    %v2796 = vand.u32 %v2795, 4294901760
    %v2797 = vsub.f32 %v2795, %v2796
    %v2798 = vand.u32 %v2797, 4294901760
    %2799 = vmatmul.f32.gmra.mxu0 %v2798
    %v2800 = vpop.f32.mrf.mxu0
    %v2801 = vadd.f32 %v1049, %v2800
    %v2802 = vand.u32 %v2743, 4294901760
    %v2803 = vsub.f32 %v2743, %v2802
    %v2804 = vand.u32 %v2803, 4294901760
    %v2805 = vsub.f32 %v2803, %v2804
    %v2806 = vand.u32 %v2805, 4294901760
    %2807 = vmatmul.f32.gmra.mxu0 %v2806
    %v2808 = vpop.f32.mrf.mxu0
    %v2809 = vadd.f32 %v1050, %v2808
    %v2810 = vand.u32 %v2745, 4294901760
    %v2811 = vsub.f32 %v2745, %v2810
    %v2812 = vand.u32 %v2811, 4294901760
    %v2813 = vsub.f32 %v2811, %v2812
    %v2814 = vand.u32 %v2813, 4294901760
    %2815 = vmatmul.f32.gmra.mxu0 %v2814
    %v2816 = vpop.f32.mrf.mxu0
    %v2817 = vadd.f32 %v1051, %v2816
    %2818 = vdwg.mxu0
    %2819 = vmatpush.xpose.msra.mxu0 0.0
    %2820 = vmatpush.xpose.msra.mxu0 0.0
    %2821 = vmatpush.xpose.msra.mxu0 0.0
    %2822 = vmatpush.xpose.msra.mxu0 0.0
    %2823 = vmatpush.xpose.msra.mxu0 0.0
    %2824 = vmatpush.xpose.msra.mxu0 0.0
    %2825 = vmatpush.xpose.msra.mxu0 0.0
    %2826 = vmatpush.xpose.msra.mxu0 0.0
    %2827 = vmatpush.xpose.msra.mxu0 0.0
    %2828 = vmatpush.xpose.msra.mxu0 0.0
    %2829 = vmatpush.xpose.msra.mxu0 0.0
    %v2830 = vand.u32 %v2755, 4294901760
    %v2831 = vsub.f32 %v2755, %v2830
    %v2832 = vand.u32 %v2831, 4294901760
    %v2833 = vsub.f32 %v2831, %v2832
    %v2834 = vand.u32 %v2833, 4294901760
    %2835 = vmatpush.xpose.msra.mxu0 %v2834
    %v2836 = vand.u32 %v2753, 4294901760
    %v2837 = vsub.f32 %v2753, %v2836
    %v2838 = vand.u32 %v2837, 4294901760
    %v2839 = vsub.f32 %v2837, %v2838
    %v2840 = vand.u32 %v2839, 4294901760
    %2841 = vmatpush.xpose.msra.mxu0 %v2840
    %v2842 = vand.u32 %v2751, 4294901760
    %v2843 = vsub.f32 %v2751, %v2842
    %v2844 = vand.u32 %v2843, 4294901760
    %v2845 = vsub.f32 %v2843, %v2844
    %v2846 = vand.u32 %v2845, 4294901760
    %2847 = vmatpush.xpose.msra.mxu0 %v2846
    %v2848 = vand.u32 %v2749, 4294901760
    %v2849 = vsub.f32 %v2749, %v2848
    %v2850 = vand.u32 %v2849, 4294901760
    %v2851 = vsub.f32 %v2849, %v2850
    %v2852 = vand.u32 %v2851, 4294901760
    %2853 = vmatpush.xpose.msra.mxu0 %v2852
    %v2854 = vand.u32 %v2747, 4294901760
    %v2855 = vsub.f32 %v2747, %v2854
    %v2856 = vand.u32 %v2855, 4294901760
    %v2857 = vsub.f32 %v2855, %v2856
    %v2858 = vand.u32 %v2857, 4294901760
    %2859 = vmatpush.xpose.msra.mxu0 %v2858
    %v2860 = vand.u32 %v2737, 4294901760
    %2861 = vmatmul.f32.gmra.mxu0 %v2860
    %v2862 = vpop.f32.mrf.mxu0
    %v2863 = vadd.f32 %v2785, %v2862
    %v2864 = vand.u32 %v2739, 4294901760
    %2865 = vmatmul.f32.gmra.mxu0 %v2864
    %v2866 = vpop.f32.mrf.mxu0
    %v2867 = vadd.f32 %v2793, %v2866
    %v2868 = vand.u32 %v2741, 4294901760
    %2869 = vmatmul.f32.gmra.mxu0 %v2868
    %v2870 = vpop.f32.mrf.mxu0
    %v2871 = vadd.f32 %v2801, %v2870
    %v2872 = vand.u32 %v2743, 4294901760
    %2873 = vmatmul.f32.gmra.mxu0 %v2872
    %v2874 = vpop.f32.mrf.mxu0
    %v2875 = vadd.f32 %v2809, %v2874
    %v2876 = vand.u32 %v2745, 4294901760
    %2877 = vmatmul.f32.gmra.mxu0 %v2876
    %v2878 = vpop.f32.mrf.mxu0
    %v2879 = vadd.f32 %v2817, %v2878
    %2880 = vdwg.mxu0
    %2881 = vmatpush.xpose.msra.mxu0 0.0
    %2882 = vmatpush.xpose.msra.mxu0 0.0
    %2883 = vmatpush.xpose.msra.mxu0 0.0
    %2884 = vmatpush.xpose.msra.mxu0 0.0
    %2885 = vmatpush.xpose.msra.mxu0 0.0
    %2886 = vmatpush.xpose.msra.mxu0 0.0
    %2887 = vmatpush.xpose.msra.mxu0 0.0
    %2888 = vmatpush.xpose.msra.mxu0 0.0
    %2889 = vmatpush.xpose.msra.mxu0 0.0
    %2890 = vmatpush.xpose.msra.mxu0 0.0
    %2891 = vmatpush.xpose.msra.mxu0 0.0
    %v2892 = vand.u32 %v2755, 4294901760
    %v2893 = vsub.f32 %v2755, %v2892
    %2894 = vmatpush.xpose.msra.mxu0 %v2893
    %v2895 = vand.u32 %v2753, 4294901760
    %v2896 = vsub.f32 %v2753, %v2895
    %2897 = vmatpush.xpose.msra.mxu0 %v2896
    %v2898 = vand.u32 %v2751, 4294901760
    %v2899 = vsub.f32 %v2751, %v2898
    %2900 = vmatpush.xpose.msra.mxu0 %v2899
    %v2901 = vand.u32 %v2749, 4294901760
    %v2902 = vsub.f32 %v2749, %v2901
    %2903 = vmatpush.xpose.msra.mxu0 %v2902
    %v2904 = vand.u32 %v2747, 4294901760
    %v2905 = vsub.f32 %v2747, %v2904
    %2906 = vmatpush.xpose.msra.mxu0 %v2905
    %v2907 = vand.u32 %v2737, 4294901760
    %v2908 = vsub.f32 %v2737, %v2907
    %2909 = vmatmul.f32.gmra.mxu0 %v2908
    %v2910 = vpop.f32.mrf.mxu0
    %v2911 = vadd.f32 %v2863, %v2910
    %v2912 = vand.u32 %v2739, 4294901760
    %v2913 = vsub.f32 %v2739, %v2912
    %2914 = vmatmul.f32.gmra.mxu0 %v2913
    %v2915 = vpop.f32.mrf.mxu0
    %v2916 = vadd.f32 %v2867, %v2915
    %v2917 = vand.u32 %v2741, 4294901760
    %v2918 = vsub.f32 %v2741, %v2917
    %2919 = vmatmul.f32.gmra.mxu0 %v2918
    %v2920 = vpop.f32.mrf.mxu0
    %v2921 = vadd.f32 %v2871, %v2920
    %v2922 = vand.u32 %v2743, 4294901760
    %v2923 = vsub.f32 %v2743, %v2922
    %2924 = vmatmul.f32.gmra.mxu0 %v2923
    %v2925 = vpop.f32.mrf.mxu0
    %v2926 = vadd.f32 %v2875, %v2925
    %v2927 = vand.u32 %v2745, 4294901760
    %v2928 = vsub.f32 %v2745, %v2927
    %2929 = vmatmul.f32.gmra.mxu0 %v2928
    %v2930 = vpop.f32.mrf.mxu0
    %v2931 = vadd.f32 %v2879, %v2930
    %2932 = vdwg.mxu0
    %2933 = vmatpush.xpose.msra.mxu0 0.0
    %2934 = vmatpush.xpose.msra.mxu0 0.0
    %2935 = vmatpush.xpose.msra.mxu0 0.0
    %2936 = vmatpush.xpose.msra.mxu0 0.0
    %2937 = vmatpush.xpose.msra.mxu0 0.0
    %2938 = vmatpush.xpose.msra.mxu0 0.0
    %2939 = vmatpush.xpose.msra.mxu0 0.0
    %2940 = vmatpush.xpose.msra.mxu0 0.0
    %2941 = vmatpush.xpose.msra.mxu0 0.0
    %2942 = vmatpush.xpose.msra.mxu0 0.0
    %2943 = vmatpush.xpose.msra.mxu0 0.0
    %v2944 = vand.u32 %v2755, 4294901760
    %2945 = vmatpush.xpose.msra.mxu0 %v2944
    %v2946 = vand.u32 %v2753, 4294901760
    %2947 = vmatpush.xpose.msra.mxu0 %v2946
    %v2948 = vand.u32 %v2751, 4294901760
    %2949 = vmatpush.xpose.msra.mxu0 %v2948
    %v2950 = vand.u32 %v2749, 4294901760
    %2951 = vmatpush.xpose.msra.mxu0 %v2950
    %v2952 = vand.u32 %v2747, 4294901760
    %2953 = vmatpush.xpose.msra.mxu0 %v2952
    %v2954 = vand.u32 %v2737, 4294901760
    %v2955 = vsub.f32 %v2737, %v2954
    %v2956 = vand.u32 %v2955, 4294901760
    %2957 = vmatmul.f32.gmra.mxu0 %v2956
    %v2958 = vpop.f32.mrf.mxu0
    %v2959 = vadd.f32 %v2911, %v2958
    %v2960 = vand.u32 %v2739, 4294901760
    %v2961 = vsub.f32 %v2739, %v2960
    %v2962 = vand.u32 %v2961, 4294901760
    %2963 = vmatmul.f32.gmra.mxu0 %v2962
    %v2964 = vpop.f32.mrf.mxu0
    %v2965 = vadd.f32 %v2916, %v2964
    %v2966 = vand.u32 %v2741, 4294901760
    %v2967 = vsub.f32 %v2741, %v2966
    %v2968 = vand.u32 %v2967, 4294901760
    %2969 = vmatmul.f32.gmra.mxu0 %v2968
    %v2970 = vpop.f32.mrf.mxu0
    %v2971 = vadd.f32 %v2921, %v2970
    %v2972 = vand.u32 %v2743, 4294901760
    %v2973 = vsub.f32 %v2743, %v2972
    %v2974 = vand.u32 %v2973, 4294901760
    %2975 = vmatmul.f32.gmra.mxu0 %v2974
    %v2976 = vpop.f32.mrf.mxu0
    %v2977 = vadd.f32 %v2926, %v2976
    %v2978 = vand.u32 %v2745, 4294901760
    %v2979 = vsub.f32 %v2745, %v2978
    %v2980 = vand.u32 %v2979, 4294901760
    %2981 = vmatmul.f32.gmra.mxu0 %v2980
    %v2982 = vpop.f32.mrf.mxu0
    %v2983 = vadd.f32 %v2931, %v2982
    %2984 = vdwg.mxu0
    %2985 = vmatpush.xpose.msra.mxu0 0.0
    %2986 = vmatpush.xpose.msra.mxu0 0.0
    %2987 = vmatpush.xpose.msra.mxu0 0.0
    %2988 = vmatpush.xpose.msra.mxu0 0.0
    %2989 = vmatpush.xpose.msra.mxu0 0.0
    %2990 = vmatpush.xpose.msra.mxu0 0.0
    %2991 = vmatpush.xpose.msra.mxu0 0.0
    %2992 = vmatpush.xpose.msra.mxu0 0.0
    %2993 = vmatpush.xpose.msra.mxu0 0.0
    %2994 = vmatpush.xpose.msra.mxu0 0.0
    %2995 = vmatpush.xpose.msra.mxu0 0.0
    %v2996 = vand.u32 %v2755, 4294901760
    %v2997 = vsub.f32 %v2755, %v2996
    %v2998 = vand.u32 %v2997, 4294901760
    %2999 = vmatpush.xpose.msra.mxu0 %v2998
    %v3000 = vand.u32 %v2753, 4294901760
    %v3001 = vsub.f32 %v2753, %v3000
    %v3002 = vand.u32 %v3001, 4294901760
    %3003 = vmatpush.xpose.msra.mxu0 %v3002
    %v3004 = vand.u32 %v2751, 4294901760
    %v3005 = vsub.f32 %v2751, %v3004
    %v3006 = vand.u32 %v3005, 4294901760
    %3007 = vmatpush.xpose.msra.mxu0 %v3006
    %v3008 = vand.u32 %v2749, 4294901760
    %v3009 = vsub.f32 %v2749, %v3008
    %v3010 = vand.u32 %v3009, 4294901760
    %3011 = vmatpush.xpose.msra.mxu0 %v3010
    %v3012 = vand.u32 %v2747, 4294901760
    %v3013 = vsub.f32 %v2747, %v3012
    %v3014 = vand.u32 %v3013, 4294901760
    %3015 = vmatpush.xpose.msra.mxu0 %v3014
    %v3016 = vand.u32 %v2737, 4294901760
    %3017 = vmatmul.f32.gmra.mxu0 %v3016
    %v3018 = vpop.f32.mrf.mxu0
    %v3019 = vadd.f32 %v2959, %v3018
    %v3020 = vand.u32 %v2739, 4294901760
    %3021 = vmatmul.f32.gmra.mxu0 %v3020
    %v3022 = vpop.f32.mrf.mxu0
    %v3023 = vadd.f32 %v2965, %v3022
    %v3024 = vand.u32 %v2741, 4294901760
    %3025 = vmatmul.f32.gmra.mxu0 %v3024
    %v3026 = vpop.f32.mrf.mxu0
    %v3027 = vadd.f32 %v2971, %v3026
    %v3028 = vand.u32 %v2743, 4294901760
    %3029 = vmatmul.f32.gmra.mxu0 %v3028
    %v3030 = vpop.f32.mrf.mxu0
    %v3031 = vadd.f32 %v2977, %v3030
    %v3032 = vand.u32 %v2745, 4294901760
    %3033 = vmatmul.f32.gmra.mxu0 %v3032
    %v3034 = vpop.f32.mrf.mxu0
    %v3035 = vadd.f32 %v2983, %v3034
    %3036 = vdwg.mxu0
    %3037 = vmatpush.xpose.msra.mxu0 0.0
    %3038 = vmatpush.xpose.msra.mxu0 0.0
    %3039 = vmatpush.xpose.msra.mxu0 0.0
    %3040 = vmatpush.xpose.msra.mxu0 0.0
    %3041 = vmatpush.xpose.msra.mxu0 0.0
    %3042 = vmatpush.xpose.msra.mxu0 0.0
    %3043 = vmatpush.xpose.msra.mxu0 0.0
    %3044 = vmatpush.xpose.msra.mxu0 0.0
    %3045 = vmatpush.xpose.msra.mxu0 0.0
    %3046 = vmatpush.xpose.msra.mxu0 0.0
    %3047 = vmatpush.xpose.msra.mxu0 0.0
    %v3048 = vand.u32 %v2755, 4294901760
    %3049 = vmatpush.xpose.msra.mxu0 %v3048
    %v3050 = vand.u32 %v2753, 4294901760
    %3051 = vmatpush.xpose.msra.mxu0 %v3050
    %v3052 = vand.u32 %v2751, 4294901760
    %3053 = vmatpush.xpose.msra.mxu0 %v3052
    %v3054 = vand.u32 %v2749, 4294901760
    %3055 = vmatpush.xpose.msra.mxu0 %v3054
    %v3056 = vand.u32 %v2747, 4294901760
    %3057 = vmatpush.xpose.msra.mxu0 %v3056
    %v3058 = vand.u32 %v2737, 4294901760
    %3059 = vmatmul.f32.gmra.mxu0 %v3058
    %v3060 = vpop.f32.mrf.mxu0
    %v3061 = vadd.f32 %v3019, %v3060
    %v3062 = vand.u32 %v2739, 4294901760
    %3063 = vmatmul.f32.gmra.mxu0 %v3062
    %v3064 = vpop.f32.mrf.mxu0
    %v3065 = vadd.f32 %v3023, %v3064
    %v3066 = vand.u32 %v2741, 4294901760
    %3067 = vmatmul.f32.gmra.mxu0 %v3066
    %v3068 = vpop.f32.mrf.mxu0
    %v3069 = vadd.f32 %v3027, %v3068
    %v3070 = vand.u32 %v2743, 4294901760
    %3071 = vmatmul.f32.gmra.mxu0 %v3070
    %v3072 = vpop.f32.mrf.mxu0
    %v3073 = vadd.f32 %v3031, %v3072
    %v3074 = vand.u32 %v2745, 4294901760
    %3075 = vmatmul.f32.gmra.mxu0 %v3074
    %v3076 = vpop.f32.mrf.mxu0
    %v3077 = vadd.f32 %v3035, %v3076
    %3078 = vdwg.mxu0
    %v3079 = vsel %vm1410, %v3061, -inf
    %3080 = vmax.xlane.f32.xlu0 %v3079
    %v3081 = vpop.xlane.xlu0 %3080
    %v3082 = vsel %vm1410, %v3065, -inf
    %3083 = vmax.xlane.f32.xlu0 %v3082
    %v3084 = vpop.xlane.xlu0 %3083
    %v3085 = vsel %vm1410, %v3069, -inf
    %3086 = vmax.xlane.f32.xlu0 %v3085
    %v3087 = vpop.xlane.xlu0 %3086
    %v3088 = vsel %vm1410, %v3073, -inf
    %3089 = vmax.xlane.f32.xlu0 %v3088
    %v3090 = vpop.xlane.xlu0 %3089
    %v3091 = vsel %vm1410, %v3077, -inf
    %3092 = vmax.xlane.f32.xlu0 %v3091
    %v3093 = vpop.xlane.xlu0 %3092
    %v3094 = vsub.f32 %v3061, %v3081
    %v3095 = vsub.f32 %v3065, %v3084
    %v3096 = vsub.f32 %v3069, %v3087
    %v3097 = vsub.f32 %v3073, %v3090
    %v3098 = vsub.f32 %v3077, %v3093
    %v3099 = vmul.f32 %v3094, 1.442695
    %v3100 = vpow.pop %v3099
    %v3101 = vmul.f32 %v3095, 1.442695
    %v3102 = vpow.pop %v3101
    %v3103 = vmul.f32 %v3096, 1.442695
    %v3104 = vpow.pop %v3103
    %v3105 = vmul.f32 %v3097, 1.442695
    %v3106 = vpow.pop %v3105
    %v3107 = vmul.f32 %v3098, 1.442695
    %v3108 = vpow.pop %v3107
    %v3109 = vsel %vm1410, %v3100, 0.0
    %3110 = vadd.xlane.f32.xlu0 %v3109
    %v3111 = vpop.xlane.xlu0 %3110
    %v3112 = vsel %vm1410, %v3102, 0.0
    %3113 = vadd.xlane.f32.xlu0 %v3112
    %v3114 = vpop.xlane.xlu0 %3113
    %v3115 = vsel %vm1410, %v3104, 0.0
    %3116 = vadd.xlane.f32.xlu0 %v3115
    %v3117 = vpop.xlane.xlu0 %3116
    %v3118 = vsel %vm1410, %v3106, 0.0
    %3119 = vadd.xlane.f32.xlu0 %v3118
    %v3120 = vpop.xlane.xlu0 %3119
    %v3121 = vsel %vm1410, %v3108, 0.0
    %3122 = vadd.xlane.f32.xlu0 %v3121
    %v3123 = vpop.xlane.xlu0 %3122
    %v3124 = vrcp.pop %v3111
    %v3125 = vmul.f32 %v3111, %v3124
    %v3126 = vsub.f32 1.0, %v3125
    %v3127 = vmul.f32 %v3124, %v3126
    %v3128 = vadd.f32 %v3124, %v3127
    %vm3129 = vweird.f32 %v3111
    %vm3130 = vweird.f32 %v3124
    %vm3131 = vmor %vm3129, %vm3130
    %v3132 = vsel %vm3131, %v3124, %v3128
    %v3133 = vand.u32 2147483647, %v3111
    %vm3134 = vcmp.eq.f32.partialorder %v3133, 8.507059e+37
    %v3135 = vand.u32 %v3111, 2147483648
    %v3136 = vor.u32 1.1754944e-38, %v3135
    %v3137 = vsel %vm3134, %v3136, %v3132
    %v3138 = vmul.f32 %v3100, %v3137
    %v3139 = vrcp.pop %v3114
    %v3140 = vmul.f32 %v3114, %v3139
    %v3141 = vsub.f32 1.0, %v3140
    %v3142 = vmul.f32 %v3139, %v3141
    %v3143 = vadd.f32 %v3139, %v3142
    %vm3144 = vweird.f32 %v3114
    %vm3145 = vweird.f32 %v3139
    %vm3146 = vmor %vm3144, %vm3145
    %v3147 = vsel %vm3146, %v3139, %v3143
    %v3148 = vand.u32 2147483647, %v3114
    %vm3149 = vcmp.eq.f32.partialorder %v3148, 8.507059e+37
    %v3150 = vand.u32 %v3114, 2147483648
    %v3151 = vor.u32 1.1754944e-38, %v3150
    %v3152 = vsel %vm3149, %v3151, %v3147
    %v3153 = vmul.f32 %v3102, %v3152
    %v3154 = vrcp.pop %v3117
    %v3155 = vmul.f32 %v3117, %v3154
    %v3156 = vsub.f32 1.0, %v3155
    %v3157 = vmul.f32 %v3154, %v3156
    %v3158 = vadd.f32 %v3154, %v3157
    %vm3159 = vweird.f32 %v3117
    %vm3160 = vweird.f32 %v3154
    %vm3161 = vmor %vm3159, %vm3160
    %v3162 = vsel %vm3161, %v3154, %v3158
    %v3163 = vand.u32 2147483647, %v3117
    %vm3164 = vcmp.eq.f32.partialorder %v3163, 8.507059e+37
    %v3165 = vand.u32 %v3117, 2147483648
    %v3166 = vor.u32 1.1754944e-38, %v3165
    %v3167 = vsel %vm3164, %v3166, %v3162
    %v3168 = vmul.f32 %v3104, %v3167
    %v3169 = vrcp.pop %v3120
    %v3170 = vmul.f32 %v3120, %v3169
    %v3171 = vsub.f32 1.0, %v3170
    %v3172 = vmul.f32 %v3169, %v3171
    %v3173 = vadd.f32 %v3169, %v3172
    %vm3174 = vweird.f32 %v3120
    %vm3175 = vweird.f32 %v3169
    %vm3176 = vmor %vm3174, %vm3175
    %v3177 = vsel %vm3176, %v3169, %v3173
    %v3178 = vand.u32 2147483647, %v3120
    %vm3179 = vcmp.eq.f32.partialorder %v3178, 8.507059e+37
    %v3180 = vand.u32 %v3120, 2147483648
    %v3181 = vor.u32 1.1754944e-38, %v3180
    %v3182 = vsel %vm3179, %v3181, %v3177
    %v3183 = vmul.f32 %v3106, %v3182
    %v3184 = vrcp.pop %v3123
    %v3185 = vmul.f32 %v3123, %v3184
    %v3186 = vsub.f32 1.0, %v3185
    %v3187 = vmul.f32 %v3184, %v3186
    %v3188 = vadd.f32 %v3184, %v3187
    %vm3189 = vweird.f32 %v3123
    %vm3190 = vweird.f32 %v3184
    %vm3191 = vmor %vm3189, %vm3190
    %v3192 = vsel %vm3191, %v3184, %v3188
    %v3193 = vand.u32 2147483647, %v3123
    %vm3194 = vcmp.eq.f32.partialorder %v3193, 8.507059e+37
    %v3195 = vand.u32 %v3123, 2147483648
    %v3196 = vor.u32 1.1754944e-38, %v3195
    %v3197 = vsel %vm3194, %v3196, %v3192
    %v3198 = vmul.f32 %v3108, %v3197
    %3199 = vrot.lane.b32.xlu0 %v1029, 48
    %v3200 = vpop.permute.xlu0 %3199
    %3201 = vrot.lane.b32.xlu0 %v1033, 48
    %v3202 = vpop.permute.xlu0 %3201
    %3203 = vrot.lane.b32.xlu0 %v1037, 48
    %v3204 = vpop.permute.xlu0 %3203
    %3205 = vrot.lane.b32.xlu0 %v1041, 48
    %v3206 = vpop.permute.xlu0 %3205
    %3207 = vrot.lane.b32.xlu0 %v1045, 48
    %v3208 = vpop.permute.xlu0 %3207
    %v3215 = vsel %vm1410, %v3138, 0
    %v3218 = vsel %vm1410, %v3153, 0
    %v3221 = vsel %vm1410, %v3168, 0
    %v3224 = vsel %vm1410, %v3183, 0
    %v3227 = vsel %vm1410, %v3198, 0
    %3229 = vmatpush.msra.mxu0 0.0
    %3230 = vmatpush.msra.mxu0 0.0
    %3231 = vmatpush.msra.mxu0 0.0
    %3232 = vmatpush.msra.mxu0 0.0
    %3233 = vmatpush.msra.mxu0 0.0
    %3234 = vmatpush.msra.mxu0 0.0
    %3235 = vmatpush.msra.mxu0 0.0
    %3236 = vmatpush.msra.mxu0 0.0
    %3237 = vmatpush.msra.mxu0 0.0
    %3238 = vmatpush.msra.mxu0 0.0
    %3239 = vmatpush.msra.mxu0 0.0
    %v3240 = vand.u32 %v3208, 4294901760
    %3241 = vmatpush.msra.mxu0 %v3240
    %v3242 = vand.u32 %v3206, 4294901760
    %3243 = vmatpush.msra.mxu0 %v3242
    %v3244 = vand.u32 %v3204, 4294901760
    %3245 = vmatpush.msra.mxu0 %v3244
    %v3246 = vand.u32 %v3202, 4294901760
    %3247 = vmatpush.msra.mxu0 %v3246
    %v3248 = vand.u32 %v3200, 4294901760
    %3249 = vmatpush.msra.mxu0 %v3248
    %v3250 = vand.u32 %v3215, 4294901760
    %v3251 = vsub.f32 %v3215, %v3250
    %v3252 = vand.u32 %v3251, 4294901760
    %v3253 = vsub.f32 %v3251, %v3252
    %v3254 = vand.u32 %v3253, 4294901760
    %3255 = vmatmul.f32.gmra.mxu0 %v3254
    %v3256 = vpop.f32.mrf.mxu0
    %v3257 = vadd.f32 0.0, %v3256
    %v3258 = vand.u32 %v3218, 4294901760
    %v3259 = vsub.f32 %v3218, %v3258
    %v3260 = vand.u32 %v3259, 4294901760
    %v3261 = vsub.f32 %v3259, %v3260
    %v3262 = vand.u32 %v3261, 4294901760
    %3263 = vmatmul.f32.gmra.mxu0 %v3262
    %v3264 = vpop.f32.mrf.mxu0
    %v3265 = vadd.f32 0.0, %v3264
    %v3266 = vand.u32 %v3221, 4294901760
    %v3267 = vsub.f32 %v3221, %v3266
    %v3268 = vand.u32 %v3267, 4294901760
    %v3269 = vsub.f32 %v3267, %v3268
    %v3270 = vand.u32 %v3269, 4294901760
    %3271 = vmatmul.f32.gmra.mxu0 %v3270
    %v3272 = vpop.f32.mrf.mxu0
    %v3273 = vadd.f32 0.0, %v3272
    %v3274 = vand.u32 %v3224, 4294901760
    %v3275 = vsub.f32 %v3224, %v3274
    %v3276 = vand.u32 %v3275, 4294901760
    %v3277 = vsub.f32 %v3275, %v3276
    %v3278 = vand.u32 %v3277, 4294901760
    %3279 = vmatmul.f32.gmra.mxu0 %v3278
    %v3280 = vpop.f32.mrf.mxu0
    %v3281 = vadd.f32 0.0, %v3280
    %v3282 = vand.u32 %v3227, 4294901760
    %v3283 = vsub.f32 %v3227, %v3282
    %v3284 = vand.u32 %v3283, 4294901760
    %v3285 = vsub.f32 %v3283, %v3284
    %v3286 = vand.u32 %v3285, 4294901760
    %3287 = vmatmul.f32.gmra.mxu0 %v3286
    %v3288 = vpop.f32.mrf.mxu0
    %v3289 = vadd.f32 0.0, %v3288
    %3290 = vdwg.mxu0
    %3291 = vmatpush.msra.mxu0 0.0
    %3292 = vmatpush.msra.mxu0 0.0
    %3293 = vmatpush.msra.mxu0 0.0
    %3294 = vmatpush.msra.mxu0 0.0
    %3295 = vmatpush.msra.mxu0 0.0
    %3296 = vmatpush.msra.mxu0 0.0
    %3297 = vmatpush.msra.mxu0 0.0
    %3298 = vmatpush.msra.mxu0 0.0
    %3299 = vmatpush.msra.mxu0 0.0
    %3300 = vmatpush.msra.mxu0 0.0
    %3301 = vmatpush.msra.mxu0 0.0
    %v3302 = vand.u32 %v3208, 4294901760
    %v3303 = vsub.f32 %v3208, %v3302
    %v3304 = vand.u32 %v3303, 4294901760
    %v3305 = vsub.f32 %v3303, %v3304
    %v3306 = vand.u32 %v3305, 4294901760
    %3307 = vmatpush.msra.mxu0 %v3306
    %v3308 = vand.u32 %v3206, 4294901760
    %v3309 = vsub.f32 %v3206, %v3308
    %v3310 = vand.u32 %v3309, 4294901760
    %v3311 = vsub.f32 %v3309, %v3310
    %v3312 = vand.u32 %v3311, 4294901760
    %3313 = vmatpush.msra.mxu0 %v3312
    %v3314 = vand.u32 %v3204, 4294901760
    %v3315 = vsub.f32 %v3204, %v3314
    %v3316 = vand.u32 %v3315, 4294901760
    %v3317 = vsub.f32 %v3315, %v3316
    %v3318 = vand.u32 %v3317, 4294901760
    %3319 = vmatpush.msra.mxu0 %v3318
    %v3320 = vand.u32 %v3202, 4294901760
    %v3321 = vsub.f32 %v3202, %v3320
    %v3322 = vand.u32 %v3321, 4294901760
    %v3323 = vsub.f32 %v3321, %v3322
    %v3324 = vand.u32 %v3323, 4294901760
    %3325 = vmatpush.msra.mxu0 %v3324
    %v3326 = vand.u32 %v3200, 4294901760
    %v3327 = vsub.f32 %v3200, %v3326
    %v3328 = vand.u32 %v3327, 4294901760
    %v3329 = vsub.f32 %v3327, %v3328
    %v3330 = vand.u32 %v3329, 4294901760
    %3331 = vmatpush.msra.mxu0 %v3330
    %v3332 = vand.u32 %v3215, 4294901760
    %3333 = vmatmul.f32.gmra.mxu0 %v3332
    %v3334 = vpop.f32.mrf.mxu0
    %v3335 = vadd.f32 %v3257, %v3334
    %v3336 = vand.u32 %v3218, 4294901760
    %3337 = vmatmul.f32.gmra.mxu0 %v3336
    %v3338 = vpop.f32.mrf.mxu0
    %v3339 = vadd.f32 %v3265, %v3338
    %v3340 = vand.u32 %v3221, 4294901760
    %3341 = vmatmul.f32.gmra.mxu0 %v3340
    %v3342 = vpop.f32.mrf.mxu0
    %v3343 = vadd.f32 %v3273, %v3342
    %v3344 = vand.u32 %v3224, 4294901760
    %3345 = vmatmul.f32.gmra.mxu0 %v3344
    %v3346 = vpop.f32.mrf.mxu0
    %v3347 = vadd.f32 %v3281, %v3346
    %v3348 = vand.u32 %v3227, 4294901760
    %3349 = vmatmul.f32.gmra.mxu0 %v3348
    %v3350 = vpop.f32.mrf.mxu0
    %v3351 = vadd.f32 %v3289, %v3350
    %3352 = vdwg.mxu0
    %3353 = vmatpush.msra.mxu0 0.0
    %3354 = vmatpush.msra.mxu0 0.0
    %3355 = vmatpush.msra.mxu0 0.0
    %3356 = vmatpush.msra.mxu0 0.0
    %3357 = vmatpush.msra.mxu0 0.0
    %3358 = vmatpush.msra.mxu0 0.0
    %3359 = vmatpush.msra.mxu0 0.0
    %3360 = vmatpush.msra.mxu0 0.0
    %3361 = vmatpush.msra.mxu0 0.0
    %3362 = vmatpush.msra.mxu0 0.0
    %3363 = vmatpush.msra.mxu0 0.0
    %v3364 = vand.u32 %v3208, 4294901760
    %v3365 = vsub.f32 %v3208, %v3364
    %3366 = vmatpush.msra.mxu0 %v3365
    %v3367 = vand.u32 %v3206, 4294901760
    %v3368 = vsub.f32 %v3206, %v3367
    %3369 = vmatpush.msra.mxu0 %v3368
    %v3370 = vand.u32 %v3204, 4294901760
    %v3371 = vsub.f32 %v3204, %v3370
    %3372 = vmatpush.msra.mxu0 %v3371
    %v3373 = vand.u32 %v3202, 4294901760
    %v3374 = vsub.f32 %v3202, %v3373
    %3375 = vmatpush.msra.mxu0 %v3374
    %v3376 = vand.u32 %v3200, 4294901760
    %v3377 = vsub.f32 %v3200, %v3376
    %3378 = vmatpush.msra.mxu0 %v3377
    %v3379 = vand.u32 %v3215, 4294901760
    %v3380 = vsub.f32 %v3215, %v3379
    %3381 = vmatmul.f32.gmra.mxu0 %v3380
    %v3382 = vpop.f32.mrf.mxu0
    %v3383 = vadd.f32 %v3335, %v3382
    %v3384 = vand.u32 %v3218, 4294901760
    %v3385 = vsub.f32 %v3218, %v3384
    %3386 = vmatmul.f32.gmra.mxu0 %v3385
    %v3387 = vpop.f32.mrf.mxu0
    %v3388 = vadd.f32 %v3339, %v3387
    %v3389 = vand.u32 %v3221, 4294901760
    %v3390 = vsub.f32 %v3221, %v3389
    %3391 = vmatmul.f32.gmra.mxu0 %v3390
    %v3392 = vpop.f32.mrf.mxu0
    %v3393 = vadd.f32 %v3343, %v3392
    %v3394 = vand.u32 %v3224, 4294901760
    %v3395 = vsub.f32 %v3224, %v3394
    %3396 = vmatmul.f32.gmra.mxu0 %v3395
    %v3397 = vpop.f32.mrf.mxu0
    %v3398 = vadd.f32 %v3347, %v3397
    %v3399 = vand.u32 %v3227, 4294901760
    %v3400 = vsub.f32 %v3227, %v3399
    %3401 = vmatmul.f32.gmra.mxu0 %v3400
    %v3402 = vpop.f32.mrf.mxu0
    %v3403 = vadd.f32 %v3351, %v3402
    %3404 = vdwg.mxu0
    %3405 = vmatpush.msra.mxu0 0.0
    %3406 = vmatpush.msra.mxu0 0.0
    %3407 = vmatpush.msra.mxu0 0.0
    %3408 = vmatpush.msra.mxu0 0.0
    %3409 = vmatpush.msra.mxu0 0.0
    %3410 = vmatpush.msra.mxu0 0.0
    %3411 = vmatpush.msra.mxu0 0.0
    %3412 = vmatpush.msra.mxu0 0.0
    %3413 = vmatpush.msra.mxu0 0.0
    %3414 = vmatpush.msra.mxu0 0.0
    %3415 = vmatpush.msra.mxu0 0.0
    %v3416 = vand.u32 %v3208, 4294901760
    %3417 = vmatpush.msra.mxu0 %v3416
    %v3418 = vand.u32 %v3206, 4294901760
    %3419 = vmatpush.msra.mxu0 %v3418
    %v3420 = vand.u32 %v3204, 4294901760
    %3421 = vmatpush.msra.mxu0 %v3420
    %v3422 = vand.u32 %v3202, 4294901760
    %3423 = vmatpush.msra.mxu0 %v3422
    %v3424 = vand.u32 %v3200, 4294901760
    %3425 = vmatpush.msra.mxu0 %v3424
    %v3426 = vand.u32 %v3215, 4294901760
    %v3427 = vsub.f32 %v3215, %v3426
    %v3428 = vand.u32 %v3427, 4294901760
    %3429 = vmatmul.f32.gmra.mxu0 %v3428
    %v3430 = vpop.f32.mrf.mxu0
    %v3431 = vadd.f32 %v3383, %v3430
    %v3432 = vand.u32 %v3218, 4294901760
    %v3433 = vsub.f32 %v3218, %v3432
    %v3434 = vand.u32 %v3433, 4294901760
    %3435 = vmatmul.f32.gmra.mxu0 %v3434
    %v3436 = vpop.f32.mrf.mxu0
    %v3437 = vadd.f32 %v3388, %v3436
    %v3438 = vand.u32 %v3221, 4294901760
    %v3439 = vsub.f32 %v3221, %v3438
    %v3440 = vand.u32 %v3439, 4294901760
    %3441 = vmatmul.f32.gmra.mxu0 %v3440
    %v3442 = vpop.f32.mrf.mxu0
    %v3443 = vadd.f32 %v3393, %v3442
    %v3444 = vand.u32 %v3224, 4294901760
    %v3445 = vsub.f32 %v3224, %v3444
    %v3446 = vand.u32 %v3445, 4294901760
    %3447 = vmatmul.f32.gmra.mxu0 %v3446
    %v3448 = vpop.f32.mrf.mxu0
    %v3449 = vadd.f32 %v3398, %v3448
    %v3450 = vand.u32 %v3227, 4294901760
    %v3451 = vsub.f32 %v3227, %v3450
    %v3452 = vand.u32 %v3451, 4294901760
    %3453 = vmatmul.f32.gmra.mxu0 %v3452
    %v3454 = vpop.f32.mrf.mxu0
    %v3455 = vadd.f32 %v3403, %v3454
    %3456 = vdwg.mxu0
    %3457 = vmatpush.msra.mxu0 0.0
    %3458 = vmatpush.msra.mxu0 0.0
    %3459 = vmatpush.msra.mxu0 0.0
    %3460 = vmatpush.msra.mxu0 0.0
    %3461 = vmatpush.msra.mxu0 0.0
    %3462 = vmatpush.msra.mxu0 0.0
    %3463 = vmatpush.msra.mxu0 0.0
    %3464 = vmatpush.msra.mxu0 0.0
    %3465 = vmatpush.msra.mxu0 0.0
    %3466 = vmatpush.msra.mxu0 0.0
    %3467 = vmatpush.msra.mxu0 0.0
    %v3468 = vand.u32 %v3208, 4294901760
    %v3469 = vsub.f32 %v3208, %v3468
    %v3470 = vand.u32 %v3469, 4294901760
    %3471 = vmatpush.msra.mxu0 %v3470
    %v3472 = vand.u32 %v3206, 4294901760
    %v3473 = vsub.f32 %v3206, %v3472
    %v3474 = vand.u32 %v3473, 4294901760
    %3475 = vmatpush.msra.mxu0 %v3474
    %v3476 = vand.u32 %v3204, 4294901760
    %v3477 = vsub.f32 %v3204, %v3476
    %v3478 = vand.u32 %v3477, 4294901760
    %3479 = vmatpush.msra.mxu0 %v3478
    %v3480 = vand.u32 %v3202, 4294901760
    %v3481 = vsub.f32 %v3202, %v3480
    %v3482 = vand.u32 %v3481, 4294901760
    %3483 = vmatpush.msra.mxu0 %v3482
    %v3484 = vand.u32 %v3200, 4294901760
    %v3485 = vsub.f32 %v3200, %v3484
    %v3486 = vand.u32 %v3485, 4294901760
    %3487 = vmatpush.msra.mxu0 %v3486
    %v3488 = vand.u32 %v3215, 4294901760
    %3489 = vmatmul.f32.gmra.mxu0 %v3488
    %v3490 = vpop.f32.mrf.mxu0
    %v3491 = vadd.f32 %v3431, %v3490
    %v3492 = vand.u32 %v3218, 4294901760
    %3493 = vmatmul.f32.gmra.mxu0 %v3492
    %v3494 = vpop.f32.mrf.mxu0
    %v3495 = vadd.f32 %v3437, %v3494
    %v3496 = vand.u32 %v3221, 4294901760
    %3497 = vmatmul.f32.gmra.mxu0 %v3496
    %v3498 = vpop.f32.mrf.mxu0
    %v3499 = vadd.f32 %v3443, %v3498
    %v3500 = vand.u32 %v3224, 4294901760
    %3501 = vmatmul.f32.gmra.mxu0 %v3500
    %v3502 = vpop.f32.mrf.mxu0
    %v3503 = vadd.f32 %v3449, %v3502
    %v3504 = vand.u32 %v3227, 4294901760
    %3505 = vmatmul.f32.gmra.mxu0 %v3504
    %v3506 = vpop.f32.mrf.mxu0
    %v3507 = vadd.f32 %v3455, %v3506
    %3508 = vdwg.mxu0
    %3509 = vmatpush.msra.mxu0 0.0
    %3510 = vmatpush.msra.mxu0 0.0
    %3511 = vmatpush.msra.mxu0 0.0
    %3512 = vmatpush.msra.mxu0 0.0
    %3513 = vmatpush.msra.mxu0 0.0
    %3514 = vmatpush.msra.mxu0 0.0
    %3515 = vmatpush.msra.mxu0 0.0
    %3516 = vmatpush.msra.mxu0 0.0
    %3517 = vmatpush.msra.mxu0 0.0
    %3518 = vmatpush.msra.mxu0 0.0
    %3519 = vmatpush.msra.mxu0 0.0
    %v3520 = vand.u32 %v3208, 4294901760
    %3521 = vmatpush.msra.mxu0 %v3520
    %v3522 = vand.u32 %v3206, 4294901760
    %3523 = vmatpush.msra.mxu0 %v3522
    %v3524 = vand.u32 %v3204, 4294901760
    %3525 = vmatpush.msra.mxu0 %v3524
    %v3526 = vand.u32 %v3202, 4294901760
    %3527 = vmatpush.msra.mxu0 %v3526
    %v3528 = vand.u32 %v3200, 4294901760
    %3529 = vmatpush.msra.mxu0 %v3528
    %v3530 = vand.u32 %v3215, 4294901760
    %3531 = vmatmul.f32.gmra.mxu0 %v3530
    %v3532 = vpop.f32.mrf.mxu0
    %v3533 = vadd.f32 %v3491, %v3532
    %v3534 = vand.u32 %v3218, 4294901760
    %3535 = vmatmul.f32.gmra.mxu0 %v3534
    %v3536 = vpop.f32.mrf.mxu0
    %v3537 = vadd.f32 %v3495, %v3536
    %v3538 = vand.u32 %v3221, 4294901760
    %3539 = vmatmul.f32.gmra.mxu0 %v3538
    %v3540 = vpop.f32.mrf.mxu0
    %v3541 = vadd.f32 %v3499, %v3540
    %v3542 = vand.u32 %v3224, 4294901760
    %3543 = vmatmul.f32.gmra.mxu0 %v3542
    %v3544 = vpop.f32.mrf.mxu0
    %v3545 = vadd.f32 %v3503, %v3544
    %v3546 = vand.u32 %v3227, 4294901760
    %3547 = vmatmul.f32.gmra.mxu0 %v3546
    %v3548 = vpop.f32.mrf.mxu0
    %v3549 = vadd.f32 %v3507, %v3548
    %3550 = vdwg.mxu0
    %3551 = vrot.lane.b32.xlu0 %v1029, 104
    %v3552 = vpop.permute.xlu0 %3551
    %3553 = vrot.lane.b32.xlu0 %v1033, 104
    %v3554 = vpop.permute.xlu0 %3553
    %3555 = vrot.lane.b32.xlu0 %v1037, 104
    %v3556 = vpop.permute.xlu0 %3555
    %3557 = vrot.lane.b32.xlu0 %v1041, 104
    %v3558 = vpop.permute.xlu0 %3557
    %3559 = vrot.lane.b32.xlu0 %v1045, 104
    %v3560 = vpop.permute.xlu0 %3559
    %3561 = vrot.lane.b32.xlu0 %v1029, 72
    %v3562 = vpop.permute.xlu0 %3561
    %3563 = vrot.lane.b32.xlu0 %v1033, 72
    %v3564 = vpop.permute.xlu0 %3563
    %3565 = vrot.lane.b32.xlu0 %v1037, 72
    %v3566 = vpop.permute.xlu0 %3565
    %3567 = vrot.lane.b32.xlu0 %v1041, 72
    %v3568 = vpop.permute.xlu0 %3567
    %3569 = vrot.lane.b32.xlu0 %v1045, 72
    %v3570 = vpop.permute.xlu0 %3569
    %v3571 = vsel %vm1067, %v3552, 0
    %v3573 = vsel %vm1067, %v3554, 0
    %v3575 = vsel %vm1067, %v3556, 0
    %v3577 = vsel %vm1067, %v3558, 0
    %v3579 = vsel %vm1067, %v3560, 0
    %v3581 = vsel %vm1067, %v3562, 0
    %v3583 = vsel %vm1067, %v3564, 0
    %v3585 = vsel %vm1067, %v3566, 0
    %v3587 = vsel %vm1067, %v3568, 0
    %v3589 = vsel %vm1067, %v3570, 0
    %3591 = vmatpush.xpose.msra.mxu0 0.0
    %3592 = vmatpush.xpose.msra.mxu0 0.0
    %3593 = vmatpush.xpose.msra.mxu0 0.0
    %3594 = vmatpush.xpose.msra.mxu0 0.0
    %3595 = vmatpush.xpose.msra.mxu0 0.0
    %3596 = vmatpush.xpose.msra.mxu0 0.0
    %3597 = vmatpush.xpose.msra.mxu0 0.0
    %3598 = vmatpush.xpose.msra.mxu0 0.0
    %3599 = vmatpush.xpose.msra.mxu0 0.0
    %3600 = vmatpush.xpose.msra.mxu0 0.0
    %3601 = vmatpush.xpose.msra.mxu0 0.0
    %v3602 = vand.u32 %v3589, 4294901760
    %3603 = vmatpush.xpose.msra.mxu0 %v3602
    %v3604 = vand.u32 %v3587, 4294901760
    %3605 = vmatpush.xpose.msra.mxu0 %v3604
    %v3606 = vand.u32 %v3585, 4294901760
    %3607 = vmatpush.xpose.msra.mxu0 %v3606
    %v3608 = vand.u32 %v3583, 4294901760
    %3609 = vmatpush.xpose.msra.mxu0 %v3608
    %v3610 = vand.u32 %v3581, 4294901760
    %3611 = vmatpush.xpose.msra.mxu0 %v3610
    %v3612 = vand.u32 %v3571, 4294901760
    %v3613 = vsub.f32 %v3571, %v3612
    %v3614 = vand.u32 %v3613, 4294901760
    %v3615 = vsub.f32 %v3613, %v3614
    %v3616 = vand.u32 %v3615, 4294901760
    %3617 = vmatmul.f32.gmra.mxu0 %v3616
    %v3618 = vpop.f32.mrf.mxu0
    %v3619 = vadd.f32 %v1047, %v3618
    %v3620 = vand.u32 %v3573, 4294901760
    %v3621 = vsub.f32 %v3573, %v3620
    %v3622 = vand.u32 %v3621, 4294901760
    %v3623 = vsub.f32 %v3621, %v3622
    %v3624 = vand.u32 %v3623, 4294901760
    %3625 = vmatmul.f32.gmra.mxu0 %v3624
    %v3626 = vpop.f32.mrf.mxu0
    %v3627 = vadd.f32 %v1048, %v3626
    %v3628 = vand.u32 %v3575, 4294901760
    %v3629 = vsub.f32 %v3575, %v3628
    %v3630 = vand.u32 %v3629, 4294901760
    %v3631 = vsub.f32 %v3629, %v3630
    %v3632 = vand.u32 %v3631, 4294901760
    %3633 = vmatmul.f32.gmra.mxu0 %v3632
    %v3634 = vpop.f32.mrf.mxu0
    %v3635 = vadd.f32 %v1049, %v3634
    %v3636 = vand.u32 %v3577, 4294901760
    %v3637 = vsub.f32 %v3577, %v3636
    %v3638 = vand.u32 %v3637, 4294901760
    %v3639 = vsub.f32 %v3637, %v3638
    %v3640 = vand.u32 %v3639, 4294901760
    %3641 = vmatmul.f32.gmra.mxu0 %v3640
    %v3642 = vpop.f32.mrf.mxu0
    %v3643 = vadd.f32 %v1050, %v3642
    %v3644 = vand.u32 %v3579, 4294901760
    %v3645 = vsub.f32 %v3579, %v3644
    %v3646 = vand.u32 %v3645, 4294901760
    %v3647 = vsub.f32 %v3645, %v3646
    %v3648 = vand.u32 %v3647, 4294901760
    %3649 = vmatmul.f32.gmra.mxu0 %v3648
    %v3650 = vpop.f32.mrf.mxu0
    %v3651 = vadd.f32 %v1051, %v3650
    %3652 = vdwg.mxu0
    %3653 = vmatpush.xpose.msra.mxu0 0.0
    %3654 = vmatpush.xpose.msra.mxu0 0.0
    %3655 = vmatpush.xpose.msra.mxu0 0.0
    %3656 = vmatpush.xpose.msra.mxu0 0.0
    %3657 = vmatpush.xpose.msra.mxu0 0.0
    %3658 = vmatpush.xpose.msra.mxu0 0.0
    %3659 = vmatpush.xpose.msra.mxu0 0.0
    %3660 = vmatpush.xpose.msra.mxu0 0.0
    %3661 = vmatpush.xpose.msra.mxu0 0.0
    %3662 = vmatpush.xpose.msra.mxu0 0.0
    %3663 = vmatpush.xpose.msra.mxu0 0.0
    %v3664 = vand.u32 %v3589, 4294901760
    %v3665 = vsub.f32 %v3589, %v3664
    %v3666 = vand.u32 %v3665, 4294901760
    %v3667 = vsub.f32 %v3665, %v3666
    %v3668 = vand.u32 %v3667, 4294901760
    %3669 = vmatpush.xpose.msra.mxu0 %v3668
    %v3670 = vand.u32 %v3587, 4294901760
    %v3671 = vsub.f32 %v3587, %v3670
    %v3672 = vand.u32 %v3671, 4294901760
    %v3673 = vsub.f32 %v3671, %v3672
    %v3674 = vand.u32 %v3673, 4294901760
    %3675 = vmatpush.xpose.msra.mxu0 %v3674
    %v3676 = vand.u32 %v3585, 4294901760
    %v3677 = vsub.f32 %v3585, %v3676
    %v3678 = vand.u32 %v3677, 4294901760
    %v3679 = vsub.f32 %v3677, %v3678
    %v3680 = vand.u32 %v3679, 4294901760
    %3681 = vmatpush.xpose.msra.mxu0 %v3680
    %v3682 = vand.u32 %v3583, 4294901760
    %v3683 = vsub.f32 %v3583, %v3682
    %v3684 = vand.u32 %v3683, 4294901760
    %v3685 = vsub.f32 %v3683, %v3684
    %v3686 = vand.u32 %v3685, 4294901760
    %3687 = vmatpush.xpose.msra.mxu0 %v3686
    %v3688 = vand.u32 %v3581, 4294901760
    %v3689 = vsub.f32 %v3581, %v3688
    %v3690 = vand.u32 %v3689, 4294901760
    %v3691 = vsub.f32 %v3689, %v3690
    %v3692 = vand.u32 %v3691, 4294901760
    %3693 = vmatpush.xpose.msra.mxu0 %v3692
    %v3694 = vand.u32 %v3571, 4294901760
    %3695 = vmatmul.f32.gmra.mxu0 %v3694
    %v3696 = vpop.f32.mrf.mxu0
    %v3697 = vadd.f32 %v3619, %v3696
    %v3698 = vand.u32 %v3573, 4294901760
    %3699 = vmatmul.f32.gmra.mxu0 %v3698
    %v3700 = vpop.f32.mrf.mxu0
    %v3701 = vadd.f32 %v3627, %v3700
    %v3702 = vand.u32 %v3575, 4294901760
    %3703 = vmatmul.f32.gmra.mxu0 %v3702
    %v3704 = vpop.f32.mrf.mxu0
    %v3705 = vadd.f32 %v3635, %v3704
    %v3706 = vand.u32 %v3577, 4294901760
    %3707 = vmatmul.f32.gmra.mxu0 %v3706
    %v3708 = vpop.f32.mrf.mxu0
    %v3709 = vadd.f32 %v3643, %v3708
    %v3710 = vand.u32 %v3579, 4294901760
    %3711 = vmatmul.f32.gmra.mxu0 %v3710
    %v3712 = vpop.f32.mrf.mxu0
    %v3713 = vadd.f32 %v3651, %v3712
    %3714 = vdwg.mxu0
    %3715 = vmatpush.xpose.msra.mxu0 0.0
    %3716 = vmatpush.xpose.msra.mxu0 0.0
    %3717 = vmatpush.xpose.msra.mxu0 0.0
    %3718 = vmatpush.xpose.msra.mxu0 0.0
    %3719 = vmatpush.xpose.msra.mxu0 0.0
    %3720 = vmatpush.xpose.msra.mxu0 0.0
    %3721 = vmatpush.xpose.msra.mxu0 0.0
    %3722 = vmatpush.xpose.msra.mxu0 0.0
    %3723 = vmatpush.xpose.msra.mxu0 0.0
    %3724 = vmatpush.xpose.msra.mxu0 0.0
    %3725 = vmatpush.xpose.msra.mxu0 0.0
    %v3726 = vand.u32 %v3589, 4294901760
    %v3727 = vsub.f32 %v3589, %v3726
    %3728 = vmatpush.xpose.msra.mxu0 %v3727
    %v3729 = vand.u32 %v3587, 4294901760
    %v3730 = vsub.f32 %v3587, %v3729
    %3731 = vmatpush.xpose.msra.mxu0 %v3730
    %v3732 = vand.u32 %v3585, 4294901760
    %v3733 = vsub.f32 %v3585, %v3732
    %3734 = vmatpush.xpose.msra.mxu0 %v3733
    %v3735 = vand.u32 %v3583, 4294901760
    %v3736 = vsub.f32 %v3583, %v3735
    %3737 = vmatpush.xpose.msra.mxu0 %v3736
    %v3738 = vand.u32 %v3581, 4294901760
    %v3739 = vsub.f32 %v3581, %v3738
    %3740 = vmatpush.xpose.msra.mxu0 %v3739
    %v3741 = vand.u32 %v3571, 4294901760
    %v3742 = vsub.f32 %v3571, %v3741
    %3743 = vmatmul.f32.gmra.mxu0 %v3742
    %v3744 = vpop.f32.mrf.mxu0
    %v3745 = vadd.f32 %v3697, %v3744
    %v3746 = vand.u32 %v3573, 4294901760
    %v3747 = vsub.f32 %v3573, %v3746
    %3748 = vmatmul.f32.gmra.mxu0 %v3747
    %v3749 = vpop.f32.mrf.mxu0
    %v3750 = vadd.f32 %v3701, %v3749
    %v3751 = vand.u32 %v3575, 4294901760
    %v3752 = vsub.f32 %v3575, %v3751
    %3753 = vmatmul.f32.gmra.mxu0 %v3752
    %v3754 = vpop.f32.mrf.mxu0
    %v3755 = vadd.f32 %v3705, %v3754
    %v3756 = vand.u32 %v3577, 4294901760
    %v3757 = vsub.f32 %v3577, %v3756
    %3758 = vmatmul.f32.gmra.mxu0 %v3757
    %v3759 = vpop.f32.mrf.mxu0
    %v3760 = vadd.f32 %v3709, %v3759
    %v3761 = vand.u32 %v3579, 4294901760
    %v3762 = vsub.f32 %v3579, %v3761
    %3763 = vmatmul.f32.gmra.mxu0 %v3762
    %v3764 = vpop.f32.mrf.mxu0
    %v3765 = vadd.f32 %v3713, %v3764
    %3766 = vdwg.mxu0
    %3767 = vmatpush.xpose.msra.mxu0 0.0
    %3768 = vmatpush.xpose.msra.mxu0 0.0
    %3769 = vmatpush.xpose.msra.mxu0 0.0
    %3770 = vmatpush.xpose.msra.mxu0 0.0
    %3771 = vmatpush.xpose.msra.mxu0 0.0
    %3772 = vmatpush.xpose.msra.mxu0 0.0
    %3773 = vmatpush.xpose.msra.mxu0 0.0
    %3774 = vmatpush.xpose.msra.mxu0 0.0
    %3775 = vmatpush.xpose.msra.mxu0 0.0
    %3776 = vmatpush.xpose.msra.mxu0 0.0
    %3777 = vmatpush.xpose.msra.mxu0 0.0
    %v3778 = vand.u32 %v3589, 4294901760
    %3779 = vmatpush.xpose.msra.mxu0 %v3778
    %v3780 = vand.u32 %v3587, 4294901760
    %3781 = vmatpush.xpose.msra.mxu0 %v3780
    %v3782 = vand.u32 %v3585, 4294901760
    %3783 = vmatpush.xpose.msra.mxu0 %v3782
    %v3784 = vand.u32 %v3583, 4294901760
    %3785 = vmatpush.xpose.msra.mxu0 %v3784
    %v3786 = vand.u32 %v3581, 4294901760
    %3787 = vmatpush.xpose.msra.mxu0 %v3786
    %v3788 = vand.u32 %v3571, 4294901760
    %v3789 = vsub.f32 %v3571, %v3788
    %v3790 = vand.u32 %v3789, 4294901760
    %3791 = vmatmul.f32.gmra.mxu0 %v3790
    %v3792 = vpop.f32.mrf.mxu0
    %v3793 = vadd.f32 %v3745, %v3792
    %v3794 = vand.u32 %v3573, 4294901760
    %v3795 = vsub.f32 %v3573, %v3794
    %v3796 = vand.u32 %v3795, 4294901760
    %3797 = vmatmul.f32.gmra.mxu0 %v3796
    %v3798 = vpop.f32.mrf.mxu0
    %v3799 = vadd.f32 %v3750, %v3798
    %v3800 = vand.u32 %v3575, 4294901760
    %v3801 = vsub.f32 %v3575, %v3800
    %v3802 = vand.u32 %v3801, 4294901760
    %3803 = vmatmul.f32.gmra.mxu0 %v3802
    %v3804 = vpop.f32.mrf.mxu0
    %v3805 = vadd.f32 %v3755, %v3804
    %v3806 = vand.u32 %v3577, 4294901760
    %v3807 = vsub.f32 %v3577, %v3806
    %v3808 = vand.u32 %v3807, 4294901760
    %3809 = vmatmul.f32.gmra.mxu0 %v3808
    %v3810 = vpop.f32.mrf.mxu0
    %v3811 = vadd.f32 %v3760, %v3810
    %v3812 = vand.u32 %v3579, 4294901760
    %v3813 = vsub.f32 %v3579, %v3812
    %v3814 = vand.u32 %v3813, 4294901760
    %3815 = vmatmul.f32.gmra.mxu0 %v3814
    %v3816 = vpop.f32.mrf.mxu0
    %v3817 = vadd.f32 %v3765, %v3816
    %3818 = vdwg.mxu0
    %3819 = vmatpush.xpose.msra.mxu0 0.0
    %3820 = vmatpush.xpose.msra.mxu0 0.0
    %3821 = vmatpush.xpose.msra.mxu0 0.0
    %3822 = vmatpush.xpose.msra.mxu0 0.0
    %3823 = vmatpush.xpose.msra.mxu0 0.0
    %3824 = vmatpush.xpose.msra.mxu0 0.0
    %3825 = vmatpush.xpose.msra.mxu0 0.0
    %3826 = vmatpush.xpose.msra.mxu0 0.0
    %3827 = vmatpush.xpose.msra.mxu0 0.0
    %3828 = vmatpush.xpose.msra.mxu0 0.0
    %3829 = vmatpush.xpose.msra.mxu0 0.0
    %v3830 = vand.u32 %v3589, 4294901760
    %v3831 = vsub.f32 %v3589, %v3830
    %v3832 = vand.u32 %v3831, 4294901760
    %3833 = vmatpush.xpose.msra.mxu0 %v3832
    %v3834 = vand.u32 %v3587, 4294901760
    %v3835 = vsub.f32 %v3587, %v3834
    %v3836 = vand.u32 %v3835, 4294901760
    %3837 = vmatpush.xpose.msra.mxu0 %v3836
    %v3838 = vand.u32 %v3585, 4294901760
    %v3839 = vsub.f32 %v3585, %v3838
    %v3840 = vand.u32 %v3839, 4294901760
    %3841 = vmatpush.xpose.msra.mxu0 %v3840
    %v3842 = vand.u32 %v3583, 4294901760
    %v3843 = vsub.f32 %v3583, %v3842
    %v3844 = vand.u32 %v3843, 4294901760
    %3845 = vmatpush.xpose.msra.mxu0 %v3844
    %v3846 = vand.u32 %v3581, 4294901760
    %v3847 = vsub.f32 %v3581, %v3846
    %v3848 = vand.u32 %v3847, 4294901760
    %3849 = vmatpush.xpose.msra.mxu0 %v3848
    %v3850 = vand.u32 %v3571, 4294901760
    %3851 = vmatmul.f32.gmra.mxu0 %v3850
    %v3852 = vpop.f32.mrf.mxu0
    %v3853 = vadd.f32 %v3793, %v3852
    %v3854 = vand.u32 %v3573, 4294901760
    %3855 = vmatmul.f32.gmra.mxu0 %v3854
    %v3856 = vpop.f32.mrf.mxu0
    %v3857 = vadd.f32 %v3799, %v3856
    %v3858 = vand.u32 %v3575, 4294901760
    %3859 = vmatmul.f32.gmra.mxu0 %v3858
    %v3860 = vpop.f32.mrf.mxu0
    %v3861 = vadd.f32 %v3805, %v3860
    %v3862 = vand.u32 %v3577, 4294901760
    %3863 = vmatmul.f32.gmra.mxu0 %v3862
    %v3864 = vpop.f32.mrf.mxu0
    %v3865 = vadd.f32 %v3811, %v3864
    %v3866 = vand.u32 %v3579, 4294901760
    %3867 = vmatmul.f32.gmra.mxu0 %v3866
    %v3868 = vpop.f32.mrf.mxu0
    %v3869 = vadd.f32 %v3817, %v3868
    %3870 = vdwg.mxu0
    %3871 = vmatpush.xpose.msra.mxu0 0.0
    %3872 = vmatpush.xpose.msra.mxu0 0.0
    %3873 = vmatpush.xpose.msra.mxu0 0.0
    %3874 = vmatpush.xpose.msra.mxu0 0.0
    %3875 = vmatpush.xpose.msra.mxu0 0.0
    %3876 = vmatpush.xpose.msra.mxu0 0.0
    %3877 = vmatpush.xpose.msra.mxu0 0.0
    %3878 = vmatpush.xpose.msra.mxu0 0.0
    %3879 = vmatpush.xpose.msra.mxu0 0.0
    %3880 = vmatpush.xpose.msra.mxu0 0.0
    %3881 = vmatpush.xpose.msra.mxu0 0.0
    %v3882 = vand.u32 %v3589, 4294901760
    %3883 = vmatpush.xpose.msra.mxu0 %v3882
    %v3884 = vand.u32 %v3587, 4294901760
    %3885 = vmatpush.xpose.msra.mxu0 %v3884
    %v3886 = vand.u32 %v3585, 4294901760
    %3887 = vmatpush.xpose.msra.mxu0 %v3886
    %v3888 = vand.u32 %v3583, 4294901760
    %3889 = vmatpush.xpose.msra.mxu0 %v3888
    %v3890 = vand.u32 %v3581, 4294901760
    %3891 = vmatpush.xpose.msra.mxu0 %v3890
    %v3892 = vand.u32 %v3571, 4294901760
    %3893 = vmatmul.f32.gmra.mxu0 %v3892
    %v3894 = vpop.f32.mrf.mxu0
    %v3895 = vadd.f32 %v3853, %v3894
    %v3896 = vand.u32 %v3573, 4294901760
    %3897 = vmatmul.f32.gmra.mxu0 %v3896
    %v3898 = vpop.f32.mrf.mxu0
    %v3899 = vadd.f32 %v3857, %v3898
    %v3900 = vand.u32 %v3575, 4294901760
    %3901 = vmatmul.f32.gmra.mxu0 %v3900
    %v3902 = vpop.f32.mrf.mxu0
    %v3903 = vadd.f32 %v3861, %v3902
    %v3904 = vand.u32 %v3577, 4294901760
    %3905 = vmatmul.f32.gmra.mxu0 %v3904
    %v3906 = vpop.f32.mrf.mxu0
    %v3907 = vadd.f32 %v3865, %v3906
    %v3908 = vand.u32 %v3579, 4294901760
    %3909 = vmatmul.f32.gmra.mxu0 %v3908
    %v3910 = vpop.f32.mrf.mxu0
    %v3911 = vadd.f32 %v3869, %v3910
    %3912 = vdwg.mxu0
    %v3913 = vsel %vm1410, %v3895, -inf
    %3914 = vmax.xlane.f32.xlu0 %v3913
    %v3915 = vpop.xlane.xlu0 %3914
    %v3916 = vsel %vm1410, %v3899, -inf
    %3917 = vmax.xlane.f32.xlu0 %v3916
    %v3918 = vpop.xlane.xlu0 %3917
    %v3919 = vsel %vm1410, %v3903, -inf
    %3920 = vmax.xlane.f32.xlu0 %v3919
    %v3921 = vpop.xlane.xlu0 %3920
    %v3922 = vsel %vm1410, %v3907, -inf
    %3923 = vmax.xlane.f32.xlu0 %v3922
    %v3924 = vpop.xlane.xlu0 %3923
    %v3925 = vsel %vm1410, %v3911, -inf
    %3926 = vmax.xlane.f32.xlu0 %v3925
    %v3927 = vpop.xlane.xlu0 %3926
    %v3928 = vsub.f32 %v3895, %v3915
    %v3929 = vsub.f32 %v3899, %v3918
    %v3930 = vsub.f32 %v3903, %v3921
    %v3931 = vsub.f32 %v3907, %v3924
    %v3932 = vsub.f32 %v3911, %v3927
    %v3933 = vmul.f32 %v3928, 1.442695
    %v3934 = vpow.pop %v3933
    %v3935 = vmul.f32 %v3929, 1.442695
    %v3936 = vpow.pop %v3935
    %v3937 = vmul.f32 %v3930, 1.442695
    %v3938 = vpow.pop %v3937
    %v3939 = vmul.f32 %v3931, 1.442695
    %v3940 = vpow.pop %v3939
    %v3941 = vmul.f32 %v3932, 1.442695
    %v3942 = vpow.pop %v3941
    %v3943 = vsel %vm1410, %v3934, 0.0
    %3944 = vadd.xlane.f32.xlu0 %v3943
    %v3945 = vpop.xlane.xlu0 %3944
    %v3946 = vsel %vm1410, %v3936, 0.0
    %3947 = vadd.xlane.f32.xlu0 %v3946
    %v3948 = vpop.xlane.xlu0 %3947
    %v3949 = vsel %vm1410, %v3938, 0.0
    %3950 = vadd.xlane.f32.xlu0 %v3949
    %v3951 = vpop.xlane.xlu0 %3950
    %v3952 = vsel %vm1410, %v3940, 0.0
    %3953 = vadd.xlane.f32.xlu0 %v3952
    %v3954 = vpop.xlane.xlu0 %3953
    %v3955 = vsel %vm1410, %v3942, 0.0
    %3956 = vadd.xlane.f32.xlu0 %v3955
    %v3957 = vpop.xlane.xlu0 %3956
    %v3958 = vrcp.pop %v3945
    %v3959 = vmul.f32 %v3945, %v3958
    %v3960 = vsub.f32 1.0, %v3959
    %v3961 = vmul.f32 %v3958, %v3960
    %v3962 = vadd.f32 %v3958, %v3961
    %vm3963 = vweird.f32 %v3945
    %vm3964 = vweird.f32 %v3958
    %vm3965 = vmor %vm3963, %vm3964
    %v3966 = vsel %vm3965, %v3958, %v3962
    %v3967 = vand.u32 2147483647, %v3945
    %vm3968 = vcmp.eq.f32.partialorder %v3967, 8.507059e+37
    %v3969 = vand.u32 %v3945, 2147483648
    %v3970 = vor.u32 1.1754944e-38, %v3969
    %v3971 = vsel %vm3968, %v3970, %v3966
    %v3972 = vmul.f32 %v3934, %v3971
    %v3973 = vrcp.pop %v3948
    %v3974 = vmul.f32 %v3948, %v3973
    %v3975 = vsub.f32 1.0, %v3974
    %v3976 = vmul.f32 %v3973, %v3975
    %v3977 = vadd.f32 %v3973, %v3976
    %vm3978 = vweird.f32 %v3948
    %vm3979 = vweird.f32 %v3973
    %vm3980 = vmor %vm3978, %vm3979
    %v3981 = vsel %vm3980, %v3973, %v3977
    %v3982 = vand.u32 2147483647, %v3948
    %vm3983 = vcmp.eq.f32.partialorder %v3982, 8.507059e+37
    %v3984 = vand.u32 %v3948, 2147483648
    %v3985 = vor.u32 1.1754944e-38, %v3984
    %v3986 = vsel %vm3983, %v3985, %v3981
    %v3987 = vmul.f32 %v3936, %v3986
    %v3988 = vrcp.pop %v3951
    %v3989 = vmul.f32 %v3951, %v3988
    %v3990 = vsub.f32 1.0, %v3989
    %v3991 = vmul.f32 %v3988, %v3990
    %v3992 = vadd.f32 %v3988, %v3991
    %vm3993 = vweird.f32 %v3951
    %vm3994 = vweird.f32 %v3988
    %vm3995 = vmor %vm3993, %vm3994
    %v3996 = vsel %vm3995, %v3988, %v3992
    %v3997 = vand.u32 2147483647, %v3951
    %vm3998 = vcmp.eq.f32.partialorder %v3997, 8.507059e+37
    %v3999 = vand.u32 %v3951, 2147483648
    %v4000 = vor.u32 1.1754944e-38, %v3999
    %v4001 = vsel %vm3998, %v4000, %v3996
    %v4002 = vmul.f32 %v3938, %v4001
    %v4003 = vrcp.pop %v3954
    %v4004 = vmul.f32 %v3954, %v4003
    %v4005 = vsub.f32 1.0, %v4004
    %v4006 = vmul.f32 %v4003, %v4005
    %v4007 = vadd.f32 %v4003, %v4006
    %vm4008 = vweird.f32 %v3954
    %vm4009 = vweird.f32 %v4003
    %vm4010 = vmor %vm4008, %vm4009
    %v4011 = vsel %vm4010, %v4003, %v4007
    %v4012 = vand.u32 2147483647, %v3954
    %vm4013 = vcmp.eq.f32.partialorder %v4012, 8.507059e+37
    %v4014 = vand.u32 %v3954, 2147483648
    %v4015 = vor.u32 1.1754944e-38, %v4014
    %v4016 = vsel %vm4013, %v4015, %v4011
    %v4017 = vmul.f32 %v3940, %v4016
    %v4018 = vrcp.pop %v3957
    %v4019 = vmul.f32 %v3957, %v4018
    %v4020 = vsub.f32 1.0, %v4019
    %v4021 = vmul.f32 %v4018, %v4020
    %v4022 = vadd.f32 %v4018, %v4021
    %vm4023 = vweird.f32 %v3957
    %vm4024 = vweird.f32 %v4018
    %vm4025 = vmor %vm4023, %vm4024
    %v4026 = vsel %vm4025, %v4018, %v4022
    %v4027 = vand.u32 2147483647, %v3957
    %vm4028 = vcmp.eq.f32.partialorder %v4027, 8.507059e+37
    %v4029 = vand.u32 %v3957, 2147483648
    %v4030 = vor.u32 1.1754944e-38, %v4029
    %v4031 = vsel %vm4028, %v4030, %v4026
    %v4032 = vmul.f32 %v3942, %v4031
    %4033 = vrot.lane.b32.xlu0 %v1029, 40
    %v4034 = vpop.permute.xlu0 %4033
    %4035 = vrot.lane.b32.xlu0 %v1033, 40
    %v4036 = vpop.permute.xlu0 %4035
    %4037 = vrot.lane.b32.xlu0 %v1037, 40
    %v4038 = vpop.permute.xlu0 %4037
    %4039 = vrot.lane.b32.xlu0 %v1041, 40
    %v4040 = vpop.permute.xlu0 %4039
    %4041 = vrot.lane.b32.xlu0 %v1045, 40
    %v4042 = vpop.permute.xlu0 %4041
    %v4049 = vsel %vm1410, %v3972, 0
    %v4052 = vsel %vm1410, %v3987, 0
    %v4055 = vsel %vm1410, %v4002, 0
    %v4058 = vsel %vm1410, %v4017, 0
    %v4061 = vsel %vm1410, %v4032, 0
    %4063 = vmatpush.msra.mxu0 0.0
    %4064 = vmatpush.msra.mxu0 0.0
    %4065 = vmatpush.msra.mxu0 0.0
    %4066 = vmatpush.msra.mxu0 0.0
    %4067 = vmatpush.msra.mxu0 0.0
    %4068 = vmatpush.msra.mxu0 0.0
    %4069 = vmatpush.msra.mxu0 0.0
    %4070 = vmatpush.msra.mxu0 0.0
    %4071 = vmatpush.msra.mxu0 0.0
    %4072 = vmatpush.msra.mxu0 0.0
    %4073 = vmatpush.msra.mxu0 0.0
    %v4074 = vand.u32 %v4042, 4294901760
    %4075 = vmatpush.msra.mxu0 %v4074
    %v4076 = vand.u32 %v4040, 4294901760
    %4077 = vmatpush.msra.mxu0 %v4076
    %v4078 = vand.u32 %v4038, 4294901760
    %4079 = vmatpush.msra.mxu0 %v4078
    %v4080 = vand.u32 %v4036, 4294901760
    %4081 = vmatpush.msra.mxu0 %v4080
    %v4082 = vand.u32 %v4034, 4294901760
    %4083 = vmatpush.msra.mxu0 %v4082
    %v4084 = vand.u32 %v4049, 4294901760
    %v4085 = vsub.f32 %v4049, %v4084
    %v4086 = vand.u32 %v4085, 4294901760
    %v4087 = vsub.f32 %v4085, %v4086
    %v4088 = vand.u32 %v4087, 4294901760
    %4089 = vmatmul.f32.gmra.mxu0 %v4088
    %v4090 = vpop.f32.mrf.mxu0
    %v4091 = vadd.f32 0.0, %v4090
    %v4092 = vand.u32 %v4052, 4294901760
    %v4093 = vsub.f32 %v4052, %v4092
    %v4094 = vand.u32 %v4093, 4294901760
    %v4095 = vsub.f32 %v4093, %v4094
    %v4096 = vand.u32 %v4095, 4294901760
    %4097 = vmatmul.f32.gmra.mxu0 %v4096
    %v4098 = vpop.f32.mrf.mxu0
    %v4099 = vadd.f32 0.0, %v4098
    %v4100 = vand.u32 %v4055, 4294901760
    %v4101 = vsub.f32 %v4055, %v4100
    %v4102 = vand.u32 %v4101, 4294901760
    %v4103 = vsub.f32 %v4101, %v4102
    %v4104 = vand.u32 %v4103, 4294901760
    %4105 = vmatmul.f32.gmra.mxu0 %v4104
    %v4106 = vpop.f32.mrf.mxu0
    %v4107 = vadd.f32 0.0, %v4106
    %v4108 = vand.u32 %v4058, 4294901760
    %v4109 = vsub.f32 %v4058, %v4108
    %v4110 = vand.u32 %v4109, 4294901760
    %v4111 = vsub.f32 %v4109, %v4110
    %v4112 = vand.u32 %v4111, 4294901760
    %4113 = vmatmul.f32.gmra.mxu0 %v4112
    %v4114 = vpop.f32.mrf.mxu0
    %v4115 = vadd.f32 0.0, %v4114
    %v4116 = vand.u32 %v4061, 4294901760
    %v4117 = vsub.f32 %v4061, %v4116
    %v4118 = vand.u32 %v4117, 4294901760
    %v4119 = vsub.f32 %v4117, %v4118
    %v4120 = vand.u32 %v4119, 4294901760
    %4121 = vmatmul.f32.gmra.mxu0 %v4120
    %v4122 = vpop.f32.mrf.mxu0
    %v4123 = vadd.f32 0.0, %v4122
    %4124 = vdwg.mxu0
    %4125 = vmatpush.msra.mxu0 0.0
    %4126 = vmatpush.msra.mxu0 0.0
    %4127 = vmatpush.msra.mxu0 0.0
    %4128 = vmatpush.msra.mxu0 0.0
    %4129 = vmatpush.msra.mxu0 0.0
    %4130 = vmatpush.msra.mxu0 0.0
    %4131 = vmatpush.msra.mxu0 0.0
    %4132 = vmatpush.msra.mxu0 0.0
    %4133 = vmatpush.msra.mxu0 0.0
    %4134 = vmatpush.msra.mxu0 0.0
    %4135 = vmatpush.msra.mxu0 0.0
    %v4136 = vand.u32 %v4042, 4294901760
    %v4137 = vsub.f32 %v4042, %v4136
    %v4138 = vand.u32 %v4137, 4294901760
    %v4139 = vsub.f32 %v4137, %v4138
    %v4140 = vand.u32 %v4139, 4294901760
    %4141 = vmatpush.msra.mxu0 %v4140
    %v4142 = vand.u32 %v4040, 4294901760
    %v4143 = vsub.f32 %v4040, %v4142
    %v4144 = vand.u32 %v4143, 4294901760
    %v4145 = vsub.f32 %v4143, %v4144
    %v4146 = vand.u32 %v4145, 4294901760
    %4147 = vmatpush.msra.mxu0 %v4146
    %v4148 = vand.u32 %v4038, 4294901760
    %v4149 = vsub.f32 %v4038, %v4148
    %v4150 = vand.u32 %v4149, 4294901760
    %v4151 = vsub.f32 %v4149, %v4150
    %v4152 = vand.u32 %v4151, 4294901760
    %4153 = vmatpush.msra.mxu0 %v4152
    %v4154 = vand.u32 %v4036, 4294901760
    %v4155 = vsub.f32 %v4036, %v4154
    %v4156 = vand.u32 %v4155, 4294901760
    %v4157 = vsub.f32 %v4155, %v4156
    %v4158 = vand.u32 %v4157, 4294901760
    %4159 = vmatpush.msra.mxu0 %v4158
    %v4160 = vand.u32 %v4034, 4294901760
    %v4161 = vsub.f32 %v4034, %v4160
    %v4162 = vand.u32 %v4161, 4294901760
    %v4163 = vsub.f32 %v4161, %v4162
    %v4164 = vand.u32 %v4163, 4294901760
    %4165 = vmatpush.msra.mxu0 %v4164
    %v4166 = vand.u32 %v4049, 4294901760
    %4167 = vmatmul.f32.gmra.mxu0 %v4166
    %v4168 = vpop.f32.mrf.mxu0
    %v4169 = vadd.f32 %v4091, %v4168
    %v4170 = vand.u32 %v4052, 4294901760
    %4171 = vmatmul.f32.gmra.mxu0 %v4170
    %v4172 = vpop.f32.mrf.mxu0
    %v4173 = vadd.f32 %v4099, %v4172
    %v4174 = vand.u32 %v4055, 4294901760
    %4175 = vmatmul.f32.gmra.mxu0 %v4174
    %v4176 = vpop.f32.mrf.mxu0
    %v4177 = vadd.f32 %v4107, %v4176
    %v4178 = vand.u32 %v4058, 4294901760
    %4179 = vmatmul.f32.gmra.mxu0 %v4178
    %v4180 = vpop.f32.mrf.mxu0
    %v4181 = vadd.f32 %v4115, %v4180
    %v4182 = vand.u32 %v4061, 4294901760
    %4183 = vmatmul.f32.gmra.mxu0 %v4182
    %v4184 = vpop.f32.mrf.mxu0
    %v4185 = vadd.f32 %v4123, %v4184
    %4186 = vdwg.mxu0
    %4187 = vmatpush.msra.mxu0 0.0
    %4188 = vmatpush.msra.mxu0 0.0
    %4189 = vmatpush.msra.mxu0 0.0
    %4190 = vmatpush.msra.mxu0 0.0
    %4191 = vmatpush.msra.mxu0 0.0
    %4192 = vmatpush.msra.mxu0 0.0
    %4193 = vmatpush.msra.mxu0 0.0
    %4194 = vmatpush.msra.mxu0 0.0
    %4195 = vmatpush.msra.mxu0 0.0
    %4196 = vmatpush.msra.mxu0 0.0
    %4197 = vmatpush.msra.mxu0 0.0
    %v4198 = vand.u32 %v4042, 4294901760
    %v4199 = vsub.f32 %v4042, %v4198
    %4200 = vmatpush.msra.mxu0 %v4199
    %v4201 = vand.u32 %v4040, 4294901760
    %v4202 = vsub.f32 %v4040, %v4201
    %4203 = vmatpush.msra.mxu0 %v4202
    %v4204 = vand.u32 %v4038, 4294901760
    %v4205 = vsub.f32 %v4038, %v4204
    %4206 = vmatpush.msra.mxu0 %v4205
    %v4207 = vand.u32 %v4036, 4294901760
    %v4208 = vsub.f32 %v4036, %v4207
    %4209 = vmatpush.msra.mxu0 %v4208
    %v4210 = vand.u32 %v4034, 4294901760
    %v4211 = vsub.f32 %v4034, %v4210
    %4212 = vmatpush.msra.mxu0 %v4211
    %v4213 = vand.u32 %v4049, 4294901760
    %v4214 = vsub.f32 %v4049, %v4213
    %4215 = vmatmul.f32.gmra.mxu0 %v4214
    %v4216 = vpop.f32.mrf.mxu0
    %v4217 = vadd.f32 %v4169, %v4216
    %v4218 = vand.u32 %v4052, 4294901760
    %v4219 = vsub.f32 %v4052, %v4218
    %4220 = vmatmul.f32.gmra.mxu0 %v4219
    %v4221 = vpop.f32.mrf.mxu0
    %v4222 = vadd.f32 %v4173, %v4221
    %v4223 = vand.u32 %v4055, 4294901760
    %v4224 = vsub.f32 %v4055, %v4223
    %4225 = vmatmul.f32.gmra.mxu0 %v4224
    %v4226 = vpop.f32.mrf.mxu0
    %v4227 = vadd.f32 %v4177, %v4226
    %v4228 = vand.u32 %v4058, 4294901760
    %v4229 = vsub.f32 %v4058, %v4228
    %4230 = vmatmul.f32.gmra.mxu0 %v4229
    %v4231 = vpop.f32.mrf.mxu0
    %v4232 = vadd.f32 %v4181, %v4231
    %v4233 = vand.u32 %v4061, 4294901760
    %v4234 = vsub.f32 %v4061, %v4233
    %4235 = vmatmul.f32.gmra.mxu0 %v4234
    %v4236 = vpop.f32.mrf.mxu0
    %v4237 = vadd.f32 %v4185, %v4236
    %4238 = vdwg.mxu0
    %4239 = vmatpush.msra.mxu0 0.0
    %4240 = vmatpush.msra.mxu0 0.0
    %4241 = vmatpush.msra.mxu0 0.0
    %4242 = vmatpush.msra.mxu0 0.0
    %4243 = vmatpush.msra.mxu0 0.0
    %4244 = vmatpush.msra.mxu0 0.0
    %4245 = vmatpush.msra.mxu0 0.0
    %4246 = vmatpush.msra.mxu0 0.0
    %4247 = vmatpush.msra.mxu0 0.0
    %4248 = vmatpush.msra.mxu0 0.0
    %4249 = vmatpush.msra.mxu0 0.0
    %v4250 = vand.u32 %v4042, 4294901760
    %4251 = vmatpush.msra.mxu0 %v4250
    %v4252 = vand.u32 %v4040, 4294901760
    %4253 = vmatpush.msra.mxu0 %v4252
    %v4254 = vand.u32 %v4038, 4294901760
    %4255 = vmatpush.msra.mxu0 %v4254
    %v4256 = vand.u32 %v4036, 4294901760
    %4257 = vmatpush.msra.mxu0 %v4256
    %v4258 = vand.u32 %v4034, 4294901760
    %4259 = vmatpush.msra.mxu0 %v4258
    %v4260 = vand.u32 %v4049, 4294901760
    %v4261 = vsub.f32 %v4049, %v4260
    %v4262 = vand.u32 %v4261, 4294901760
    %4263 = vmatmul.f32.gmra.mxu0 %v4262
    %v4264 = vpop.f32.mrf.mxu0
    %v4265 = vadd.f32 %v4217, %v4264
    %v4266 = vand.u32 %v4052, 4294901760
    %v4267 = vsub.f32 %v4052, %v4266
    %v4268 = vand.u32 %v4267, 4294901760
    %4269 = vmatmul.f32.gmra.mxu0 %v4268
    %v4270 = vpop.f32.mrf.mxu0
    %v4271 = vadd.f32 %v4222, %v4270
    %v4272 = vand.u32 %v4055, 4294901760
    %v4273 = vsub.f32 %v4055, %v4272
    %v4274 = vand.u32 %v4273, 4294901760
    %4275 = vmatmul.f32.gmra.mxu0 %v4274
    %v4276 = vpop.f32.mrf.mxu0
    %v4277 = vadd.f32 %v4227, %v4276
    %v4278 = vand.u32 %v4058, 4294901760
    %v4279 = vsub.f32 %v4058, %v4278
    %v4280 = vand.u32 %v4279, 4294901760
    %4281 = vmatmul.f32.gmra.mxu0 %v4280
    %v4282 = vpop.f32.mrf.mxu0
    %v4283 = vadd.f32 %v4232, %v4282
    %v4284 = vand.u32 %v4061, 4294901760
    %v4285 = vsub.f32 %v4061, %v4284
    %v4286 = vand.u32 %v4285, 4294901760
    %4287 = vmatmul.f32.gmra.mxu0 %v4286
    %v4288 = vpop.f32.mrf.mxu0
    %v4289 = vadd.f32 %v4237, %v4288
    %4290 = vdwg.mxu0
    %4291 = vmatpush.msra.mxu0 0.0
    %4292 = vmatpush.msra.mxu0 0.0
    %4293 = vmatpush.msra.mxu0 0.0
    %4294 = vmatpush.msra.mxu0 0.0
    %4295 = vmatpush.msra.mxu0 0.0
    %4296 = vmatpush.msra.mxu0 0.0
    %4297 = vmatpush.msra.mxu0 0.0
    %4298 = vmatpush.msra.mxu0 0.0
    %4299 = vmatpush.msra.mxu0 0.0
    %4300 = vmatpush.msra.mxu0 0.0
    %4301 = vmatpush.msra.mxu0 0.0
    %v4302 = vand.u32 %v4042, 4294901760
    %v4303 = vsub.f32 %v4042, %v4302
    %v4304 = vand.u32 %v4303, 4294901760
    %4305 = vmatpush.msra.mxu0 %v4304
    %v4306 = vand.u32 %v4040, 4294901760
    %v4307 = vsub.f32 %v4040, %v4306
    %v4308 = vand.u32 %v4307, 4294901760
    %4309 = vmatpush.msra.mxu0 %v4308
    %v4310 = vand.u32 %v4038, 4294901760
    %v4311 = vsub.f32 %v4038, %v4310
    %v4312 = vand.u32 %v4311, 4294901760
    %4313 = vmatpush.msra.mxu0 %v4312
    %v4314 = vand.u32 %v4036, 4294901760
    %v4315 = vsub.f32 %v4036, %v4314
    %v4316 = vand.u32 %v4315, 4294901760
    %4317 = vmatpush.msra.mxu0 %v4316
    %v4318 = vand.u32 %v4034, 4294901760
    %v4319 = vsub.f32 %v4034, %v4318
    %v4320 = vand.u32 %v4319, 4294901760
    %4321 = vmatpush.msra.mxu0 %v4320
    %v4322 = vand.u32 %v4049, 4294901760
    %4323 = vmatmul.f32.gmra.mxu0 %v4322
    %v4324 = vpop.f32.mrf.mxu0
    %v4325 = vadd.f32 %v4265, %v4324
    %v4326 = vand.u32 %v4052, 4294901760
    %4327 = vmatmul.f32.gmra.mxu0 %v4326
    %v4328 = vpop.f32.mrf.mxu0
    %v4329 = vadd.f32 %v4271, %v4328
    %v4330 = vand.u32 %v4055, 4294901760
    %4331 = vmatmul.f32.gmra.mxu0 %v4330
    %v4332 = vpop.f32.mrf.mxu0
    %v4333 = vadd.f32 %v4277, %v4332
    %v4334 = vand.u32 %v4058, 4294901760
    %4335 = vmatmul.f32.gmra.mxu0 %v4334
    %v4336 = vpop.f32.mrf.mxu0
    %v4337 = vadd.f32 %v4283, %v4336
    %v4338 = vand.u32 %v4061, 4294901760
    %4339 = vmatmul.f32.gmra.mxu0 %v4338
    %v4340 = vpop.f32.mrf.mxu0
    %v4341 = vadd.f32 %v4289, %v4340
    %4342 = vdwg.mxu0
    %4343 = vmatpush.msra.mxu0 0.0
    %4344 = vmatpush.msra.mxu0 0.0
    %4345 = vmatpush.msra.mxu0 0.0
    %4346 = vmatpush.msra.mxu0 0.0
    %4347 = vmatpush.msra.mxu0 0.0
    %4348 = vmatpush.msra.mxu0 0.0
    %4349 = vmatpush.msra.mxu0 0.0
    %4350 = vmatpush.msra.mxu0 0.0
    %4351 = vmatpush.msra.mxu0 0.0
    %4352 = vmatpush.msra.mxu0 0.0
    %4353 = vmatpush.msra.mxu0 0.0
    %v4354 = vand.u32 %v4042, 4294901760
    %4355 = vmatpush.msra.mxu0 %v4354
    %v4356 = vand.u32 %v4040, 4294901760
    %4357 = vmatpush.msra.mxu0 %v4356
    %v4358 = vand.u32 %v4038, 4294901760
    %4359 = vmatpush.msra.mxu0 %v4358
    %v4360 = vand.u32 %v4036, 4294901760
    %4361 = vmatpush.msra.mxu0 %v4360
    %v4362 = vand.u32 %v4034, 4294901760
    %4363 = vmatpush.msra.mxu0 %v4362
    %v4364 = vand.u32 %v4049, 4294901760
    %4365 = vmatmul.f32.gmra.mxu0 %v4364
    %v4366 = vpop.f32.mrf.mxu0
    %v4367 = vadd.f32 %v4325, %v4366
    %v4368 = vand.u32 %v4052, 4294901760
    %4369 = vmatmul.f32.gmra.mxu0 %v4368
    %v4370 = vpop.f32.mrf.mxu0
    %v4371 = vadd.f32 %v4329, %v4370
    %v4372 = vand.u32 %v4055, 4294901760
    %4373 = vmatmul.f32.gmra.mxu0 %v4372
    %v4374 = vpop.f32.mrf.mxu0
    %v4375 = vadd.f32 %v4333, %v4374
    %v4376 = vand.u32 %v4058, 4294901760
    %4377 = vmatmul.f32.gmra.mxu0 %v4376
    %v4378 = vpop.f32.mrf.mxu0
    %v4379 = vadd.f32 %v4337, %v4378
    %v4380 = vand.u32 %v4061, 4294901760
    %4381 = vmatmul.f32.gmra.mxu0 %v4380
    %v4382 = vpop.f32.mrf.mxu0
    %v4383 = vadd.f32 %v4341, %v4382
    %4384 = vdwg.mxu0
    %4390 = vrot.lane.b32.xlu0 %v2699, 8
    %v4391 = vpop.permute.xlu0 %4390
    %4392 = vrot.lane.b32.xlu0 %v2703, 8
    %v4393 = vpop.permute.xlu0 %4392
    %4394 = vrot.lane.b32.xlu0 %v2707, 8
    %v4395 = vpop.permute.xlu0 %4394
    %4396 = vrot.lane.b32.xlu0 %v2711, 8
    %v4397 = vpop.permute.xlu0 %4396
    %4398 = vrot.lane.b32.xlu0 %v2715, 8
    %v4399 = vpop.permute.xlu0 %4398
    %4410 = vrot.lane.b32.xlu0 %v3533, 16
    %v4411 = vpop.permute.xlu0 %4410
    %4412 = vrot.lane.b32.xlu0 %v3537, 16
    %v4413 = vpop.permute.xlu0 %4412
    %4414 = vrot.lane.b32.xlu0 %v3541, 16
    %v4415 = vpop.permute.xlu0 %4414
    %4416 = vrot.lane.b32.xlu0 %v3545, 16
    %v4417 = vpop.permute.xlu0 %4416
    %4418 = vrot.lane.b32.xlu0 %v3549, 16
    %v4419 = vpop.permute.xlu0 %4418
    %4430 = vrot.lane.b32.xlu0 %v4367, 24
    %v4431 = vpop.permute.xlu0 %4430
    %4432 = vrot.lane.b32.xlu0 %v4371, 24
    %v4433 = vpop.permute.xlu0 %4432
    %4434 = vrot.lane.b32.xlu0 %v4375, 24
    %v4435 = vpop.permute.xlu0 %4434
    %4436 = vrot.lane.b32.xlu0 %v4379, 24
    %v4437 = vpop.permute.xlu0 %4436
    %4438 = vrot.lane.b32.xlu0 %v4383, 24
    %v4439 = vpop.permute.xlu0 %4438
    %v4445 = vsel %vm1067, %v1865, %v4391
    %v4446 = vsel %vm1067, %v1869, %v4393
    %v4447 = vsel %vm1067, %v1873, %v4395
    %v4448 = vsel %vm1067, %v1877, %v4397
    %v4449 = vsel %vm1067, %v1881, %v4399
    %vm4450 = vcmask 130048
    %v4451 = vsel %vm4450, %v4445, %v4411
    %v4452 = vsel %vm4450, %v4446, %v4413
    %v4453 = vsel %vm4450, %v4447, %v4415
    %v4454 = vsel %vm4450, %v4448, %v4417
    %v4455 = vsel %vm4450, %v4449, %v4419
    %vm4456 = vcmask 195584
    %v4457 = vsel %vm4456, %v4451, %v4431
    %v4458 = vsel %vm4456, %v4452, %v4433
    %v4459 = vsel %vm4456, %v4453, %v4435
    %v4460 = vsel %vm4456, %v4454, %v4437
    %v4461 = vsel %vm4456, %v4455, %v4439
    %v4462 = vld [vmem:[#allocation7 + $0xa9] sm:$0x1]
    %v4463 = vperm.slane %v4462, 0
    %4468 = vrot.lane.b32.xlu0 %v717, 32
    %v4469 = vpop.permute.xlu0 %4468
    %4470 = vrot.lane.b32.xlu0 %v718, 32
    %v4471 = vpop.permute.xlu0 %4470
    %4472 = vrot.lane.b32.xlu0 %v719, 32
    %v4473 = vpop.permute.xlu0 %4472
    %4474 = vrot.lane.b32.xlu0 %v720, 32
    %v4475 = vpop.permute.xlu0 %4474
    %v4481 = vsel %vm559, %v4457, 0
    %v4484 = vsel %vm559, %v4458, 0
    %v4487 = vsel %vm559, %v4459, 0
    %v4490 = vsel %vm559, %v4460, 0
    %v4493 = vsel %vm559, %v4461, 0
    %4495 = vmatpush.msra.mxu0 0.0
    %4496 = vmatpush.msra.mxu0 0.0
    %4497 = vmatpush.msra.mxu0 0.0
    %4498 = vmatpush.msra.mxu0 0.0
    %4499 = vmatpush.msra.mxu0 0.0
    %4500 = vmatpush.msra.mxu0 0.0
    %4501 = vmatpush.msra.mxu0 0.0
    %4502 = vmatpush.msra.mxu0 0.0
    %4503 = vmatpush.msra.mxu0 0.0
    %4504 = vmatpush.msra.mxu0 0.0
    %4505 = vmatpush.msra.mxu0 0.0
    %4506 = vmatpush.msra.mxu0 0.0
    %v4507 = vand.u32 %v4475, 4294901760
    %4508 = vmatpush.msra.mxu0 %v4507
    %v4509 = vand.u32 %v4473, 4294901760
    %4510 = vmatpush.msra.mxu0 %v4509
    %v4511 = vand.u32 %v4471, 4294901760
    %4512 = vmatpush.msra.mxu0 %v4511
    %v4513 = vand.u32 %v4469, 4294901760
    %4514 = vmatpush.msra.mxu0 %v4513
    %v4515 = vand.u32 %v4481, 4294901760
    %v4516 = vsub.f32 %v4481, %v4515
    %v4517 = vand.u32 %v4516, 4294901760
    %v4518 = vsub.f32 %v4516, %v4517
    %v4519 = vand.u32 %v4518, 4294901760
    %4520 = vmatmul.f32.gmra.mxu0 %v4519
    %v4521 = vpop.f32.mrf.mxu0
    %v4522 = vadd.f32 %v4463, %v4521
    %v4523 = vand.u32 %v4484, 4294901760
    %v4524 = vsub.f32 %v4484, %v4523
    %v4525 = vand.u32 %v4524, 4294901760
    %v4526 = vsub.f32 %v4524, %v4525
    %v4527 = vand.u32 %v4526, 4294901760
    %4528 = vmatmul.f32.gmra.mxu0 %v4527
    %v4529 = vpop.f32.mrf.mxu0
    %v4530 = vadd.f32 %v4463, %v4529
    %v4531 = vand.u32 %v4487, 4294901760
    %v4532 = vsub.f32 %v4487, %v4531
    %v4533 = vand.u32 %v4532, 4294901760
    %v4534 = vsub.f32 %v4532, %v4533
    %v4535 = vand.u32 %v4534, 4294901760
    %4536 = vmatmul.f32.gmra.mxu0 %v4535
    %v4537 = vpop.f32.mrf.mxu0
    %v4538 = vadd.f32 %v4463, %v4537
    %v4539 = vand.u32 %v4490, 4294901760
    %v4540 = vsub.f32 %v4490, %v4539
    %v4541 = vand.u32 %v4540, 4294901760
    %v4542 = vsub.f32 %v4540, %v4541
    %v4543 = vand.u32 %v4542, 4294901760
    %4544 = vmatmul.f32.gmra.mxu0 %v4543
    %v4545 = vpop.f32.mrf.mxu0
    %v4546 = vadd.f32 %v4463, %v4545
    %v4547 = vand.u32 %v4493, 4294901760
    %v4548 = vsub.f32 %v4493, %v4547
    %v4549 = vand.u32 %v4548, 4294901760
    %v4550 = vsub.f32 %v4548, %v4549
    %v4551 = vand.u32 %v4550, 4294901760
    %4552 = vmatmul.f32.gmra.mxu0 %v4551
    %v4553 = vpop.f32.mrf.mxu0
    %v4554 = vadd.f32 %v4463, %v4553
    %4555 = vdwg.mxu0
    %4556 = vmatpush.msra.mxu0 0.0
    %4557 = vmatpush.msra.mxu0 0.0
    %4558 = vmatpush.msra.mxu0 0.0
    %4559 = vmatpush.msra.mxu0 0.0
    %4560 = vmatpush.msra.mxu0 0.0
    %4561 = vmatpush.msra.mxu0 0.0
    %4562 = vmatpush.msra.mxu0 0.0
    %4563 = vmatpush.msra.mxu0 0.0
    %4564 = vmatpush.msra.mxu0 0.0
    %4565 = vmatpush.msra.mxu0 0.0
    %4566 = vmatpush.msra.mxu0 0.0
    %4567 = vmatpush.msra.mxu0 0.0
    %v4568 = vand.u32 %v4475, 4294901760
    %v4569 = vsub.f32 %v4475, %v4568
    %v4570 = vand.u32 %v4569, 4294901760
    %v4571 = vsub.f32 %v4569, %v4570
    %v4572 = vand.u32 %v4571, 4294901760
    %4573 = vmatpush.msra.mxu0 %v4572
    %v4574 = vand.u32 %v4473, 4294901760
    %v4575 = vsub.f32 %v4473, %v4574
    %v4576 = vand.u32 %v4575, 4294901760
    %v4577 = vsub.f32 %v4575, %v4576
    %v4578 = vand.u32 %v4577, 4294901760
    %4579 = vmatpush.msra.mxu0 %v4578
    %v4580 = vand.u32 %v4471, 4294901760
    %v4581 = vsub.f32 %v4471, %v4580
    %v4582 = vand.u32 %v4581, 4294901760
    %v4583 = vsub.f32 %v4581, %v4582
    %v4584 = vand.u32 %v4583, 4294901760
    %4585 = vmatpush.msra.mxu0 %v4584
    %v4586 = vand.u32 %v4469, 4294901760
    %v4587 = vsub.f32 %v4469, %v4586
    %v4588 = vand.u32 %v4587, 4294901760
    %v4589 = vsub.f32 %v4587, %v4588
    %v4590 = vand.u32 %v4589, 4294901760
    %4591 = vmatpush.msra.mxu0 %v4590
    %v4592 = vand.u32 %v4481, 4294901760
    %4593 = vmatmul.f32.gmra.mxu0 %v4592
    %v4594 = vpop.f32.mrf.mxu0
    %v4595 = vadd.f32 %v4522, %v4594
    %v4596 = vand.u32 %v4484, 4294901760
    %4597 = vmatmul.f32.gmra.mxu0 %v4596
    %v4598 = vpop.f32.mrf.mxu0
    %v4599 = vadd.f32 %v4530, %v4598
    %v4600 = vand.u32 %v4487, 4294901760
    %4601 = vmatmul.f32.gmra.mxu0 %v4600
    %v4602 = vpop.f32.mrf.mxu0
    %v4603 = vadd.f32 %v4538, %v4602
    %v4604 = vand.u32 %v4490, 4294901760
    %4605 = vmatmul.f32.gmra.mxu0 %v4604
    %v4606 = vpop.f32.mrf.mxu0
    %v4607 = vadd.f32 %v4546, %v4606
    %v4608 = vand.u32 %v4493, 4294901760
    %4609 = vmatmul.f32.gmra.mxu0 %v4608
    %v4610 = vpop.f32.mrf.mxu0
    %v4611 = vadd.f32 %v4554, %v4610
    %4612 = vdwg.mxu0
    %4613 = vmatpush.msra.mxu0 0.0
    %4614 = vmatpush.msra.mxu0 0.0
    %4615 = vmatpush.msra.mxu0 0.0
    %4616 = vmatpush.msra.mxu0 0.0
    %4617 = vmatpush.msra.mxu0 0.0
    %4618 = vmatpush.msra.mxu0 0.0
    %4619 = vmatpush.msra.mxu0 0.0
    %4620 = vmatpush.msra.mxu0 0.0
    %4621 = vmatpush.msra.mxu0 0.0
    %4622 = vmatpush.msra.mxu0 0.0
    %4623 = vmatpush.msra.mxu0 0.0
    %4624 = vmatpush.msra.mxu0 0.0
    %v4625 = vand.u32 %v4475, 4294901760
    %v4626 = vsub.f32 %v4475, %v4625
    %4627 = vmatpush.msra.mxu0 %v4626
    %v4628 = vand.u32 %v4473, 4294901760
    %v4629 = vsub.f32 %v4473, %v4628
    %4630 = vmatpush.msra.mxu0 %v4629
    %v4631 = vand.u32 %v4471, 4294901760
    %v4632 = vsub.f32 %v4471, %v4631
    %4633 = vmatpush.msra.mxu0 %v4632
    %v4634 = vand.u32 %v4469, 4294901760
    %v4635 = vsub.f32 %v4469, %v4634
    %4636 = vmatpush.msra.mxu0 %v4635
    %v4637 = vand.u32 %v4481, 4294901760
    %v4638 = vsub.f32 %v4481, %v4637
    %4639 = vmatmul.f32.gmra.mxu0 %v4638
    %v4640 = vpop.f32.mrf.mxu0
    %v4641 = vadd.f32 %v4595, %v4640
    %v4642 = vand.u32 %v4484, 4294901760
    %v4643 = vsub.f32 %v4484, %v4642
    %4644 = vmatmul.f32.gmra.mxu0 %v4643
    %v4645 = vpop.f32.mrf.mxu0
    %v4646 = vadd.f32 %v4599, %v4645
    %v4647 = vand.u32 %v4487, 4294901760
    %v4648 = vsub.f32 %v4487, %v4647
    %4649 = vmatmul.f32.gmra.mxu0 %v4648
    %v4650 = vpop.f32.mrf.mxu0
    %v4651 = vadd.f32 %v4603, %v4650
    %v4652 = vand.u32 %v4490, 4294901760
    %v4653 = vsub.f32 %v4490, %v4652
    %4654 = vmatmul.f32.gmra.mxu0 %v4653
    %v4655 = vpop.f32.mrf.mxu0
    %v4656 = vadd.f32 %v4607, %v4655
    %v4657 = vand.u32 %v4493, 4294901760
    %v4658 = vsub.f32 %v4493, %v4657
    %4659 = vmatmul.f32.gmra.mxu0 %v4658
    %v4660 = vpop.f32.mrf.mxu0
    %v4661 = vadd.f32 %v4611, %v4660
    %4662 = vdwg.mxu0
    %4663 = vmatpush.msra.mxu0 0.0
    %4664 = vmatpush.msra.mxu0 0.0
    %4665 = vmatpush.msra.mxu0 0.0
    %4666 = vmatpush.msra.mxu0 0.0
    %4667 = vmatpush.msra.mxu0 0.0
    %4668 = vmatpush.msra.mxu0 0.0
    %4669 = vmatpush.msra.mxu0 0.0
    %4670 = vmatpush.msra.mxu0 0.0
    %4671 = vmatpush.msra.mxu0 0.0
    %4672 = vmatpush.msra.mxu0 0.0
    %4673 = vmatpush.msra.mxu0 0.0
    %4674 = vmatpush.msra.mxu0 0.0
    %v4675 = vand.u32 %v4475, 4294901760
    %4676 = vmatpush.msra.mxu0 %v4675
    %v4677 = vand.u32 %v4473, 4294901760
    %4678 = vmatpush.msra.mxu0 %v4677
    %v4679 = vand.u32 %v4471, 4294901760
    %4680 = vmatpush.msra.mxu0 %v4679
    %v4681 = vand.u32 %v4469, 4294901760
    %4682 = vmatpush.msra.mxu0 %v4681
    %v4683 = vand.u32 %v4481, 4294901760
    %v4684 = vsub.f32 %v4481, %v4683
    %v4685 = vand.u32 %v4684, 4294901760
    %4686 = vmatmul.f32.gmra.mxu0 %v4685
    %v4687 = vpop.f32.mrf.mxu0
    %v4688 = vadd.f32 %v4641, %v4687
    %v4689 = vand.u32 %v4484, 4294901760
    %v4690 = vsub.f32 %v4484, %v4689
    %v4691 = vand.u32 %v4690, 4294901760
    %4692 = vmatmul.f32.gmra.mxu0 %v4691
    %v4693 = vpop.f32.mrf.mxu0
    %v4694 = vadd.f32 %v4646, %v4693
    %v4695 = vand.u32 %v4487, 4294901760
    %v4696 = vsub.f32 %v4487, %v4695
    %v4697 = vand.u32 %v4696, 4294901760
    %4698 = vmatmul.f32.gmra.mxu0 %v4697
    %v4699 = vpop.f32.mrf.mxu0
    %v4700 = vadd.f32 %v4651, %v4699
    %v4701 = vand.u32 %v4490, 4294901760
    %v4702 = vsub.f32 %v4490, %v4701
    %v4703 = vand.u32 %v4702, 4294901760
    %4704 = vmatmul.f32.gmra.mxu0 %v4703
    %v4705 = vpop.f32.mrf.mxu0
    %v4706 = vadd.f32 %v4656, %v4705
    %v4707 = vand.u32 %v4493, 4294901760
    %v4708 = vsub.f32 %v4493, %v4707
    %v4709 = vand.u32 %v4708, 4294901760
    %4710 = vmatmul.f32.gmra.mxu0 %v4709
    %v4711 = vpop.f32.mrf.mxu0
    %v4712 = vadd.f32 %v4661, %v4711
    %4713 = vdwg.mxu0
    %4714 = vmatpush.msra.mxu0 0.0
    %4715 = vmatpush.msra.mxu0 0.0
    %4716 = vmatpush.msra.mxu0 0.0
    %4717 = vmatpush.msra.mxu0 0.0
    %4718 = vmatpush.msra.mxu0 0.0
    %4719 = vmatpush.msra.mxu0 0.0
    %4720 = vmatpush.msra.mxu0 0.0
    %4721 = vmatpush.msra.mxu0 0.0
    %4722 = vmatpush.msra.mxu0 0.0
    %4723 = vmatpush.msra.mxu0 0.0
    %4724 = vmatpush.msra.mxu0 0.0
    %4725 = vmatpush.msra.mxu0 0.0
    %v4726 = vand.u32 %v4475, 4294901760
    %v4727 = vsub.f32 %v4475, %v4726
    %v4728 = vand.u32 %v4727, 4294901760
    %4729 = vmatpush.msra.mxu0 %v4728
    %v4730 = vand.u32 %v4473, 4294901760
    %v4731 = vsub.f32 %v4473, %v4730
    %v4732 = vand.u32 %v4731, 4294901760
    %4733 = vmatpush.msra.mxu0 %v4732
    %v4734 = vand.u32 %v4471, 4294901760
    %v4735 = vsub.f32 %v4471, %v4734
    %v4736 = vand.u32 %v4735, 4294901760
    %4737 = vmatpush.msra.mxu0 %v4736
    %v4738 = vand.u32 %v4469, 4294901760
    %v4739 = vsub.f32 %v4469, %v4738
    %v4740 = vand.u32 %v4739, 4294901760
    %4741 = vmatpush.msra.mxu0 %v4740
    %v4742 = vand.u32 %v4481, 4294901760
    %4743 = vmatmul.f32.gmra.mxu0 %v4742
    %v4744 = vpop.f32.mrf.mxu0
    %v4745 = vadd.f32 %v4688, %v4744
    %v4746 = vand.u32 %v4484, 4294901760
    %4747 = vmatmul.f32.gmra.mxu0 %v4746
    %v4748 = vpop.f32.mrf.mxu0
    %v4749 = vadd.f32 %v4694, %v4748
    %v4750 = vand.u32 %v4487, 4294901760
    %4751 = vmatmul.f32.gmra.mxu0 %v4750
    %v4752 = vpop.f32.mrf.mxu0
    %v4753 = vadd.f32 %v4700, %v4752
    %v4754 = vand.u32 %v4490, 4294901760
    %4755 = vmatmul.f32.gmra.mxu0 %v4754
    %v4756 = vpop.f32.mrf.mxu0
    %v4757 = vadd.f32 %v4706, %v4756
    %v4758 = vand.u32 %v4493, 4294901760
    %4759 = vmatmul.f32.gmra.mxu0 %v4758
    %v4760 = vpop.f32.mrf.mxu0
    %v4761 = vadd.f32 %v4712, %v4760
    %4762 = vdwg.mxu0
    %4763 = vmatpush.msra.mxu0 0.0
    %4764 = vmatpush.msra.mxu0 0.0
    %4765 = vmatpush.msra.mxu0 0.0
    %4766 = vmatpush.msra.mxu0 0.0
    %4767 = vmatpush.msra.mxu0 0.0
    %4768 = vmatpush.msra.mxu0 0.0
    %4769 = vmatpush.msra.mxu0 0.0
    %4770 = vmatpush.msra.mxu0 0.0
    %4771 = vmatpush.msra.mxu0 0.0
    %4772 = vmatpush.msra.mxu0 0.0
    %4773 = vmatpush.msra.mxu0 0.0
    %4774 = vmatpush.msra.mxu0 0.0
    %v4775 = vand.u32 %v4475, 4294901760
    %4776 = vmatpush.msra.mxu0 %v4775
    %v4777 = vand.u32 %v4473, 4294901760
    %4778 = vmatpush.msra.mxu0 %v4777
    %v4779 = vand.u32 %v4471, 4294901760
    %4780 = vmatpush.msra.mxu0 %v4779
    %v4781 = vand.u32 %v4469, 4294901760
    %4782 = vmatpush.msra.mxu0 %v4781
    %v4783 = vand.u32 %v4481, 4294901760
    %4784 = vmatmul.f32.gmra.mxu0 %v4783
    %v4785 = vpop.f32.mrf.mxu0
    %v4786 = vadd.f32 %v4745, %v4785
    %v4787 = vand.u32 %v4484, 4294901760
    %4788 = vmatmul.f32.gmra.mxu0 %v4787
    %v4789 = vpop.f32.mrf.mxu0
    %v4790 = vadd.f32 %v4749, %v4789
    %v4791 = vand.u32 %v4487, 4294901760
    %4792 = vmatmul.f32.gmra.mxu0 %v4791
    %v4793 = vpop.f32.mrf.mxu0
    %v4794 = vadd.f32 %v4753, %v4793
    %v4795 = vand.u32 %v4490, 4294901760
    %4796 = vmatmul.f32.gmra.mxu0 %v4795
    %v4797 = vpop.f32.mrf.mxu0
    %v4798 = vadd.f32 %v4757, %v4797
    %v4799 = vand.u32 %v4493, 4294901760
    %4800 = vmatmul.f32.gmra.mxu0 %v4799
    %v4801 = vpop.f32.mrf.mxu0
    %v4802 = vadd.f32 %v4761, %v4801
    %4803 = vdwg.mxu0
    %v4804 = vadd.f32 %v712, %v4786
    %v4805 = vadd.f32 %v713, %v4790
    %v4806 = vadd.f32 %v714, %v4794
    %v4807 = vadd.f32 %v715, %v4798
    %v4808 = vadd.f32 %v716, %v4802
    %v4809 = vld [vmem:[#allocation7 + $0xaa] sm:$0x1]
    %v4810 = vld [vmem:[#allocation7 + $0xab] sm:$0x1]
    %v4811 = vsel %vm559, %v4804, 0.0
    %4812 = vadd.xlane.f32.xlu0 %v4811
    %v4813 = vpop.xlane.xlu0 %4812
    %v4814 = vsel %vm559, %v4805, 0.0
    %4815 = vadd.xlane.f32.xlu0 %v4814
    %v4816 = vpop.xlane.xlu0 %4815
    %v4817 = vsel %vm559, %v4806, 0.0
    %4818 = vadd.xlane.f32.xlu0 %v4817
    %v4819 = vpop.xlane.xlu0 %4818
    %v4820 = vsel %vm559, %v4807, 0.0
    %4821 = vadd.xlane.f32.xlu0 %v4820
    %v4822 = vpop.xlane.xlu0 %4821
    %v4823 = vsel %vm559, %v4808, 0.0
    %4824 = vadd.xlane.f32.xlu0 %v4823
    %v4825 = vpop.xlane.xlu0 %4824
    %v4826 = vmul.f32 %v4813, %v581
    %v4827 = vmul.f32 %v4816, %v581
    %v4828 = vmul.f32 %v4819, %v581
    %v4829 = vmul.f32 %v4822, %v581
    %v4830 = vmul.f32 %v4825, %v581
    %v4831 = vsub.f32 %v4804, %v4826
    %v4832 = vsub.f32 %v4805, %v4827
    %v4833 = vsub.f32 %v4806, %v4828
    %v4834 = vsub.f32 %v4807, %v4829
    %v4835 = vsub.f32 %v4808, %v4830
    %v4836 = vmul.f32 %v4831, %v4831
    %v4837 = vmul.f32 %v4832, %v4832
    %v4838 = vmul.f32 %v4833, %v4833
    %v4839 = vmul.f32 %v4834, %v4834
    %v4840 = vmul.f32 %v4835, %v4835
    %v4841 = vsel %vm559, %v4836, 0.0
    %4842 = vadd.xlane.f32.xlu0 %v4841
    %v4843 = vpop.xlane.xlu0 %4842
    %v4844 = vsel %vm559, %v4837, 0.0
    %4845 = vadd.xlane.f32.xlu0 %v4844
    %v4846 = vpop.xlane.xlu0 %4845
    %v4847 = vsel %vm559, %v4838, 0.0
    %4848 = vadd.xlane.f32.xlu0 %v4847
    %v4849 = vpop.xlane.xlu0 %4848
    %v4850 = vsel %vm559, %v4839, 0.0
    %4851 = vadd.xlane.f32.xlu0 %v4850
    %v4852 = vpop.xlane.xlu0 %4851
    %v4853 = vsel %vm559, %v4840, 0.0
    %4854 = vadd.xlane.f32.xlu0 %v4853
    %v4855 = vpop.xlane.xlu0 %4854
    %v4856 = vmul.f32 %v4843, %v581
    %v4857 = vmul.f32 %v4846, %v581
    %v4858 = vmul.f32 %v4849, %v581
    %v4859 = vmul.f32 %v4852, %v581
    %v4860 = vmul.f32 %v4855, %v581
    %v4861 = vadd.f32 %v4856, 1e-06
    %v4862 = vadd.f32 %v4857, 1e-06
    %v4863 = vadd.f32 %v4858, 1e-06
    %v4864 = vadd.f32 %v4859, 1e-06
    %v4865 = vadd.f32 %v4860, 1e-06
    %v4866 = vrsqrt.pop %v4861
    %v4867 = vmul.f32 %v4866, %v4861
    %v4868 = vmul.f32 %v4867, %v4866
    %v4869 = vmul.f32 0.5, %v4868
    %v4870 = vsub.f32 1.5, %v4869
    %v4871 = vmul.f32 %v4866, %v4870
    %vm4872 = vweird.f32 %v4861
    %vm4873 = vweird.f32 %v4866
    %vm4874 = vmor %vm4872, %vm4873
    %v4875 = vsel %vm4874, %v4866, %v4871
    %v4876 = vrsqrt.pop %v4862
    %v4877 = vmul.f32 %v4876, %v4862
    %v4878 = vmul.f32 %v4877, %v4876
    %v4879 = vmul.f32 0.5, %v4878
    %v4880 = vsub.f32 1.5, %v4879
    %v4881 = vmul.f32 %v4876, %v4880
    %vm4882 = vweird.f32 %v4862
    %vm4883 = vweird.f32 %v4876
    %vm4884 = vmor %vm4882, %vm4883
    %v4885 = vsel %vm4884, %v4876, %v4881
    %v4886 = vrsqrt.pop %v4863
    %v4887 = vmul.f32 %v4886, %v4863
    %v4888 = vmul.f32 %v4887, %v4886
    %v4889 = vmul.f32 0.5, %v4888
    %v4890 = vsub.f32 1.5, %v4889
    %v4891 = vmul.f32 %v4886, %v4890
    %vm4892 = vweird.f32 %v4863
    %vm4893 = vweird.f32 %v4886
    %vm4894 = vmor %vm4892, %vm4893
    %v4895 = vsel %vm4894, %v4886, %v4891
    %v4896 = vrsqrt.pop %v4864
    %v4897 = vmul.f32 %v4896, %v4864
    %v4898 = vmul.f32 %v4897, %v4896
    %v4899 = vmul.f32 0.5, %v4898
    %v4900 = vsub.f32 1.5, %v4899
    %v4901 = vmul.f32 %v4896, %v4900
    %vm4902 = vweird.f32 %v4864
    %vm4903 = vweird.f32 %v4896
    %vm4904 = vmor %vm4902, %vm4903
    %v4905 = vsel %vm4904, %v4896, %v4901
    %v4906 = vrsqrt.pop %v4865
    %v4907 = vmul.f32 %v4906, %v4865
    %v4908 = vmul.f32 %v4907, %v4906
    %v4909 = vmul.f32 0.5, %v4908
    %v4910 = vsub.f32 1.5, %v4909
    %v4911 = vmul.f32 %v4906, %v4910
    %vm4912 = vweird.f32 %v4865
    %vm4913 = vweird.f32 %v4906
    %vm4914 = vmor %vm4912, %vm4913
    %v4915 = vsel %vm4914, %v4906, %v4911
    %v4916 = vmul.f32 %v4831, %v4875
    %v4917 = vmul.f32 %v4832, %v4885
    %v4918 = vmul.f32 %v4833, %v4895
    %v4919 = vmul.f32 %v4834, %v4905
    %v4920 = vmul.f32 %v4835, %v4915
    %v4921 = vperm.slane %v4809, 0
    %v4922 = vmul.f32 %v4916, %v4921
    %v4923 = vmul.f32 %v4917, %v4921
    %v4924 = vmul.f32 %v4918, %v4921
    %v4925 = vmul.f32 %v4919, %v4921
    %v4926 = vmul.f32 %v4920, %v4921
    %v4927 = vperm.slane %v4810, 0
    %v4928 = vadd.f32 %v4922, %v4927
    %v4929 = vadd.f32 %v4923, %v4927
    %v4930 = vadd.f32 %v4924, %v4927
    %v4931 = vadd.f32 %v4925, %v4927
    %v4932 = vadd.f32 %v4926, %v4927
    %v4933 = vld [vmem:[%s5 + $0x8] sm:$0xff]
    %v4934 = vld [vmem:[%s5 + $0x18] sm:$0xff]
    %v4935 = vld [vmem:[%s5 + $0x28] sm:$0xff]
    %v4936 = vld [vmem:[%s5 + $0x38] sm:$0xff]
    %v4937 = vld [vmem:[#allocation7 + $0xac] sm:$0x1]
    %v4938 = vperm.slane %v4937, 0
    %v4940 = vsel %vm559, %v4928, 0
    %v4943 = vsel %vm559, %v4929, 0
    %v4946 = vsel %vm559, %v4930, 0
    %v4949 = vsel %vm559, %v4931, 0
    %v4952 = vsel %vm559, %v4932, 0
    %4954 = vmatpush.msra.mxu0 0.0
    %4955 = vmatpush.msra.mxu0 0.0
    %4956 = vmatpush.msra.mxu0 0.0
    %4957 = vmatpush.msra.mxu0 0.0
    %4958 = vmatpush.msra.mxu0 0.0
    %4959 = vmatpush.msra.mxu0 0.0
    %4960 = vmatpush.msra.mxu0 0.0
    %4961 = vmatpush.msra.mxu0 0.0
    %4962 = vmatpush.msra.mxu0 0.0
    %4963 = vmatpush.msra.mxu0 0.0
    %4964 = vmatpush.msra.mxu0 0.0
    %4965 = vmatpush.msra.mxu0 0.0
    %v4966 = vand.u32 %v4936, 4294901760
    %4967 = vmatpush.msra.mxu0 %v4966
    %v4968 = vand.u32 %v4935, 4294901760
    %4969 = vmatpush.msra.mxu0 %v4968
    %v4970 = vand.u32 %v4934, 4294901760
    %4971 = vmatpush.msra.mxu0 %v4970
    %v4972 = vand.u32 %v4933, 4294901760
    %4973 = vmatpush.msra.mxu0 %v4972
    %v4974 = vand.u32 %v4940, 4294901760
    %v4975 = vsub.f32 %v4940, %v4974
    %v4976 = vand.u32 %v4975, 4294901760
    %v4977 = vsub.f32 %v4975, %v4976
    %v4978 = vand.u32 %v4977, 4294901760
    %4979 = vmatmul.f32.gmra.mxu0 %v4978
    %v4980 = vpop.f32.mrf.mxu0
    %v4981 = vadd.f32 %v4938, %v4980
    %v4982 = vand.u32 %v4943, 4294901760
    %v4983 = vsub.f32 %v4943, %v4982
    %v4984 = vand.u32 %v4983, 4294901760
    %v4985 = vsub.f32 %v4983, %v4984
    %v4986 = vand.u32 %v4985, 4294901760
    %4987 = vmatmul.f32.gmra.mxu0 %v4986
    %v4988 = vpop.f32.mrf.mxu0
    %v4989 = vadd.f32 %v4938, %v4988
    %v4990 = vand.u32 %v4946, 4294901760
    %v4991 = vsub.f32 %v4946, %v4990
    %v4992 = vand.u32 %v4991, 4294901760
    %v4993 = vsub.f32 %v4991, %v4992
    %v4994 = vand.u32 %v4993, 4294901760
    %4995 = vmatmul.f32.gmra.mxu0 %v4994
    %v4996 = vpop.f32.mrf.mxu0
    %v4997 = vadd.f32 %v4938, %v4996
    %v4998 = vand.u32 %v4949, 4294901760
    %v4999 = vsub.f32 %v4949, %v4998
    %v5000 = vand.u32 %v4999, 4294901760
    %v5001 = vsub.f32 %v4999, %v5000
    %v5002 = vand.u32 %v5001, 4294901760
    %5003 = vmatmul.f32.gmra.mxu0 %v5002
    %v5004 = vpop.f32.mrf.mxu0
    %v5005 = vadd.f32 %v4938, %v5004
    %v5006 = vand.u32 %v4952, 4294901760
    %v5007 = vsub.f32 %v4952, %v5006
    %v5008 = vand.u32 %v5007, 4294901760
    %v5009 = vsub.f32 %v5007, %v5008
    %v5010 = vand.u32 %v5009, 4294901760
    %5011 = vmatmul.f32.gmra.mxu0 %v5010
    %v5012 = vpop.f32.mrf.mxu0
    %v5013 = vadd.f32 %v4938, %v5012
    %5014 = vdwg.mxu0
    %5015 = vmatpush.msra.mxu0 0.0
    %5016 = vmatpush.msra.mxu0 0.0
    %5017 = vmatpush.msra.mxu0 0.0
    %5018 = vmatpush.msra.mxu0 0.0
    %5019 = vmatpush.msra.mxu0 0.0
    %5020 = vmatpush.msra.mxu0 0.0
    %5021 = vmatpush.msra.mxu0 0.0
    %5022 = vmatpush.msra.mxu0 0.0
    %5023 = vmatpush.msra.mxu0 0.0
    %5024 = vmatpush.msra.mxu0 0.0
    %5025 = vmatpush.msra.mxu0 0.0
    %5026 = vmatpush.msra.mxu0 0.0
    %v5027 = vand.u32 %v4936, 4294901760
    %v5028 = vsub.f32 %v4936, %v5027
    %v5029 = vand.u32 %v5028, 4294901760
    %v5030 = vsub.f32 %v5028, %v5029
    %v5031 = vand.u32 %v5030, 4294901760
    %5032 = vmatpush.msra.mxu0 %v5031
    %v5033 = vand.u32 %v4935, 4294901760
    %v5034 = vsub.f32 %v4935, %v5033
    %v5035 = vand.u32 %v5034, 4294901760
    %v5036 = vsub.f32 %v5034, %v5035
    %v5037 = vand.u32 %v5036, 4294901760
    %5038 = vmatpush.msra.mxu0 %v5037
    %v5039 = vand.u32 %v4934, 4294901760
    %v5040 = vsub.f32 %v4934, %v5039
    %v5041 = vand.u32 %v5040, 4294901760
    %v5042 = vsub.f32 %v5040, %v5041
    %v5043 = vand.u32 %v5042, 4294901760
    %5044 = vmatpush.msra.mxu0 %v5043
    %v5045 = vand.u32 %v4933, 4294901760
    %v5046 = vsub.f32 %v4933, %v5045
    %v5047 = vand.u32 %v5046, 4294901760
    %v5048 = vsub.f32 %v5046, %v5047
    %v5049 = vand.u32 %v5048, 4294901760
    %5050 = vmatpush.msra.mxu0 %v5049
    %v5051 = vand.u32 %v4940, 4294901760
    %5052 = vmatmul.f32.gmra.mxu0 %v5051
    %v5053 = vpop.f32.mrf.mxu0
    %v5054 = vadd.f32 %v4981, %v5053
    %v5055 = vand.u32 %v4943, 4294901760
    %5056 = vmatmul.f32.gmra.mxu0 %v5055
    %v5057 = vpop.f32.mrf.mxu0
    %v5058 = vadd.f32 %v4989, %v5057
    %v5059 = vand.u32 %v4946, 4294901760
    %5060 = vmatmul.f32.gmra.mxu0 %v5059
    %v5061 = vpop.f32.mrf.mxu0
    %v5062 = vadd.f32 %v4997, %v5061
    %v5063 = vand.u32 %v4949, 4294901760
    %5064 = vmatmul.f32.gmra.mxu0 %v5063
    %v5065 = vpop.f32.mrf.mxu0
    %v5066 = vadd.f32 %v5005, %v5065
    %v5067 = vand.u32 %v4952, 4294901760
    %5068 = vmatmul.f32.gmra.mxu0 %v5067
    %v5069 = vpop.f32.mrf.mxu0
    %v5070 = vadd.f32 %v5013, %v5069
    %5071 = vdwg.mxu0
    %5072 = vmatpush.msra.mxu0 0.0
    %5073 = vmatpush.msra.mxu0 0.0
    %5074 = vmatpush.msra.mxu0 0.0
    %5075 = vmatpush.msra.mxu0 0.0
    %5076 = vmatpush.msra.mxu0 0.0
    %5077 = vmatpush.msra.mxu0 0.0
    %5078 = vmatpush.msra.mxu0 0.0
    %5079 = vmatpush.msra.mxu0 0.0
    %5080 = vmatpush.msra.mxu0 0.0
    %5081 = vmatpush.msra.mxu0 0.0
    %5082 = vmatpush.msra.mxu0 0.0
    %5083 = vmatpush.msra.mxu0 0.0
    %v5084 = vand.u32 %v4936, 4294901760
    %v5085 = vsub.f32 %v4936, %v5084
    %5086 = vmatpush.msra.mxu0 %v5085
    %v5087 = vand.u32 %v4935, 4294901760
    %v5088 = vsub.f32 %v4935, %v5087
    %5089 = vmatpush.msra.mxu0 %v5088
    %v5090 = vand.u32 %v4934, 4294901760
    %v5091 = vsub.f32 %v4934, %v5090
    %5092 = vmatpush.msra.mxu0 %v5091
    %v5093 = vand.u32 %v4933, 4294901760
    %v5094 = vsub.f32 %v4933, %v5093
    %5095 = vmatpush.msra.mxu0 %v5094
    %v5096 = vand.u32 %v4940, 4294901760
    %v5097 = vsub.f32 %v4940, %v5096
    %5098 = vmatmul.f32.gmra.mxu0 %v5097
    %v5099 = vpop.f32.mrf.mxu0
    %v5100 = vadd.f32 %v5054, %v5099
    %v5101 = vand.u32 %v4943, 4294901760
    %v5102 = vsub.f32 %v4943, %v5101
    %5103 = vmatmul.f32.gmra.mxu0 %v5102
    %v5104 = vpop.f32.mrf.mxu0
    %v5105 = vadd.f32 %v5058, %v5104
    %v5106 = vand.u32 %v4946, 4294901760
    %v5107 = vsub.f32 %v4946, %v5106
    %5108 = vmatmul.f32.gmra.mxu0 %v5107
    %v5109 = vpop.f32.mrf.mxu0
    %v5110 = vadd.f32 %v5062, %v5109
    %v5111 = vand.u32 %v4949, 4294901760
    %v5112 = vsub.f32 %v4949, %v5111
    %5113 = vmatmul.f32.gmra.mxu0 %v5112
    %v5114 = vpop.f32.mrf.mxu0
    %v5115 = vadd.f32 %v5066, %v5114
    %v5116 = vand.u32 %v4952, 4294901760
    %v5117 = vsub.f32 %v4952, %v5116
    %5118 = vmatmul.f32.gmra.mxu0 %v5117
    %v5119 = vpop.f32.mrf.mxu0
    %v5120 = vadd.f32 %v5070, %v5119
    %5121 = vdwg.mxu0
    %5122 = vmatpush.msra.mxu0 0.0
    %5123 = vmatpush.msra.mxu0 0.0
    %5124 = vmatpush.msra.mxu0 0.0
    %5125 = vmatpush.msra.mxu0 0.0
    %5126 = vmatpush.msra.mxu0 0.0
    %5127 = vmatpush.msra.mxu0 0.0
    %5128 = vmatpush.msra.mxu0 0.0
    %5129 = vmatpush.msra.mxu0 0.0
    %5130 = vmatpush.msra.mxu0 0.0
    %5131 = vmatpush.msra.mxu0 0.0
    %5132 = vmatpush.msra.mxu0 0.0
    %5133 = vmatpush.msra.mxu0 0.0
    %v5134 = vand.u32 %v4936, 4294901760
    %5135 = vmatpush.msra.mxu0 %v5134
    %v5136 = vand.u32 %v4935, 4294901760
    %5137 = vmatpush.msra.mxu0 %v5136
    %v5138 = vand.u32 %v4934, 4294901760
    %5139 = vmatpush.msra.mxu0 %v5138
    %v5140 = vand.u32 %v4933, 4294901760
    %5141 = vmatpush.msra.mxu0 %v5140
    %v5142 = vand.u32 %v4940, 4294901760
    %v5143 = vsub.f32 %v4940, %v5142
    %v5144 = vand.u32 %v5143, 4294901760
    %5145 = vmatmul.f32.gmra.mxu0 %v5144
    %v5146 = vpop.f32.mrf.mxu0
    %v5147 = vadd.f32 %v5100, %v5146
    %v5148 = vand.u32 %v4943, 4294901760
    %v5149 = vsub.f32 %v4943, %v5148
    %v5150 = vand.u32 %v5149, 4294901760
    %5151 = vmatmul.f32.gmra.mxu0 %v5150
    %v5152 = vpop.f32.mrf.mxu0
    %v5153 = vadd.f32 %v5105, %v5152
    %v5154 = vand.u32 %v4946, 4294901760
    %v5155 = vsub.f32 %v4946, %v5154
    %v5156 = vand.u32 %v5155, 4294901760
    %5157 = vmatmul.f32.gmra.mxu0 %v5156
    %v5158 = vpop.f32.mrf.mxu0
    %v5159 = vadd.f32 %v5110, %v5158
    %v5160 = vand.u32 %v4949, 4294901760
    %v5161 = vsub.f32 %v4949, %v5160
    %v5162 = vand.u32 %v5161, 4294901760
    %5163 = vmatmul.f32.gmra.mxu0 %v5162
    %v5164 = vpop.f32.mrf.mxu0
    %v5165 = vadd.f32 %v5115, %v5164
    %v5166 = vand.u32 %v4952, 4294901760
    %v5167 = vsub.f32 %v4952, %v5166
    %v5168 = vand.u32 %v5167, 4294901760
    %5169 = vmatmul.f32.gmra.mxu0 %v5168
    %v5170 = vpop.f32.mrf.mxu0
    %v5171 = vadd.f32 %v5120, %v5170
    %5172 = vdwg.mxu0
    %5173 = vmatpush.msra.mxu0 0.0
    %5174 = vmatpush.msra.mxu0 0.0
    %5175 = vmatpush.msra.mxu0 0.0
    %5176 = vmatpush.msra.mxu0 0.0
    %5177 = vmatpush.msra.mxu0 0.0
    %5178 = vmatpush.msra.mxu0 0.0
    %5179 = vmatpush.msra.mxu0 0.0
    %5180 = vmatpush.msra.mxu0 0.0
    %5181 = vmatpush.msra.mxu0 0.0
    %5182 = vmatpush.msra.mxu0 0.0
    %5183 = vmatpush.msra.mxu0 0.0
    %5184 = vmatpush.msra.mxu0 0.0
    %v5185 = vand.u32 %v4936, 4294901760
    %v5186 = vsub.f32 %v4936, %v5185
    %v5187 = vand.u32 %v5186, 4294901760
    %5188 = vmatpush.msra.mxu0 %v5187
    %v5189 = vand.u32 %v4935, 4294901760
    %v5190 = vsub.f32 %v4935, %v5189
    %v5191 = vand.u32 %v5190, 4294901760
    %5192 = vmatpush.msra.mxu0 %v5191
    %v5193 = vand.u32 %v4934, 4294901760
    %v5194 = vsub.f32 %v4934, %v5193
    %v5195 = vand.u32 %v5194, 4294901760
    %5196 = vmatpush.msra.mxu0 %v5195
    %v5197 = vand.u32 %v4933, 4294901760
    %v5198 = vsub.f32 %v4933, %v5197
    %v5199 = vand.u32 %v5198, 4294901760
    %5200 = vmatpush.msra.mxu0 %v5199
    %v5201 = vand.u32 %v4940, 4294901760
    %5202 = vmatmul.f32.gmra.mxu0 %v5201
    %v5203 = vpop.f32.mrf.mxu0
    %v5204 = vadd.f32 %v5147, %v5203
    %v5205 = vand.u32 %v4943, 4294901760
    %5206 = vmatmul.f32.gmra.mxu0 %v5205
    %v5207 = vpop.f32.mrf.mxu0
    %v5208 = vadd.f32 %v5153, %v5207
    %v5209 = vand.u32 %v4946, 4294901760
    %5210 = vmatmul.f32.gmra.mxu0 %v5209
    %v5211 = vpop.f32.mrf.mxu0
    %v5212 = vadd.f32 %v5159, %v5211
    %v5213 = vand.u32 %v4949, 4294901760
    %5214 = vmatmul.f32.gmra.mxu0 %v5213
    %v5215 = vpop.f32.mrf.mxu0
    %v5216 = vadd.f32 %v5165, %v5215
    %v5217 = vand.u32 %v4952, 4294901760
    %5218 = vmatmul.f32.gmra.mxu0 %v5217
    %v5219 = vpop.f32.mrf.mxu0
    %v5220 = vadd.f32 %v5171, %v5219
    %5221 = vdwg.mxu0
    %5222 = vmatpush.msra.mxu0 0.0
    %5223 = vmatpush.msra.mxu0 0.0
    %5224 = vmatpush.msra.mxu0 0.0
    %5225 = vmatpush.msra.mxu0 0.0
    %5226 = vmatpush.msra.mxu0 0.0
    %5227 = vmatpush.msra.mxu0 0.0
    %5228 = vmatpush.msra.mxu0 0.0
    %5229 = vmatpush.msra.mxu0 0.0
    %5230 = vmatpush.msra.mxu0 0.0
    %5231 = vmatpush.msra.mxu0 0.0
    %5232 = vmatpush.msra.mxu0 0.0
    %5233 = vmatpush.msra.mxu0 0.0
    %v5234 = vand.u32 %v4936, 4294901760
    %5235 = vmatpush.msra.mxu0 %v5234
    %v5236 = vand.u32 %v4935, 4294901760
    %5237 = vmatpush.msra.mxu0 %v5236
    %v5238 = vand.u32 %v4934, 4294901760
    %5239 = vmatpush.msra.mxu0 %v5238
    %v5240 = vand.u32 %v4933, 4294901760
    %5241 = vmatpush.msra.mxu0 %v5240
    %v5242 = vand.u32 %v4940, 4294901760
    %5243 = vmatmul.f32.gmra.mxu0 %v5242
    %v5244 = vpop.f32.mrf.mxu0
    %v5245 = vadd.f32 %v5204, %v5244
    %v5246 = vand.u32 %v4943, 4294901760
    %5247 = vmatmul.f32.gmra.mxu0 %v5246
    %v5248 = vpop.f32.mrf.mxu0
    %v5249 = vadd.f32 %v5208, %v5248
    %v5250 = vand.u32 %v4946, 4294901760
    %5251 = vmatmul.f32.gmra.mxu0 %v5250
    %v5252 = vpop.f32.mrf.mxu0
    %v5253 = vadd.f32 %v5212, %v5252
    %v5254 = vand.u32 %v4949, 4294901760
    %5255 = vmatmul.f32.gmra.mxu0 %v5254
    %v5256 = vpop.f32.mrf.mxu0
    %v5257 = vadd.f32 %v5216, %v5256
    %v5258 = vand.u32 %v4952, 4294901760
    %5259 = vmatmul.f32.gmra.mxu0 %v5258
    %v5260 = vpop.f32.mrf.mxu0
    %v5261 = vadd.f32 %v5220, %v5260
    %5262 = vdwg.mxu0
    %v5263 = vmax.f32 %v5245, 0.0
    %v5264 = vmax.f32 %v5249, 0.0
    %v5265 = vmax.f32 %v5253, 0.0
    %v5266 = vmax.f32 %v5257, 0.0
    %v5267 = vmax.f32 %v5261, 0.0
    %v5268 = vld [vmem:[#allocation7 + $0xad] sm:$0x1]
    %v5269 = vperm.slane %v5268, 0
    %vm5270 = vcmask 523264
    %v5272 = vsel %vm5270, %v5263, 0
    %v5275 = vsel %vm5270, %v5264, 0
    %v5278 = vsel %vm5270, %v5265, 0
    %v5281 = vsel %vm5270, %v5266, 0
    %v5284 = vsel %vm5270, %v5267, 0
    %5286 = vmatpush.msra.mxu0 0.0
    %5287 = vmatpush.msra.mxu0 0.0
    %5288 = vmatpush.msra.mxu0 0.0
    %5289 = vmatpush.msra.mxu0 0.0
    %5290 = vmatpush.msra.mxu0 0.0
    %5291 = vmatpush.msra.mxu0 0.0
    %5292 = vmatpush.msra.mxu0 0.0
    %5293 = vmatpush.msra.mxu0 0.0
    %v5294 = vand.u32 %v106, 4294901760
    %5295 = vmatpush.msra.mxu0 %v5294
    %v5296 = vand.u32 %v105, 4294901760
    %5297 = vmatpush.msra.mxu0 %v5296
    %v5298 = vand.u32 %v104, 4294901760
    %5299 = vmatpush.msra.mxu0 %v5298
    %v5300 = vand.u32 %v103, 4294901760
    %5301 = vmatpush.msra.mxu0 %v5300
    %v5302 = vand.u32 %v102, 4294901760
    %5303 = vmatpush.msra.mxu0 %v5302
    %v5304 = vand.u32 %v101, 4294901760
    %5305 = vmatpush.msra.mxu0 %v5304
    %v5306 = vand.u32 %v100, 4294901760
    %5307 = vmatpush.msra.mxu0 %v5306
    %v5308 = vand.u32 %v99, 4294901760
    %5309 = vmatpush.msra.mxu0 %v5308
    %v5310 = vand.u32 %v5272, 4294901760
    %v5311 = vsub.f32 %v5272, %v5310
    %v5312 = vand.u32 %v5311, 4294901760
    %v5313 = vsub.f32 %v5311, %v5312
    %v5314 = vand.u32 %v5313, 4294901760
    %5315 = vmatmul.f32.gmra.mxu0 %v5314
    %v5316 = vpop.f32.mrf.mxu0
    %v5317 = vadd.f32 %v5269, %v5316
    %v5318 = vand.u32 %v5275, 4294901760
    %v5319 = vsub.f32 %v5275, %v5318
    %v5320 = vand.u32 %v5319, 4294901760
    %v5321 = vsub.f32 %v5319, %v5320
    %v5322 = vand.u32 %v5321, 4294901760
    %5323 = vmatmul.f32.gmra.mxu0 %v5322
    %v5324 = vpop.f32.mrf.mxu0
    %v5325 = vadd.f32 %v5269, %v5324
    %v5326 = vand.u32 %v5278, 4294901760
    %v5327 = vsub.f32 %v5278, %v5326
    %v5328 = vand.u32 %v5327, 4294901760
    %v5329 = vsub.f32 %v5327, %v5328
    %v5330 = vand.u32 %v5329, 4294901760
    %5331 = vmatmul.f32.gmra.mxu0 %v5330
    %v5332 = vpop.f32.mrf.mxu0
    %v5333 = vadd.f32 %v5269, %v5332
    %v5334 = vand.u32 %v5281, 4294901760
    %v5335 = vsub.f32 %v5281, %v5334
    %v5336 = vand.u32 %v5335, 4294901760
    %v5337 = vsub.f32 %v5335, %v5336
    %v5338 = vand.u32 %v5337, 4294901760
    %5339 = vmatmul.f32.gmra.mxu0 %v5338
    %v5340 = vpop.f32.mrf.mxu0
    %v5341 = vadd.f32 %v5269, %v5340
    %v5342 = vand.u32 %v5284, 4294901760
    %v5343 = vsub.f32 %v5284, %v5342
    %v5344 = vand.u32 %v5343, 4294901760
    %v5345 = vsub.f32 %v5343, %v5344
    %v5346 = vand.u32 %v5345, 4294901760
    %5347 = vmatmul.f32.gmra.mxu0 %v5346
    %v5348 = vpop.f32.mrf.mxu0
    %v5349 = vadd.f32 %v5269, %v5348
    %5350 = vdwg.mxu0
    %5351 = vmatpush.msra.mxu0 0.0
    %5352 = vmatpush.msra.mxu0 0.0
    %5353 = vmatpush.msra.mxu0 0.0
    %5354 = vmatpush.msra.mxu0 0.0
    %5355 = vmatpush.msra.mxu0 0.0
    %5356 = vmatpush.msra.mxu0 0.0
    %5357 = vmatpush.msra.mxu0 0.0
    %5358 = vmatpush.msra.mxu0 0.0
    %v5359 = vand.u32 %v106, 4294901760
    %v5360 = vsub.f32 %v106, %v5359
    %v5361 = vand.u32 %v5360, 4294901760
    %v5362 = vsub.f32 %v5360, %v5361
    %v5363 = vand.u32 %v5362, 4294901760
    %5364 = vmatpush.msra.mxu0 %v5363
    %v5365 = vand.u32 %v105, 4294901760
    %v5366 = vsub.f32 %v105, %v5365
    %v5367 = vand.u32 %v5366, 4294901760
    %v5368 = vsub.f32 %v5366, %v5367
    %v5369 = vand.u32 %v5368, 4294901760
    %5370 = vmatpush.msra.mxu0 %v5369
    %v5371 = vand.u32 %v104, 4294901760
    %v5372 = vsub.f32 %v104, %v5371
    %v5373 = vand.u32 %v5372, 4294901760
    %v5374 = vsub.f32 %v5372, %v5373
    %v5375 = vand.u32 %v5374, 4294901760
    %5376 = vmatpush.msra.mxu0 %v5375
    %v5377 = vand.u32 %v103, 4294901760
    %v5378 = vsub.f32 %v103, %v5377
    %v5379 = vand.u32 %v5378, 4294901760
    %v5380 = vsub.f32 %v5378, %v5379
    %v5381 = vand.u32 %v5380, 4294901760
    %5382 = vmatpush.msra.mxu0 %v5381
    %v5383 = vand.u32 %v102, 4294901760
    %v5384 = vsub.f32 %v102, %v5383
    %v5385 = vand.u32 %v5384, 4294901760
    %v5386 = vsub.f32 %v5384, %v5385
    %v5387 = vand.u32 %v5386, 4294901760
    %5388 = vmatpush.msra.mxu0 %v5387
    %v5389 = vand.u32 %v101, 4294901760
    %v5390 = vsub.f32 %v101, %v5389
    %v5391 = vand.u32 %v5390, 4294901760
    %v5392 = vsub.f32 %v5390, %v5391
    %v5393 = vand.u32 %v5392, 4294901760
    %5394 = vmatpush.msra.mxu0 %v5393
    %v5395 = vand.u32 %v100, 4294901760
    %v5396 = vsub.f32 %v100, %v5395
    %v5397 = vand.u32 %v5396, 4294901760
    %v5398 = vsub.f32 %v5396, %v5397
    %v5399 = vand.u32 %v5398, 4294901760
    %5400 = vmatpush.msra.mxu0 %v5399
    %v5401 = vand.u32 %v99, 4294901760
    %v5402 = vsub.f32 %v99, %v5401
    %v5403 = vand.u32 %v5402, 4294901760
    %v5404 = vsub.f32 %v5402, %v5403
    %v5405 = vand.u32 %v5404, 4294901760
    %5406 = vmatpush.msra.mxu0 %v5405
    %v5407 = vand.u32 %v5272, 4294901760
    %5408 = vmatmul.f32.gmra.mxu0 %v5407
    %v5409 = vpop.f32.mrf.mxu0
    %v5410 = vadd.f32 %v5317, %v5409
    %v5411 = vand.u32 %v5275, 4294901760
    %5412 = vmatmul.f32.gmra.mxu0 %v5411
    %v5413 = vpop.f32.mrf.mxu0
    %v5414 = vadd.f32 %v5325, %v5413
    %v5415 = vand.u32 %v5278, 4294901760
    %5416 = vmatmul.f32.gmra.mxu0 %v5415
    %v5417 = vpop.f32.mrf.mxu0
    %v5418 = vadd.f32 %v5333, %v5417
    %v5419 = vand.u32 %v5281, 4294901760
    %5420 = vmatmul.f32.gmra.mxu0 %v5419
    %v5421 = vpop.f32.mrf.mxu0
    %v5422 = vadd.f32 %v5341, %v5421
    %v5423 = vand.u32 %v5284, 4294901760
    %5424 = vmatmul.f32.gmra.mxu0 %v5423
    %v5425 = vpop.f32.mrf.mxu0
    %v5426 = vadd.f32 %v5349, %v5425
    %5427 = vdwg.mxu0
    %5428 = vmatpush.msra.mxu0 0.0
    %5429 = vmatpush.msra.mxu0 0.0
    %5430 = vmatpush.msra.mxu0 0.0
    %5431 = vmatpush.msra.mxu0 0.0
    %5432 = vmatpush.msra.mxu0 0.0
    %5433 = vmatpush.msra.mxu0 0.0
    %5434 = vmatpush.msra.mxu0 0.0
    %5435 = vmatpush.msra.mxu0 0.0
    %v5436 = vand.u32 %v106, 4294901760
    %v5437 = vsub.f32 %v106, %v5436
    %5438 = vmatpush.msra.mxu0 %v5437
    %v5439 = vand.u32 %v105, 4294901760
    %v5440 = vsub.f32 %v105, %v5439
    %5441 = vmatpush.msra.mxu0 %v5440
    %v5442 = vand.u32 %v104, 4294901760
    %v5443 = vsub.f32 %v104, %v5442
    %5444 = vmatpush.msra.mxu0 %v5443
    %v5445 = vand.u32 %v103, 4294901760
    %v5446 = vsub.f32 %v103, %v5445
    %5447 = vmatpush.msra.mxu0 %v5446
    %v5448 = vand.u32 %v102, 4294901760
    %v5449 = vsub.f32 %v102, %v5448
    %5450 = vmatpush.msra.mxu0 %v5449
    %v5451 = vand.u32 %v101, 4294901760
    %v5452 = vsub.f32 %v101, %v5451
    %5453 = vmatpush.msra.mxu0 %v5452
    %v5454 = vand.u32 %v100, 4294901760
    %v5455 = vsub.f32 %v100, %v5454
    %5456 = vmatpush.msra.mxu0 %v5455
    %v5457 = vand.u32 %v99, 4294901760
    %v5458 = vsub.f32 %v99, %v5457
    %5459 = vmatpush.msra.mxu0 %v5458
    %v5460 = vand.u32 %v5272, 4294901760
    %v5461 = vsub.f32 %v5272, %v5460
    %5462 = vmatmul.f32.gmra.mxu0 %v5461
    %v5463 = vpop.f32.mrf.mxu0
    %v5464 = vadd.f32 %v5410, %v5463
    %v5465 = vand.u32 %v5275, 4294901760
    %v5466 = vsub.f32 %v5275, %v5465
    %5467 = vmatmul.f32.gmra.mxu0 %v5466
    %v5468 = vpop.f32.mrf.mxu0
    %v5469 = vadd.f32 %v5414, %v5468
    %v5470 = vand.u32 %v5278, 4294901760
    %v5471 = vsub.f32 %v5278, %v5470
    %5472 = vmatmul.f32.gmra.mxu0 %v5471
    %v5473 = vpop.f32.mrf.mxu0
    %v5474 = vadd.f32 %v5418, %v5473
    %v5475 = vand.u32 %v5281, 4294901760
    %v5476 = vsub.f32 %v5281, %v5475
    %5477 = vmatmul.f32.gmra.mxu0 %v5476
    %v5478 = vpop.f32.mrf.mxu0
    %v5479 = vadd.f32 %v5422, %v5478
    %v5480 = vand.u32 %v5284, 4294901760
    %v5481 = vsub.f32 %v5284, %v5480
    %5482 = vmatmul.f32.gmra.mxu0 %v5481
    %v5483 = vpop.f32.mrf.mxu0
    %v5484 = vadd.f32 %v5426, %v5483
    %5485 = vdwg.mxu0
    %5486 = vmatpush.msra.mxu0 0.0
    %5487 = vmatpush.msra.mxu0 0.0
    %5488 = vmatpush.msra.mxu0 0.0
    %5489 = vmatpush.msra.mxu0 0.0
    %5490 = vmatpush.msra.mxu0 0.0
    %5491 = vmatpush.msra.mxu0 0.0
    %5492 = vmatpush.msra.mxu0 0.0
    %5493 = vmatpush.msra.mxu0 0.0
    %v5494 = vand.u32 %v106, 4294901760
    %5495 = vmatpush.msra.mxu0 %v5494
    %v5496 = vand.u32 %v105, 4294901760
    %5497 = vmatpush.msra.mxu0 %v5496
    %v5498 = vand.u32 %v104, 4294901760
    %5499 = vmatpush.msra.mxu0 %v5498
    %v5500 = vand.u32 %v103, 4294901760
    %5501 = vmatpush.msra.mxu0 %v5500
    %v5502 = vand.u32 %v102, 4294901760
    %5503 = vmatpush.msra.mxu0 %v5502
    %v5504 = vand.u32 %v101, 4294901760
    %5505 = vmatpush.msra.mxu0 %v5504
    %v5506 = vand.u32 %v100, 4294901760
    %5507 = vmatpush.msra.mxu0 %v5506
    %v5508 = vand.u32 %v99, 4294901760
    %5509 = vmatpush.msra.mxu0 %v5508
    %v5510 = vand.u32 %v5272, 4294901760
    %v5511 = vsub.f32 %v5272, %v5510
    %v5512 = vand.u32 %v5511, 4294901760
    %5513 = vmatmul.f32.gmra.mxu0 %v5512
    %v5514 = vpop.f32.mrf.mxu0
    %v5515 = vadd.f32 %v5464, %v5514
    %v5516 = vand.u32 %v5275, 4294901760
    %v5517 = vsub.f32 %v5275, %v5516
    %v5518 = vand.u32 %v5517, 4294901760
    %5519 = vmatmul.f32.gmra.mxu0 %v5518
    %v5520 = vpop.f32.mrf.mxu0
    %v5521 = vadd.f32 %v5469, %v5520
    %v5522 = vand.u32 %v5278, 4294901760
    %v5523 = vsub.f32 %v5278, %v5522
    %v5524 = vand.u32 %v5523, 4294901760
    %5525 = vmatmul.f32.gmra.mxu0 %v5524
    %v5526 = vpop.f32.mrf.mxu0
    %v5527 = vadd.f32 %v5474, %v5526
    %v5528 = vand.u32 %v5281, 4294901760
    %v5529 = vsub.f32 %v5281, %v5528
    %v5530 = vand.u32 %v5529, 4294901760
    %5531 = vmatmul.f32.gmra.mxu0 %v5530
    %v5532 = vpop.f32.mrf.mxu0
    %v5533 = vadd.f32 %v5479, %v5532
    %v5534 = vand.u32 %v5284, 4294901760
    %v5535 = vsub.f32 %v5284, %v5534
    %v5536 = vand.u32 %v5535, 4294901760
    %5537 = vmatmul.f32.gmra.mxu0 %v5536
    %v5538 = vpop.f32.mrf.mxu0
    %v5539 = vadd.f32 %v5484, %v5538
    %5540 = vdwg.mxu0
    %5541 = vmatpush.msra.mxu0 0.0
    %5542 = vmatpush.msra.mxu0 0.0
    %5543 = vmatpush.msra.mxu0 0.0
    %5544 = vmatpush.msra.mxu0 0.0
    %5545 = vmatpush.msra.mxu0 0.0
    %5546 = vmatpush.msra.mxu0 0.0
    %5547 = vmatpush.msra.mxu0 0.0
    %5548 = vmatpush.msra.mxu0 0.0
    %v5549 = vand.u32 %v106, 4294901760
    %v5550 = vsub.f32 %v106, %v5549
    %v5551 = vand.u32 %v5550, 4294901760
    %5552 = vmatpush.msra.mxu0 %v5551
    %v5553 = vand.u32 %v105, 4294901760
    %v5554 = vsub.f32 %v105, %v5553
    %v5555 = vand.u32 %v5554, 4294901760
    %5556 = vmatpush.msra.mxu0 %v5555
    %v5557 = vand.u32 %v104, 4294901760
    %v5558 = vsub.f32 %v104, %v5557
    %v5559 = vand.u32 %v5558, 4294901760
    %5560 = vmatpush.msra.mxu0 %v5559
    %v5561 = vand.u32 %v103, 4294901760
    %v5562 = vsub.f32 %v103, %v5561
    %v5563 = vand.u32 %v5562, 4294901760
    %5564 = vmatpush.msra.mxu0 %v5563
    %v5565 = vand.u32 %v102, 4294901760
    %v5566 = vsub.f32 %v102, %v5565
    %v5567 = vand.u32 %v5566, 4294901760
    %5568 = vmatpush.msra.mxu0 %v5567
    %v5569 = vand.u32 %v101, 4294901760
    %v5570 = vsub.f32 %v101, %v5569
    %v5571 = vand.u32 %v5570, 4294901760
    %5572 = vmatpush.msra.mxu0 %v5571
    %v5573 = vand.u32 %v100, 4294901760
    %v5574 = vsub.f32 %v100, %v5573
    %v5575 = vand.u32 %v5574, 4294901760
    %5576 = vmatpush.msra.mxu0 %v5575
    %v5577 = vand.u32 %v99, 4294901760
    %v5578 = vsub.f32 %v99, %v5577
    %v5579 = vand.u32 %v5578, 4294901760
    %5580 = vmatpush.msra.mxu0 %v5579
    %v5581 = vand.u32 %v5272, 4294901760
    %5582 = vmatmul.f32.gmra.mxu0 %v5581
    %v5583 = vpop.f32.mrf.mxu0
    %v5584 = vadd.f32 %v5515, %v5583
    %v5585 = vand.u32 %v5275, 4294901760
    %5586 = vmatmul.f32.gmra.mxu0 %v5585
    %v5587 = vpop.f32.mrf.mxu0
    %v5588 = vadd.f32 %v5521, %v5587
    %v5589 = vand.u32 %v5278, 4294901760
    %5590 = vmatmul.f32.gmra.mxu0 %v5589
    %v5591 = vpop.f32.mrf.mxu0
    %v5592 = vadd.f32 %v5527, %v5591
    %v5593 = vand.u32 %v5281, 4294901760
    %5594 = vmatmul.f32.gmra.mxu0 %v5593
    %v5595 = vpop.f32.mrf.mxu0
    %v5596 = vadd.f32 %v5533, %v5595
    %v5597 = vand.u32 %v5284, 4294901760
    %5598 = vmatmul.f32.gmra.mxu0 %v5597
    %v5599 = vpop.f32.mrf.mxu0
    %v5600 = vadd.f32 %v5539, %v5599
    %5601 = vdwg.mxu0
    %5602 = vmatpush.msra.mxu0 0.0
    %5603 = vmatpush.msra.mxu0 0.0
    %5604 = vmatpush.msra.mxu0 0.0
    %5605 = vmatpush.msra.mxu0 0.0
    %5606 = vmatpush.msra.mxu0 0.0
    %5607 = vmatpush.msra.mxu0 0.0
    %5608 = vmatpush.msra.mxu0 0.0
    %5609 = vmatpush.msra.mxu0 0.0
    %v5610 = vand.u32 %v106, 4294901760
    %5611 = vmatpush.msra.mxu0 %v5610
    %v5612 = vand.u32 %v105, 4294901760
    %5613 = vmatpush.msra.mxu0 %v5612
    %v5614 = vand.u32 %v104, 4294901760
    %5615 = vmatpush.msra.mxu0 %v5614
    %v5616 = vand.u32 %v103, 4294901760
    %5617 = vmatpush.msra.mxu0 %v5616
    %v5618 = vand.u32 %v102, 4294901760
    %5619 = vmatpush.msra.mxu0 %v5618
    %v5620 = vand.u32 %v101, 4294901760
    %5621 = vmatpush.msra.mxu0 %v5620
    %v5622 = vand.u32 %v100, 4294901760
    %5623 = vmatpush.msra.mxu0 %v5622
    %v5624 = vand.u32 %v99, 4294901760
    %5625 = vmatpush.msra.mxu0 %v5624
    %v5626 = vand.u32 %v5272, 4294901760
    %5627 = vmatmul.f32.gmra.mxu0 %v5626
    %v5628 = vpop.f32.mrf.mxu0
    %v5629 = vadd.f32 %v5584, %v5628
    %v5630 = vand.u32 %v5275, 4294901760
    %5631 = vmatmul.f32.gmra.mxu0 %v5630
    %v5632 = vpop.f32.mrf.mxu0
    %v5633 = vadd.f32 %v5588, %v5632
    %v5634 = vand.u32 %v5278, 4294901760
    %5635 = vmatmul.f32.gmra.mxu0 %v5634
    %v5636 = vpop.f32.mrf.mxu0
    %v5637 = vadd.f32 %v5592, %v5636
    %v5638 = vand.u32 %v5281, 4294901760
    %5639 = vmatmul.f32.gmra.mxu0 %v5638
    %v5640 = vpop.f32.mrf.mxu0
    %v5641 = vadd.f32 %v5596, %v5640
    %v5642 = vand.u32 %v5284, 4294901760
    %5643 = vmatmul.f32.gmra.mxu0 %v5642
    %v5644 = vpop.f32.mrf.mxu0
    %v5645 = vadd.f32 %v5600, %v5644
    %5646 = vdwg.mxu0
    %v5647 = vadd.f32 %v4928, %v5629
    %v5648 = vadd.f32 %v4929, %v5633
    %v5649 = vadd.f32 %v4930, %v5637
    %v5650 = vadd.f32 %v4931, %v5641
    %v5651 = vadd.f32 %v4932, %v5645
    %v5652 = vld [vmem:[#allocation7 + $0xae] sm:$0x1]
    %v5653 = vld [vmem:[#allocation7 + $0xaf] sm:$0x1]
    %v5654 = vsel %vm559, %v5647, 0.0
    %5655 = vadd.xlane.f32.xlu0 %v5654
    %v5656 = vpop.xlane.xlu0 %5655
    %v5657 = vsel %vm559, %v5648, 0.0
    %5658 = vadd.xlane.f32.xlu0 %v5657
    %v5659 = vpop.xlane.xlu0 %5658
    %v5660 = vsel %vm559, %v5649, 0.0
    %5661 = vadd.xlane.f32.xlu0 %v5660
    %v5662 = vpop.xlane.xlu0 %5661
    %v5663 = vsel %vm559, %v5650, 0.0
    %5664 = vadd.xlane.f32.xlu0 %v5663
    %v5665 = vpop.xlane.xlu0 %5664
    %v5666 = vsel %vm559, %v5651, 0.0
    %5667 = vadd.xlane.f32.xlu0 %v5666
    %v5668 = vpop.xlane.xlu0 %5667
    %v5669 = vmul.f32 %v5656, %v581
    %v5670 = vmul.f32 %v5659, %v581
    %v5671 = vmul.f32 %v5662, %v581
    %v5672 = vmul.f32 %v5665, %v581
    %v5673 = vmul.f32 %v5668, %v581
    %v5674 = vsub.f32 %v5647, %v5669
    %v5675 = vsub.f32 %v5648, %v5670
    %v5676 = vsub.f32 %v5649, %v5671
    %v5677 = vsub.f32 %v5650, %v5672
    %v5678 = vsub.f32 %v5651, %v5673
    %v5679 = vmul.f32 %v5674, %v5674
    %v5680 = vmul.f32 %v5675, %v5675
    %v5681 = vmul.f32 %v5676, %v5676
    %v5682 = vmul.f32 %v5677, %v5677
    %v5683 = vmul.f32 %v5678, %v5678
    %v5684 = vsel %vm559, %v5679, 0.0
    %5685 = vadd.xlane.f32.xlu0 %v5684
    %v5686 = vpop.xlane.xlu0 %5685
    %v5687 = vsel %vm559, %v5680, 0.0
    %5688 = vadd.xlane.f32.xlu0 %v5687
    %v5689 = vpop.xlane.xlu0 %5688
    %v5690 = vsel %vm559, %v5681, 0.0
    %5691 = vadd.xlane.f32.xlu0 %v5690
    %v5692 = vpop.xlane.xlu0 %5691
    %v5693 = vsel %vm559, %v5682, 0.0
    %5694 = vadd.xlane.f32.xlu0 %v5693
    %v5695 = vpop.xlane.xlu0 %5694
    %v5696 = vsel %vm559, %v5683, 0.0
    %5697 = vadd.xlane.f32.xlu0 %v5696
    %v5698 = vpop.xlane.xlu0 %5697
    %v5699 = vmul.f32 %v5686, %v581
    %v5700 = vmul.f32 %v5689, %v581
    %v5701 = vmul.f32 %v5692, %v581
    %v5702 = vmul.f32 %v5695, %v581
    %v5703 = vmul.f32 %v5698, %v581
    %v5704 = vadd.f32 %v5699, 1e-06
    %v5705 = vadd.f32 %v5700, 1e-06
    %v5706 = vadd.f32 %v5701, 1e-06
    %v5707 = vadd.f32 %v5702, 1e-06
    %v5708 = vadd.f32 %v5703, 1e-06
    %v5709 = vrsqrt.pop %v5704
    %v5710 = vmul.f32 %v5709, %v5704
    %v5711 = vmul.f32 %v5710, %v5709
    %v5712 = vmul.f32 0.5, %v5711
    %v5713 = vsub.f32 1.5, %v5712
    %v5714 = vmul.f32 %v5709, %v5713
    %vm5715 = vweird.f32 %v5704
    %vm5716 = vweird.f32 %v5709
    %vm5717 = vmor %vm5715, %vm5716
    %v5718 = vsel %vm5717, %v5709, %v5714
    %v5719 = vrsqrt.pop %v5705
    %v5720 = vmul.f32 %v5719, %v5705
    %v5721 = vmul.f32 %v5720, %v5719
    %v5722 = vmul.f32 0.5, %v5721
    %v5723 = vsub.f32 1.5, %v5722
    %v5724 = vmul.f32 %v5719, %v5723
    %vm5725 = vweird.f32 %v5705
    %vm5726 = vweird.f32 %v5719
    %vm5727 = vmor %vm5725, %vm5726
    %v5728 = vsel %vm5727, %v5719, %v5724
    %v5729 = vrsqrt.pop %v5706
    %v5730 = vmul.f32 %v5729, %v5706
    %v5731 = vmul.f32 %v5730, %v5729
    %v5732 = vmul.f32 0.5, %v5731
    %v5733 = vsub.f32 1.5, %v5732
    %v5734 = vmul.f32 %v5729, %v5733
    %vm5735 = vweird.f32 %v5706
    %vm5736 = vweird.f32 %v5729
    %vm5737 = vmor %vm5735, %vm5736
    %v5738 = vsel %vm5737, %v5729, %v5734
    %v5739 = vrsqrt.pop %v5707
    %v5740 = vmul.f32 %v5739, %v5707
    %v5741 = vmul.f32 %v5740, %v5739
    %v5742 = vmul.f32 0.5, %v5741
    %v5743 = vsub.f32 1.5, %v5742
    %v5744 = vmul.f32 %v5739, %v5743
    %vm5745 = vweird.f32 %v5707
    %vm5746 = vweird.f32 %v5739
    %vm5747 = vmor %vm5745, %vm5746
    %v5748 = vsel %vm5747, %v5739, %v5744
    %v5749 = vrsqrt.pop %v5708
    %v5750 = vmul.f32 %v5749, %v5708
    %v5751 = vmul.f32 %v5750, %v5749
    %v5752 = vmul.f32 0.5, %v5751
    %v5753 = vsub.f32 1.5, %v5752
    %v5754 = vmul.f32 %v5749, %v5753
    %vm5755 = vweird.f32 %v5708
    %vm5756 = vweird.f32 %v5749
    %vm5757 = vmor %vm5755, %vm5756
    %v5758 = vsel %vm5757, %v5749, %v5754
    %v5759 = vmul.f32 %v5674, %v5718
    %v5760 = vmul.f32 %v5675, %v5728
    %v5761 = vmul.f32 %v5676, %v5738
    %v5762 = vmul.f32 %v5677, %v5748
    %v5763 = vmul.f32 %v5678, %v5758
    %v5764 = vperm.slane %v5652, 0
    %v5765 = vmul.f32 %v5759, %v5764
    %v5766 = vmul.f32 %v5760, %v5764
    %v5767 = vmul.f32 %v5761, %v5764
    %v5768 = vmul.f32 %v5762, %v5764
    %v5769 = vmul.f32 %v5763, %v5764
    %v5770 = vperm.slane %v5653, 0
    %v5771 = vadd.f32 %v5765, %v5770
    %v5772 = vadd.f32 %v5766, %v5770
    %v5773 = vadd.f32 %v5767, %v5770
    %v5774 = vadd.f32 %v5768, %v5770
    %v5775 = vadd.f32 %v5769, %v5770
    %v5776 = vld [vmem:[#allocation7 + $0xb0] sm:$0x1]
    %v5777 = vld [vmem:[#allocation7 + $0xb1] sm:$0x1]
    %v5778 = vsel %vm559, %v5771, 0.0
    %5779 = vadd.xlane.f32.xlu0 %v5778
    %v5780 = vpop.xlane.xlu0 %5779
    %v5781 = vsel %vm559, %v5772, 0.0
    %5782 = vadd.xlane.f32.xlu0 %v5781
    %v5783 = vpop.xlane.xlu0 %5782
    %v5784 = vsel %vm559, %v5773, 0.0
    %5785 = vadd.xlane.f32.xlu0 %v5784
    %v5786 = vpop.xlane.xlu0 %5785
    %v5787 = vsel %vm559, %v5774, 0.0
    %5788 = vadd.xlane.f32.xlu0 %v5787
    %v5789 = vpop.xlane.xlu0 %5788
    %v5790 = vsel %vm559, %v5775, 0.0
    %5791 = vadd.xlane.f32.xlu0 %v5790
    %v5792 = vpop.xlane.xlu0 %5791
    %v5793 = vmul.f32 %v5780, %v581
    %v5794 = vmul.f32 %v5783, %v581
    %v5795 = vmul.f32 %v5786, %v581
    %v5796 = vmul.f32 %v5789, %v581
    %v5797 = vmul.f32 %v5792, %v581
    %v5798 = vsub.f32 %v5771, %v5793
    %v5799 = vsub.f32 %v5772, %v5794
    %v5800 = vsub.f32 %v5773, %v5795
    %v5801 = vsub.f32 %v5774, %v5796
    %v5802 = vsub.f32 %v5775, %v5797
    %v5803 = vmul.f32 %v5798, %v5798
    %v5804 = vmul.f32 %v5799, %v5799
    %v5805 = vmul.f32 %v5800, %v5800
    %v5806 = vmul.f32 %v5801, %v5801
    %v5807 = vmul.f32 %v5802, %v5802
    %v5808 = vsel %vm559, %v5803, 0.0
    %5809 = vadd.xlane.f32.xlu0 %v5808
    %v5810 = vpop.xlane.xlu0 %5809
    %v5811 = vsel %vm559, %v5804, 0.0
    %5812 = vadd.xlane.f32.xlu0 %v5811
    %v5813 = vpop.xlane.xlu0 %5812
    %v5814 = vsel %vm559, %v5805, 0.0
    %5815 = vadd.xlane.f32.xlu0 %v5814
    %v5816 = vpop.xlane.xlu0 %5815
    %v5817 = vsel %vm559, %v5806, 0.0
    %5818 = vadd.xlane.f32.xlu0 %v5817
    %v5819 = vpop.xlane.xlu0 %5818
    %v5820 = vsel %vm559, %v5807, 0.0
    %5821 = vadd.xlane.f32.xlu0 %v5820
    %v5822 = vpop.xlane.xlu0 %5821
    %v5823 = vmul.f32 %v5810, %v581
    %v5824 = vmul.f32 %v5813, %v581
    %v5825 = vmul.f32 %v5816, %v581
    %v5826 = vmul.f32 %v5819, %v581
    %v5827 = vmul.f32 %v5822, %v581
    %v5828 = vadd.f32 %v5823, 1e-06
    %v5829 = vadd.f32 %v5824, 1e-06
    %v5830 = vadd.f32 %v5825, 1e-06
    %v5831 = vadd.f32 %v5826, 1e-06
    %v5832 = vadd.f32 %v5827, 1e-06
    %v5833 = vrsqrt.pop %v5828
    %v5834 = vmul.f32 %v5833, %v5828
    %v5835 = vmul.f32 %v5834, %v5833
    %v5836 = vmul.f32 0.5, %v5835
    %v5837 = vsub.f32 1.5, %v5836
    %v5838 = vmul.f32 %v5833, %v5837
    %vm5839 = vweird.f32 %v5828
    %vm5840 = vweird.f32 %v5833
    %vm5841 = vmor %vm5839, %vm5840
    %v5842 = vsel %vm5841, %v5833, %v5838
    %v5843 = vrsqrt.pop %v5829
    %v5844 = vmul.f32 %v5843, %v5829
    %v5845 = vmul.f32 %v5844, %v5843
    %v5846 = vmul.f32 0.5, %v5845
    %v5847 = vsub.f32 1.5, %v5846
    %v5848 = vmul.f32 %v5843, %v5847
    %vm5849 = vweird.f32 %v5829
    %vm5850 = vweird.f32 %v5843
    %vm5851 = vmor %vm5849, %vm5850
    %v5852 = vsel %vm5851, %v5843, %v5848
    %v5853 = vrsqrt.pop %v5830
    %v5854 = vmul.f32 %v5853, %v5830
    %v5855 = vmul.f32 %v5854, %v5853
    %v5856 = vmul.f32 0.5, %v5855
    %v5857 = vsub.f32 1.5, %v5856
    %v5858 = vmul.f32 %v5853, %v5857
    %vm5859 = vweird.f32 %v5830
    %vm5860 = vweird.f32 %v5853
    %vm5861 = vmor %vm5859, %vm5860
    %v5862 = vsel %vm5861, %v5853, %v5858
    %v5863 = vrsqrt.pop %v5831
    %v5864 = vmul.f32 %v5863, %v5831
    %v5865 = vmul.f32 %v5864, %v5863
    %v5866 = vmul.f32 0.5, %v5865
    %v5867 = vsub.f32 1.5, %v5866
    %v5868 = vmul.f32 %v5863, %v5867
    %vm5869 = vweird.f32 %v5831
    %vm5870 = vweird.f32 %v5863
    %vm5871 = vmor %vm5869, %vm5870
    %v5872 = vsel %vm5871, %v5863, %v5868
    %v5873 = vrsqrt.pop %v5832
    %v5874 = vmul.f32 %v5873, %v5832
    %v5875 = vmul.f32 %v5874, %v5873
    %v5876 = vmul.f32 0.5, %v5875
    %v5877 = vsub.f32 1.5, %v5876
    %v5878 = vmul.f32 %v5873, %v5877
    %vm5879 = vweird.f32 %v5832
    %vm5880 = vweird.f32 %v5873
    %vm5881 = vmor %vm5879, %vm5880
    %v5882 = vsel %vm5881, %v5873, %v5878
    %v5883 = vmul.f32 %v5798, %v5842
    %v5884 = vmul.f32 %v5799, %v5852
    %v5885 = vmul.f32 %v5800, %v5862
    %v5886 = vmul.f32 %v5801, %v5872
    %v5887 = vmul.f32 %v5802, %v5882
    %v5888 = vperm.slane %v5776, 0
    %v5889 = vmul.f32 %v5883, %v5888
    %v5890 = vmul.f32 %v5884, %v5888
    %v5891 = vmul.f32 %v5885, %v5888
    %v5892 = vmul.f32 %v5886, %v5888
    %v5893 = vmul.f32 %v5887, %v5888
    %v5894 = vperm.slane %v5777, 0
    %v5895 = vadd.f32 %v5889, %v5894
    %v5896 = vadd.f32 %v5890, %v5894
    %v5897 = vadd.f32 %v5891, %v5894
    %v5898 = vadd.f32 %v5892, %v5894
    %v5899 = vadd.f32 %v5893, %v5894
    %5900 = vst.msk [vmem:[%s6] sm:$0xff] %vm559, %v5895
    %5901 = vst.msk [vmem:[%s6 + $0x8] sm:$0xff] %vm559, %v5896
    %5902 = vst.msk [vmem:[%s6 + $0x10] sm:$0xff] %vm559, %v5897
    %5903 = vst.msk [vmem:[%s6 + $0x18] sm:$0xff] %vm559, %v5898
    %5904 = vst.msk [vmem:[%s6 + $0x20] sm:$0xff] %vm559, %v5899
    // Predicated region
    $region42: #{tpu_custom_call.1} parent=1 // pred_check
      _
    $region43: #{tpu_custom_call.1} parent=1 // pred_check_branch
      %5906 = sbr.rel (0) target = $region45
    $region44: #{tpu_custom_call.1} parent=1 // pred_region
      _
    $region45: #{tpu_custom_call.1} parent=1 // pred_fallthru
      _
    // Predicated region
    $region46: #{tpu_custom_call.1} parent=1 // pred_check
      _
    $region47: #{tpu_custom_call.1} parent=1 // pred_check_branch
      %5908 = sbr.rel (0) target = $region49
    $region48: #{tpu_custom_call.1} parent=1 // pred_region
      _
    $region49: #{tpu_custom_call.1} parent=1 // pred_fallthru
      _
    %5909 = vsyncpa [#allocation3], 1
    %5910 = vsyncpa [#allocation5], 1
    %5911 = vsyncpa [#allocation8], 1

</llo_original>
